<compile_context>
chip_gen: v7x
topology: tpu7x:2x2x1
jax: 0.10.0
libtpu: 0.0.40
codegen_flags: <defaults>
</compile_context>

<pallas_src>
import jax
import jax.numpy as jnp
from jax import lax
from jax.experimental import pallas as pl
from jax.experimental.pallas import tpu as pltpu

EPS = 1e-5
LANE = 128                      # pad channel dims to a multiple of this
SUB = 8                         # sublane granularity for row tiles
VMEM_BUDGET = 20 * 1024 * 1024  # tile-sizing budget (double-buffered operands)
VMEM_LIMIT = 32 * 1024 * 1024   # scoped VMEM limit passed to Mosaic (< v7x 64 MiB)


def _round_up(x, m):
    return (x + m - 1) // m * m


# ---------------------------------------------------------------------------
# Pallas kernels
# ---------------------------------------------------------------------------
def _emit_partial_stats(acc, s_ref, q_ref):
    # Per-tile channel sum and sum-of-squares in one sweep over `acc`
    # (variance later formed as E[x^2] - mean^2).  Broadcast across 8 sublanes
    # so the stats block stays (8, C)-aligned.
    s = jnp.sum(acc, axis=0, keepdims=True)
    q = jnp.sum(acc * acc, axis=0, keepdims=True)
    s_ref[...] = jnp.broadcast_to(s[None], s_ref.shape)
    q_ref[...] = jnp.broadcast_to(q[None], q_ref.shape)


def matmul_stats_kernel(p_ref, w_ref, y_ref, s_ref, q_ref):
    # [TM, K] @ [K, C] on the MXU (bf16 in, f32 accumulate) + per-tile BN stats.
    acc = jnp.dot(p_ref[...], w_ref[...], preferred_element_type=jnp.float32)
    y_ref[...] = acc
    _emit_partial_stats(acc, s_ref, q_ref)


def dual_matmul_stats_kernel(p_ref, w_ref, u_ref, v_ref,
                             y_ref, z_ref, sy_ref, qy_ref, sz_ref, qz_ref):
    # conv1 matmul and the 1x1 projection-shortcut matmul share grid + pipeline.
    acc1 = jnp.dot(p_ref[...], w_ref[...], preferred_element_type=jnp.float32)
    y_ref[...] = acc1
    _emit_partial_stats(acc1, sy_ref, qy_ref)
    acc2 = jnp.dot(u_ref[...], v_ref[...], preferred_element_type=jnp.float32)
    z_ref[...] = acc2
    _emit_partial_stats(acc2, sz_ref, qz_ref)


def bn_relu_kernel(y_ref, a_ref, b_ref, o_ref):
    # BN affine (y*scale + shift) + ReLU; emits bf16 to feed the next conv's MXU.
    o_ref[...] = jnp.maximum(y_ref[...] * a_ref[...] + b_ref[...],
                             0.0).astype(o_ref.dtype)


def bn_add_relu_id_kernel(y_ref, x_ref, a_ref, b_ref, o_ref):
    # BN2 affine + identity shortcut + ReLU.
    o_ref[...] = jnp.maximum(y_ref[...] * a_ref[...] + b_ref[...] + x_ref[...], 0.0)


def bn_add_relu_proj_kernel(y_ref, z_ref, ay_ref, by_ref, az_ref, bz_ref, o_ref):
    # BN2 affine + BN_sc affine on the projection branch + add + ReLU.
    t = y_ref[...] * ay_ref[...] + by_ref[...]
    s = z_ref[...] * az_ref[...] + bz_ref[...]
    o_ref[...] = jnp.maximum(t + s, 0.0)


# ---------------------------------------------------------------------------
# pallas_call wrappers (1-D grid over row tiles)
# ---------------------------------------------------------------------------
def _compiler_params():
    return pltpu.CompilerParams(dimension_semantics=("parallel",),
                                vmem_limit_bytes=VMEM_LIMIT)


def _row_spec(tm, c):
    return pl.BlockSpec((tm, c), lambda i: (i, 0))


def _full_spec(r, c):
    return pl.BlockSpec((r, c), lambda i: (0, 0))


def _stat_spec(c):
    return pl.BlockSpec((1, SUB, c), lambda i: (i, 0, 0))


def _stat_shape(nt, c):
    return jax.ShapeDtypeStruct((nt, SUB, c), jnp.float32)


def _matmul_stats(p, w, tm):
    mp, k = p.shape
    c = w.shape[1]
    nt = mp // tm
    return pl.pallas_call(
        matmul_stats_kernel,
        out_shape=(jax.ShapeDtypeStruct((mp, c), jnp.float32),
                   _stat_shape(nt, c), _stat_shape(nt, c)),
        grid=(nt,),
        in_specs=[_row_spec(tm, k), _full_spec(k, c)],
        out_specs=(_row_spec(tm, c), _stat_spec(c), _stat_spec(c)),
        compiler_params=_compiler_params(),
    )(p, w)


def _dual_matmul_stats(p, w, u, v, tm):
    mp, k1 = p.shape
    k2 = u.shape[1]
    c = w.shape[1]
    nt = mp // tm
    return pl.pallas_call(
        dual_matmul_stats_kernel,
        out_shape=(jax.ShapeDtypeStruct((mp, c), jnp.float32),
                   jax.ShapeDtypeStruct((mp, c), jnp.float32),
                   _stat_shape(nt, c), _stat_shape(nt, c),
                   _stat_shape(nt, c), _stat_shape(nt, c)),
        grid=(nt,),
        in_specs=[_row_spec(tm, k1), _full_spec(k1, c),
                  _row_spec(tm, k2), _full_spec(k2, c)],
        out_specs=(_row_spec(tm, c), _row_spec(tm, c),
                   _stat_spec(c), _stat_spec(c), _stat_spec(c), _stat_spec(c)),
        compiler_params=_compiler_params(),
    )(p, w, u, v)


def _bn_relu(y, scale, shift, tm, out_dtype=jnp.bfloat16):
    mp, c = y.shape
    nt = mp // tm
    return pl.pallas_call(
        bn_relu_kernel,
        out_shape=jax.ShapeDtypeStruct((mp, c), out_dtype),
        grid=(nt,),
        in_specs=[_row_spec(tm, c), _full_spec(1, c), _full_spec(1, c)],
        out_specs=_row_spec(tm, c),
        compiler_params=_compiler_params(),
    )(y, scale, shift)


def _bn_add_relu_id(y, x, scale, shift, tm):
    mp, c = y.shape
    nt = mp // tm
    return pl.pallas_call(
        bn_add_relu_id_kernel,
        out_shape=jax.ShapeDtypeStruct((mp, c), jnp.float32),
        grid=(nt,),
        in_specs=[_row_spec(tm, c), _row_spec(tm, c),
                  _full_spec(1, c), _full_spec(1, c)],
        out_specs=_row_spec(tm, c),
        compiler_params=_compiler_params(),
    )(y, x, scale, shift)


def _bn_add_relu_proj(y, z, a2, b2, asc, bsc, tm):
    mp, c = y.shape
    nt = mp // tm
    return pl.pallas_call(
        bn_add_relu_proj_kernel,
        out_shape=jax.ShapeDtypeStruct((mp, c), jnp.float32),
        grid=(nt,),
        in_specs=[_row_spec(tm, c), _row_spec(tm, c),
                  _full_spec(1, c), _full_spec(1, c),
                  _full_spec(1, c), _full_spec(1, c)],
        out_specs=_row_spec(tm, c),
        compiler_params=_compiler_params(),
    )(y, z, a2, b2, asc, bsc)


# ---------------------------------------------------------------------------
# Glue: padding, im2col, BN finalize, tile sizing
# ---------------------------------------------------------------------------
def _pad_axis(x, axis, target):
    if x.shape[axis] == target:
        return x
    pad = [(0, 0)] * x.ndim
    pad[axis] = (0, target - x.shape[axis])
    return jnp.pad(x, pad)


def _im2col3x3(x_nhwc, stride):
    """3x3 / pad=1 im2col.  Returns ([N*Ho*Wo, 9*C], Ho, Wo); K order (kh, kw, c)."""
    n, h, w, c = x_nhwc.shape
    xp = jnp.pad(x_nhwc, ((0, 0), (1, 1), (1, 1), (0, 0)))
    ho = (h - 1) // stride + 1
    wo = (w - 1) // stride + 1
    taps = [xp[:, dh:dh + (ho - 1) * stride + 1:stride,
                  dw:dw + (wo - 1) * stride + 1:stride, :]
            for dh in range(3) for dw in range(3)]
    patches = jnp.concatenate(taps, axis=-1)            # [N, Ho, Wo, 9*C]
    return patches.reshape(n * ho * wo, 9 * c), ho, wo


def _bn_affine(s_parts, q_parts, count, gamma, beta):
    """Two-pass train-mode BN finalize: per-channel (scale, shift) from partials."""
    s = jnp.sum(s_parts[:, 0, :], axis=0, keepdims=True)
    q = jnp.sum(q_parts[:, 0, :], axis=0, keepdims=True)
    mean = s / count
    var = jnp.maximum(q / count - mean * mean, 0.0)
    scale = gamma * lax.rsqrt(var + EPS)
    shift = beta - mean * scale
    return scale, shift


def _pick_tm(m, per_row_bytes, fixed_bytes):
    budget = max(VMEM_BUDGET - fixed_bytes, SUB * per_row_bytes)
    tm = min(int(budget // per_row_bytes), 1024, _round_up(m, SUB))
    return max(SUB, (tm // SUB) * SUB)


# ---------------------------------------------------------------------------
# Basic block forward
# ---------------------------------------------------------------------------
def basic_block(x_nchw, params, stride):
    """Pallas implementation of Basic.forward (train-mode BN). x: [N,Cin,H,W] f32."""
    n, cin, h, w = x_nchw.shape
    planes = params["conv1_w"].shape[-1]
    cin_p = _round_up(cin, LANE)
    c_p = _round_up(planes, LANE)

    x = jnp.transpose(x_nchw, (0, 2, 3, 1)).astype(jnp.float32)       # NHWC
    x = _pad_axis(x, 3, cin_p)                                        # lane-pad channels

    # --- pad / cast parameters (bf16 weights for the MXU, f32 BN params) ---
    w1 = _pad_axis(_pad_axis(params["conv1_w"], 2, cin_p), 3, c_p)
    w1 = w1.reshape(9 * cin_p, c_p).astype(jnp.bfloat16)
    w2 = _pad_axis(_pad_axis(params["conv2_w"], 2, c_p), 3, c_p)
    w2 = w2.reshape(9 * c_p, c_p).astype(jnp.bfloat16)

    def pad_gamma_beta(g, b):
        g = jnp.concatenate([g.reshape(1, -1).astype(jnp.float32),
                             jnp.ones((1, c_p - planes), jnp.float32)], axis=1)
        b = jnp.concatenate([b.reshape(1, -1).astype(jnp.float32),
                             jnp.zeros((1, c_p - planes), jnp.float32)], axis=1)
        return g, b

    g1, be1 = pad_gamma_beta(params["bn1_g"], params["bn1_b"])
    g2, be2 = pad_gamma_beta(params["bn2_g"], params["bn2_b"])

    # --- conv1 patches (bf16) ---
    p1, ho, wo = _im2col3x3(x.astype(jnp.bfloat16), stride)
    m = n * ho * wo
    k1, ks, k2 = 9 * cin_p, cin_p, 9 * c_p

    # Row-tile size from a conservative double-buffered VMEM estimate.
    per_row = 2 * max((k1 + ks) * 2 + 2 * c_p * 4,     # fused conv1 + shortcut matmuls
                      k2 * 2 + c_p * 4,                # conv2 matmul
                      4 * c_p * 4)                     # elementwise combine kernels
    fixed = 2 * 2 * max(k1 + ks, k2) * c_p             # bf16 weights, 2 pipeline buffers
    tm = _pick_tm(m, per_row, fixed)
    mp = _round_up(m, tm)

    def pad_rows(a):
        # Zero rows contribute 0 to sum/sumsq, so BN stats stay exact (count = m).
        return jnp.pad(a, ((0, mp - m), (0, 0))) if mp != m else a

    p1 = pad_rows(p1)
    use_proj = (stride != 1) or (cin != planes)

    if use_proj:
        ws = _pad_axis(_pad_axis(params["sc_w"], 0, cin_p), 1, c_p).astype(jnp.bfloat16)
        gsc, besc = pad_gamma_beta(params["bnsc_g"], params["bnsc_b"])
        xs = x[:, ::stride, ::stride, :].reshape(m, cin_p).astype(jnp.bfloat16)
        xs = pad_rows(xs)
        # Fused: conv1 matmul + 1x1 projection matmul + per-tile BN stats.
        y1, ysc, s1, q1, ssc, qsc = _dual_matmul_stats(p1, w1, xs, ws, tm)
        a_sc, b_sc = _bn_affine(ssc, qsc, float(m), gsc, besc)
    else:
        y1, s1, q1 = _matmul_stats(p1, w1, tm)

    a1, b1 = _bn_affine(s1, q1, float(m), g1, be1)
    z1 = _bn_relu(y1, a1, b1, tm)                      # bf16 [mp, c_p]

    # --- conv2 ---
    z1_nhwc = z1[:m].reshape(n, ho, wo, c_p)
    p2, _, _ = _im2col3x3(z1_nhwc, 1)
    p2 = pad_rows(p2)
    y2, s2, q2 = _matmul_stats(p2, w2, tm)
    a2, b2 = _bn_affine(s2, q2, float(m), g2, be2)

    # --- BN2 + shortcut + add + ReLU ---
    if use_proj:
        out = _bn_add_relu_proj(y2, ysc, a2, b2, a_sc, b_sc, tm)
    else:
        xid = pad_rows(x.reshape(m, c_p))              # cin == planes here
        out = _bn_add_relu_id(y2, xid, a2, b2, tm)

    out = out[:m, :planes].reshape(n, ho, wo, planes)
    return jnp.transpose(out, (0, 3, 1, 2))            # NCHW


# ---------------------------------------------------------------------------
# Pure-JAX f32 reference (correctness check)
# ---------------------------------------------------------------------------
def basic_block_reference(x_nchw, params, stride):
    x = jnp.transpose(x_nchw, (0, 2, 3, 1)).astype(jnp.float32)
    cin = x.shape[-1]
    planes = params["conv1_w"].shape[-1]

    def conv(v, wgt, s, pad):
        return lax.conv_general_dilated(v, wgt, (s, s), ((pad, pad), (pad, pad)),
                                         dimension_numbers=("NHWC", "HWIO", "NHWC"))

    def bn(v, g, b):
        mean = jnp.mean(v, axis=(0, 1, 2), keepdims=True)
        var = jnp.mean((v - mean) ** 2, axis=(0, 1, 2), keepdims=True)
        return (v - mean) * lax.rsqrt(var + EPS) * g.reshape(1, 1, 1, -1) \
               + b.reshape(1, 1, 1, -1)

    z = jax.nn.relu(bn(conv(x, params["conv1_w"], stride, 1),
                       params["bn1_g"], params["bn1_b"]))
    z = bn(conv(z, params["conv2_w"], 1, 1), params["bn2_g"], params["bn2_b"])
    if stride != 1 or cin != planes:
        s = bn(conv(x, params["sc_w"].reshape(1, 1, cin, planes), stride, 0),
               params["bnsc_g"], params["bnsc_b"])
    else:
        s = x
    return jnp.transpose(jax.nn.relu(z + s), (0, 3, 1, 2))


# ---------------------------------------------------------------------------
if __name__ == "__main__":
    def make_params(key, cin, planes):
        ks = jax.random.split(key, 9)
        f32 = jnp.float32
        return {
            # conv weights stored as HWIO; conv biases omitted (no-op under train BN)
            "conv1_w": 0.1 * jax.random.normal(ks[0], (3, 3, cin, planes), f32),
            "bn1_g":   1.0 + 0.1 * jax.random.normal(ks[1], (planes,), f32),
            "bn1_b":   0.1 * jax.random.normal(ks[2], (planes,), f32),
            "conv2_w": 0.1 * jax.random.normal(ks[3], (3, 3, planes, planes), f32),
            "bn2_g":   1.0 + 0.1 * jax.random.normal(ks[4], (planes,), f32),
            "bn2_b":   0.1 * jax.random.normal(ks[5], (planes,), f32),
            "sc_w":    0.1 * jax.random.normal(ks[6], (cin, planes), f32),
            "bnsc_g":  1.0 + 0.1 * jax.random.normal(ks[7], (planes,), f32),
            "bnsc_b":  0.1 * jax.random.normal(ks[8], (planes,), f32),
        }

    key = jax.random.PRNGKey(0)
    bb = jax.jit(basic_block, static_argnums=2)
    # bf16 MXU operands => compare against the f32 reference with loosened tol.
    TOL = 5e-2

    # Case 1: projection shortcut (stride 2, channel change).
    prm = make_params(jax.random.fold_in(key, 0), 4, 8)
    x = jax.random.normal(jax.random.fold_in(key, 1), (2, 4, 16, 16), jnp.float32)
    out = jax.block_until_ready(bb(x, prm, 2))
    ref = basic_block_reference(x, prm, 2)
    assert out.shape == (2, 8, 8, 8), out.shape
    err = float(jnp.max(jnp.abs(out - ref)))
    assert jnp.allclose(out, ref, atol=TOL, rtol=TOL), err

    # Case 2: identity shortcut (stride 1, cin == planes).
    prm2 = make_params(jax.random.fold_in(key, 2), 8, 8)
    x2 = jax.random.normal(jax.random.fold_in(key, 3), (2, 8, 16, 16), jnp.float32)
    out2 = jax.block_until_ready(bb(x2, prm2, 1))
    ref2 = basic_block_reference(x2, prm2, 1)
    assert out2.shape == (2, 8, 16, 16), out2.shape
    err2 = float(jnp.max(jnp.abs(out2 - ref2)))
    assert jnp.allclose(out2, ref2, atol=TOL, rtol=TOL), err2

    print("KERNEL_OK")
</pallas_src>

<mosaic_0001>
module attributes {stable_mosaic.version = 11 : i64} {
  func.func @bn_relu_kernel(%arg0: i32, %arg1: memref<128x128xf32, #tpu.memory_space<vmem>>, %arg2: memref<1x128xf32, #tpu.memory_space<vmem>>, %arg3: memref<1x128xf32, #tpu.memory_space<vmem>>, %arg4: memref<128x128xbf16, #tpu.memory_space<vmem>>) attributes {dimension_semantics = [#tpu.dimension_semantics<parallel>], iteration_bounds = array<i64: 1>, scalar_prefetch = 0 : i64, scratch_operands = 0 : i64, tpu.core_type = #tpu.core_type<tc>, window_params = [{transform_indices = @transform_0, window_bounds = array<i64: 128, 128>}, {pipeline_mode = #tpu.pipeline_mode<synchronous>, transform_indices = @transform_1, window_bounds = array<i64: 1, 128>}, {pipeline_mode = #tpu.pipeline_mode<synchronous>, transform_indices = @transform_2, window_bounds = array<i64: 1, 128>}, {transform_indices = @transform_3, window_bounds = array<i64: 128, 128>}]} {
    %c0 = arith.constant 0 : index
    %c0_0 = arith.constant 0 : index
    %0 = vector.load %arg1[%c0, %c0_0] : memref<128x128xf32, #tpu.memory_space<vmem>>, vector<128x128xf32>
    %c0_1 = arith.constant 0 : index
    %c0_2 = arith.constant 0 : index
    %1 = vector.load %arg2[%c0_1, %c0_2] : memref<1x128xf32, #tpu.memory_space<vmem>>, vector<1x128xf32>
    %2 = vector.broadcast %1 : vector<1x128xf32> to vector<128x128xf32>
    %3 = arith.mulf %0, %2 : vector<128x128xf32>
    %c0_3 = arith.constant 0 : index
    %c0_4 = arith.constant 0 : index
    %4 = vector.load %arg3[%c0_3, %c0_4] : memref<1x128xf32, #tpu.memory_space<vmem>>, vector<1x128xf32>
    %5 = vector.broadcast %4 : vector<1x128xf32> to vector<128x128xf32>
    %6 = arith.addf %3, %5 : vector<128x128xf32>
    %cst = arith.constant 0.000000e+00 : f32
    %7 = vector.broadcast %cst : f32 to vector<128x128xf32>
    %8 = arith.maximumf %6, %7 : vector<128x128xf32>
    %9 = arith.truncf %8 : vector<128x128xf32> to vector<128x128xbf16>
    %c0_5 = arith.constant 0 : index
    %c0_6 = arith.constant 0 : index
    %10 = vector.load %arg4[%c0_5, %c0_6] : memref<128x128xbf16, #tpu.memory_space<vmem>>, vector<128x128xbf16>
    tpu.vector_store %arg4[%c0_5, %c0_6], %9 {strides = array<i32>} : memref<128x128xbf16, #tpu.memory_space<vmem>>, vector<128x128xbf16>,
    return
  }
  func.func @transform_0(%arg0: i32) -> (i32, i32) {
    %c0_i32 = arith.constant 0 : i32
    %c0_i32_0 = arith.constant 0 : i32
    return %arg0, %c0_i32 : i32, i32
  }
  func.func @transform_1(%arg0: i32) -> (i32, i32) {
    %c0_i32 = arith.constant 0 : i32
    %c0_i32_0 = arith.constant 0 : i32
    %c0_i32_1 = arith.constant 0 : i32
    return %c0_i32, %c0_i32_0 : i32, i32
  }
  func.func @transform_2(%arg0: i32) -> (i32, i32) {
    %c0_i32 = arith.constant 0 : i32
    %c0_i32_0 = arith.constant 0 : i32
    %c0_i32_1 = arith.constant 0 : i32
    return %c0_i32, %c0_i32_0 : i32, i32
  }
  func.func @transform_3(%arg0: i32) -> (i32, i32) {
    %c0_i32 = arith.constant 0 : i32
    %c0_i32_0 = arith.constant 0 : i32
    return %arg0, %c0_i32 : i32, i32
  }
}

module attributes {stable_mosaic.version = 11 : i64} {
  func.func @dual_matmul_stats_kernel(%arg0: i32, %arg1: memref<128x1152xbf16, #tpu.memory_space<vmem>>, %arg2: memref<1152x128xbf16, #tpu.memory_space<vmem>>, %arg3: memref<128x128xbf16, #tpu.memory_space<vmem>>, %arg4: memref<128x128xbf16, #tpu.memory_space<vmem>>, %arg5: memref<128x128xf32, #tpu.memory_space<vmem>>, %arg6: memref<128x128xf32, #tpu.memory_space<vmem>>, %arg7: memref<1x8x128xf32, #tpu.memory_space<vmem>>, %arg8: memref<1x8x128xf32, #tpu.memory_space<vmem>>, %arg9: memref<1x8x128xf32, #tpu.memory_space<vmem>>, %arg10: memref<1x8x128xf32, #tpu.memory_space<vmem>>) attributes {dimension_semantics = [#tpu.dimension_semantics<parallel>], iteration_bounds = array<i64: 1>, scalar_prefetch = 0 : i64, scratch_operands = 0 : i64, tpu.core_type = #tpu.core_type<tc>, window_params = [{transform_indices = @transform_0, window_bounds = array<i64: 128, 1152>}, {pipeline_mode = #tpu.pipeline_mode<synchronous>, transform_indices = @transform_1, window_bounds = array<i64: 1152, 128>}, {transform_indices = @transform_2, window_bounds = array<i64: 128, 128>}, {pipeline_mode = #tpu.pipeline_mode<synchronous>, transform_indices = @transform_3, window_bounds = array<i64: 128, 128>}, {transform_indices = @transform_4, window_bounds = array<i64: 128, 128>}, {transform_indices = @transform_5, window_bounds = array<i64: 128, 128>}, {transform_indices = @transform_6, window_bounds = array<i64: 1, 8, 128>}, {transform_indices = @transform_7, window_bounds = array<i64: 1, 8, 128>}, {transform_indices = @transform_8, window_bounds = array<i64: 1, 8, 128>}, {transform_indices = @transform_9, window_bounds = array<i64: 1, 8, 128>}]} {
    %c0 = arith.constant 0 : index
    %c0_0 = arith.constant 0 : index
    %0 = vector.load %arg1[%c0, %c0_0] : memref<128x1152xbf16, #tpu.memory_space<vmem>>, vector<128x1152xbf16>
    %c0_1 = arith.constant 0 : index
    %c0_2 = arith.constant 0 : index
    %1 = vector.load %arg2[%c0_1, %c0_2] : memref<1152x128xbf16, #tpu.memory_space<vmem>>, vector<1152x128xbf16>
    %cst = arith.constant dense<0.000000e+00> : vector<128x128xf32>
    %2 = tpu.matmul %0, %1, %cst {dimension_numbers = #tpu.dot_dimension_numbers<[1], [0], [0], [1], [0, 0, 1, 1], [], []>} : vector<128x1152xbf16>, vector<1152x128xbf16>, vector<128x128xf32> -> vector<128x128xf32>
    %c0_3 = arith.constant 0 : index
    %c0_4 = arith.constant 0 : index
    %3 = vector.load %arg5[%c0_3, %c0_4] : memref<128x128xf32, #tpu.memory_space<vmem>>, vector<128x128xf32>
    tpu.vector_store %arg5[%c0_3, %c0_4], %2 {strides = array<i32>} : memref<128x128xf32, #tpu.memory_space<vmem>>, vector<128x128xf32>,
    %cst_5 = arith.constant dense<0.000000e+00> : vector<128xf32>
    %4 = vector.multi_reduction <add>, %2, %cst_5 [0] : vector<128x128xf32> to vector<128xf32>
    %5 = vector.shape_cast %4 : vector<128xf32> to vector<1x128xf32>
    %6 = arith.mulf %2, %2 : vector<128x128xf32>
    %cst_6 = arith.constant dense<0.000000e+00> : vector<128xf32>
    %7 = vector.multi_reduction <add>, %6, %cst_6 [0] : vector<128x128xf32> to vector<128xf32>
    %8 = vector.shape_cast %7 : vector<128xf32> to vector<1x128xf32>
    %9 = vector.shape_cast %5 : vector<1x128xf32> to vector<1x1x128xf32>
    %10 = vector.shape_cast %9 : vector<1x1x128xf32> to vector<1x1x128xf32>
    %11 = vector.broadcast %10 : vector<1x1x128xf32> to vector<1x8x128xf32>
    %c0_7 = arith.constant 0 : index
    %c0_8 = arith.constant 0 : index
    %c0_9 = arith.constant 0 : index
    %12 = vector.load %arg7[%c0_7, %c0_8, %c0_9] : memref<1x8x128xf32, #tpu.memory_space<vmem>>, vector<1x8x128xf32>
    tpu.vector_store %arg7[%c0_7, %c0_8, %c0_9], %11 {strides = array<i32>} : memref<1x8x128xf32, #tpu.memory_space<vmem>>, vector<1x8x128xf32>,
    %13 = vector.shape_cast %8 : vector<1x128xf32> to vector<1x1x128xf32>
    %14 = vector.shape_cast %13 : vector<1x1x128xf32> to vector<1x1x128xf32>
    %15 = vector.broadcast %14 : vector<1x1x128xf32> to vector<1x8x128xf32>
    %c0_10 = arith.constant 0 : index
    %c0_11 = arith.constant 0 : index
    %c0_12 = arith.constant 0 : index
    %16 = vector.load %arg8[%c0_10, %c0_11, %c0_12] : memref<1x8x128xf32, #tpu.memory_space<vmem>>, vector<1x8x128xf32>
    tpu.vector_store %arg8[%c0_10, %c0_11, %c0_12], %15 {strides = array<i32>} : memref<1x8x128xf32, #tpu.memory_space<vmem>>, vector<1x8x128xf32>,
    %c0_13 = arith.constant 0 : index
    %c0_14 = arith.constant 0 : index
    %17 = vector.load %arg3[%c0_13, %c0_14] : memref<128x128xbf16, #tpu.memory_space<vmem>>, vector<128x128xbf16>
    %c0_15 = arith.constant 0 : index
    %c0_16 = arith.constant 0 : index
    %18 = vector.load %arg4[%c0_15, %c0_16] : memref<128x128xbf16, #tpu.memory_space<vmem>>, vector<128x128xbf16>
    %cst_17 = arith.constant dense<0.000000e+00> : vector<128x128xf32>
    %19 = tpu.matmul %17, %18, %cst_17 {dimension_numbers = #tpu.dot_dimension_numbers<[1], [0], [0], [1], [0, 0, 1, 1], [], []>} : vector<128x128xbf16>, vector<128x128xbf16>, vector<128x128xf32> -> vector<128x128xf32>
    %c0_18 = arith.constant 0 : index
    %c0_19 = arith.constant 0 : index
    %20 = vector.load %arg6[%c0_18, %c0_19] : memref<128x128xf32, #tpu.memory_space<vmem>>, vector<128x128xf32>
    tpu.vector_store %arg6[%c0_18, %c0_19], %19 {strides = array<i32>} : memref<128x128xf32, #tpu.memory_space<vmem>>, vector<128x128xf32>,
    %cst_20 = arith.constant dense<0.000000e+00> : vector<128xf32>
    %21 = vector.multi_reduction <add>, %19, %cst_20 [0] : vector<128x128xf32> to vector<128xf32>
    %22 = vector.shape_cast %21 : vector<128xf32> to vector<1x128xf32>
    %23 = arith.mulf %19, %19 : vector<128x128xf32>
    %cst_21 = arith.constant dense<0.000000e+00> : vector<128xf32>
    %24 = vector.multi_reduction <add>, %23, %cst_21 [0] : vector<128x128xf32> to vector<128xf32>
    %25 = vector.shape_cast %24 : vector<128xf32> to vector<1x128xf32>
    %26 = vector.shape_cast %22 : vector<1x128xf32> to vector<1x1x128xf32>
    %27 = vector.shape_cast %26 : vector<1x1x128xf32> to vector<1x1x128xf32>
    %28 = vector.broadcast %27 : vector<1x1x128xf32> to vector<1x8x128xf32>
    %c0_22 = arith.constant 0 : index
    %c0_23 = arith.constant 0 : index
    %c0_24 = arith.constant 0 : index
    %29 = vector.load %arg9[%c0_22, %c0_23, %c0_24] : memref<1x8x128xf32, #tpu.memory_space<vmem>>, vector<1x8x128xf32>
    tpu.vector_store %arg9[%c0_22, %c0_23, %c0_24], %28 {strides = array<i32>} : memref<1x8x128xf32, #tpu.memory_space<vmem>>, vector<1x8x128xf32>,
    %30 = vector.shape_cast %25 : vector<1x128xf32> to vector<1x1x128xf32>
    %31 = vector.shape_cast %30 : vector<1x1x128xf32> to vector<1x1x128xf32>
    %32 = vector.broadcast %31 : vector<1x1x128xf32> to vector<1x8x128xf32>
    %c0_25 = arith.constant 0 : index
    %c0_26 = arith.constant 0 : index
    %c0_27 = arith.constant 0 : index
    %33 = vector.load %arg10[%c0_25, %c0_26, %c0_27] : memref<1x8x128xf32, #tpu.memory_space<vmem>>, vector<1x8x128xf32>
    tpu.vector_store %arg10[%c0_25, %c0_26, %c0_27], %32 {strides = array<i32>} : memref<1x8x128xf32, #tpu.memory_space<vmem>>, vector<1x8x128xf32>,
    return
  }
  func.func @transform_0(%arg0: i32) -> (i32, i32) {
    %c0_i32 = arith.constant 0 : i32
    %c0_i32_0 = arith.constant 0 : i32
    return %arg0, %c0_i32 : i32, i32
  }
  func.func @transform_1(%arg0: i32) -> (i32, i32) {
    %c0_i32 = arith.constant 0 : i32
    %c0_i32_0 = arith.constant 0 : i32
    %c0_i32_1 = arith.constant 0 : i32
    return %c0_i32, %c0_i32_0 : i32, i32
  }
  func.func @transform_2(%arg0: i32) -> (i32, i32) {
    %c0_i32 = arith.constant 0 : i32
    %c0_i32_0 = arith.constant 0 : i32
    return %arg0, %c0_i32 : i32, i32
  }
  func.func @transform_3(%arg0: i32) -> (i32, i32) {
    %c0_i32 = arith.constant 0 : i32
    %c0_i32_0 = arith.constant 0 : i32
    %c0_i32_1 = arith.constant 0 : i32
    return %c0_i32, %c0_i32_0 : i32, i32
  }
  func.func @transform_4(%arg0: i32) -> (i32, i32) {
    %c0_i32 = arith.constant 0 : i32
    %c0_i32_0 = arith.constant 0 : i32
    return %arg0, %c0_i32 : i32, i32
  }
  func.func @transform_5(%arg0: i32) -> (i32, i32) {
    %c0_i32 = arith.constant 0 : i32
    %c0_i32_0 = arith.constant 0 : i32
    return %arg0, %c0_i32 : i32, i32
  }
  func.func @transform_6(%arg0: i32) -> (i32, i32, i32) {
    %c0_i32 = arith.constant 0 : i32
    %c0_i32_0 = arith.constant 0 : i32
    %c0_i32_1 = arith.constant 0 : i32
    return %arg0, %c0_i32, %c0_i32_0 : i32, i32, i32
  }
  func.func @transform_7(%arg0: i32) -> (i32, i32, i32) {
    %c0_i32 = arith.constant 0 : i32
    %c0_i32_0 = arith.constant 0 : i32
    %c0_i32_1 = arith.constant 0 : i32
    return %arg0, %c0_i32, %c0_i32_0 : i32, i32, i32
  }
  func.func @transform_8(%arg0: i32) -> (i32, i32, i32) {
    %c0_i32 = arith.constant 0 : i32
    %c0_i32_0 = arith.constant 0 : i32
    %c0_i32_1 = arith.constant 0 : i32
    return %arg0, %c0_i32, %c0_i32_0 : i32, i32, i32
  }
  func.func @transform_9(%arg0: i32) -> (i32, i32, i32) {
    %c0_i32 = arith.constant 0 : i32
    %c0_i32_0 = arith.constant 0 : i32
    %c0_i32_1 = arith.constant 0 : i32
    return %arg0, %c0_i32, %c0_i32_0 : i32, i32, i32
  }
}

module attributes {stable_mosaic.version = 11 : i64} {
  func.func @bn_add_relu_proj_kernel(%arg0: i32, %arg1: memref<128x128xf32, #tpu.memory_space<vmem>>, %arg2: memref<128x128xf32, #tpu.memory_space<vmem>>, %arg3: memref<1x128xf32, #tpu.memory_space<vmem>>, %arg4: memref<1x128xf32, #tpu.memory_space<vmem>>, %arg5: memref<1x128xf32, #tpu.memory_space<vmem>>, %arg6: memref<1x128xf32, #tpu.memory_space<vmem>>, %arg7: memref<128x128xf32, #tpu.memory_space<vmem>>) attributes {dimension_semantics = [#tpu.dimension_semantics<parallel>], iteration_bounds = array<i64: 1>, scalar_prefetch = 0 : i64, scratch_operands = 0 : i64, tpu.core_type = #tpu.core_type<tc>, window_params = [{transform_indices = @transform_0, window_bounds = array<i64: 128, 128>}, {transform_indices = @transform_1, window_bounds = array<i64: 128, 128>}, {pipeline_mode = #tpu.pipeline_mode<synchronous>, transform_indices = @transform_2, window_bounds = array<i64: 1, 128>}, {pipeline_mode = #tpu.pipeline_mode<synchronous>, transform_indices = @transform_3, window_bounds = array<i64: 1, 128>}, {pipeline_mode = #tpu.pipeline_mode<synchronous>, transform_indices = @transform_4, window_bounds = array<i64: 1, 128>}, {pipeline_mode = #tpu.pipeline_mode<synchronous>, transform_indices = @transform_5, window_bounds = array<i64: 1, 128>}, {transform_indices = @transform_6, window_bounds = array<i64: 128, 128>}]} {
    %c0 = arith.constant 0 : index
    %c0_0 = arith.constant 0 : index
    %0 = vector.load %arg1[%c0, %c0_0] : memref<128x128xf32, #tpu.memory_space<vmem>>, vector<128x128xf32>
    %c0_1 = arith.constant 0 : index
    %c0_2 = arith.constant 0 : index
    %1 = vector.load %arg3[%c0_1, %c0_2] : memref<1x128xf32, #tpu.memory_space<vmem>>, vector<1x128xf32>
    %2 = vector.broadcast %1 : vector<1x128xf32> to vector<128x128xf32>
    %3 = arith.mulf %0, %2 : vector<128x128xf32>
    %c0_3 = arith.constant 0 : index
    %c0_4 = arith.constant 0 : index
    %4 = vector.load %arg4[%c0_3, %c0_4] : memref<1x128xf32, #tpu.memory_space<vmem>>, vector<1x128xf32>
    %5 = vector.broadcast %4 : vector<1x128xf32> to vector<128x128xf32>
    %6 = arith.addf %3, %5 : vector<128x128xf32>
    %c0_5 = arith.constant 0 : index
    %c0_6 = arith.constant 0 : index
    %7 = vector.load %arg2[%c0_5, %c0_6] : memref<128x128xf32, #tpu.memory_space<vmem>>, vector<128x128xf32>
    %c0_7 = arith.constant 0 : index
    %c0_8 = arith.constant 0 : index
    %8 = vector.load %arg5[%c0_7, %c0_8] : memref<1x128xf32, #tpu.memory_space<vmem>>, vector<1x128xf32>
    %9 = vector.broadcast %8 : vector<1x128xf32> to vector<128x128xf32>
    %10 = arith.mulf %7, %9 : vector<128x128xf32>
    %c0_9 = arith.constant 0 : index
    %c0_10 = arith.constant 0 : index
    %11 = vector.load %arg6[%c0_9, %c0_10] : memref<1x128xf32, #tpu.memory_space<vmem>>, vector<1x128xf32>
    %12 = vector.broadcast %11 : vector<1x128xf32> to vector<128x128xf32>
    %13 = arith.addf %10, %12 : vector<128x128xf32>
    %14 = arith.addf %6, %13 : vector<128x128xf32>
    %cst = arith.constant 0.000000e+00 : f32
    %15 = vector.broadcast %cst : f32 to vector<128x128xf32>
    %16 = arith.maximumf %14, %15 : vector<128x128xf32>
    %c0_11 = arith.constant 0 : index
    %c0_12 = arith.constant 0 : index
    %17 = vector.load %arg7[%c0_11, %c0_12] : memref<128x128xf32, #tpu.memory_space<vmem>>, vector<128x128xf32>
    tpu.vector_store %arg7[%c0_11, %c0_12], %16 {strides = array<i32>} : memref<128x128xf32, #tpu.memory_space<vmem>>, vector<128x128xf32>,
    return
  }
  func.func @transform_0(%arg0: i32) -> (i32, i32) {
    %c0_i32 = arith.constant 0 : i32
    %c0_i32_0 = arith.constant 0 : i32
    return %arg0, %c0_i32 : i32, i32
  }
  func.func @transform_1(%arg0: i32) -> (i32, i32) {
    %c0_i32 = arith.constant 0 : i32
    %c0_i32_0 = arith.constant 0 : i32
    return %arg0, %c0_i32 : i32, i32
  }
  func.func @transform_2(%arg0: i32) -> (i32, i32) {
    %c0_i32 = arith.constant 0 : i32
    %c0_i32_0 = arith.constant 0 : i32
    %c0_i32_1 = arith.constant 0 : i32
    return %c0_i32, %c0_i32_0 : i32, i32
  }
  func.func @transform_3(%arg0: i32) -> (i32, i32) {
    %c0_i32 = arith.constant 0 : i32
    %c0_i32_0 = arith.constant 0 : i32
    %c0_i32_1 = arith.constant 0 : i32
    return %c0_i32, %c0_i32_0 : i32, i32
  }
  func.func @transform_4(%arg0: i32) -> (i32, i32) {
    %c0_i32 = arith.constant 0 : i32
    %c0_i32_0 = arith.constant 0 : i32
    %c0_i32_1 = arith.constant 0 : i32
    return %c0_i32, %c0_i32_0 : i32, i32
  }
  func.func @transform_5(%arg0: i32) -> (i32, i32) {
    %c0_i32 = arith.constant 0 : i32
    %c0_i32_0 = arith.constant 0 : i32
    %c0_i32_1 = arith.constant 0 : i32
    return %c0_i32, %c0_i32_0 : i32, i32
  }
  func.func @transform_6(%arg0: i32) -> (i32, i32) {
    %c0_i32 = arith.constant 0 : i32
    %c0_i32_0 = arith.constant 0 : i32
    return %arg0, %c0_i32 : i32, i32
  }
}

module attributes {stable_mosaic.version = 11 : i64} {
  func.func @matmul_stats_kernel(%arg0: i32, %arg1: memref<128x1152xbf16, #tpu.memory_space<vmem>>, %arg2: memref<1152x128xbf16, #tpu.memory_space<vmem>>, %arg3: memref<128x128xf32, #tpu.memory_space<vmem>>, %arg4: memref<1x8x128xf32, #tpu.memory_space<vmem>>, %arg5: memref<1x8x128xf32, #tpu.memory_space<vmem>>) attributes {dimension_semantics = [#tpu.dimension_semantics<parallel>], iteration_bounds = array<i64: 1>, scalar_prefetch = 0 : i64, scratch_operands = 0 : i64, tpu.core_type = #tpu.core_type<tc>, window_params = [{transform_indices = @transform_0, window_bounds = array<i64: 128, 1152>}, {pipeline_mode = #tpu.pipeline_mode<synchronous>, transform_indices = @transform_1, window_bounds = array<i64: 1152, 128>}, {transform_indices = @transform_2, window_bounds = array<i64: 128, 128>}, {transform_indices = @transform_3, window_bounds = array<i64: 1, 8, 128>}, {transform_indices = @transform_4, window_bounds = array<i64: 1, 8, 128>}]} {
    %c0 = arith.constant 0 : index
    %c0_0 = arith.constant 0 : index
    %0 = vector.load %arg1[%c0, %c0_0] : memref<128x1152xbf16, #tpu.memory_space<vmem>>, vector<128x1152xbf16>
    %c0_1 = arith.constant 0 : index
    %c0_2 = arith.constant 0 : index
    %1 = vector.load %arg2[%c0_1, %c0_2] : memref<1152x128xbf16, #tpu.memory_space<vmem>>, vector<1152x128xbf16>
    %cst = arith.constant dense<0.000000e+00> : vector<128x128xf32>
    %2 = tpu.matmul %0, %1, %cst {dimension_numbers = #tpu.dot_dimension_numbers<[1], [0], [0], [1], [0, 0, 1, 1], [], []>} : vector<128x1152xbf16>, vector<1152x128xbf16>, vector<128x128xf32> -> vector<128x128xf32>
    %c0_3 = arith.constant 0 : index
    %c0_4 = arith.constant 0 : index
    %3 = vector.load %arg3[%c0_3, %c0_4] : memref<128x128xf32, #tpu.memory_space<vmem>>, vector<128x128xf32>
    tpu.vector_store %arg3[%c0_3, %c0_4], %2 {strides = array<i32>} : memref<128x128xf32, #tpu.memory_space<vmem>>, vector<128x128xf32>,
    %cst_5 = arith.constant dense<0.000000e+00> : vector<128xf32>
    %4 = vector.multi_reduction <add>, %2, %cst_5 [0] : vector<128x128xf32> to vector<128xf32>
    %5 = vector.shape_cast %4 : vector<128xf32> to vector<1x128xf32>
    %6 = arith.mulf %2, %2 : vector<128x128xf32>
    %cst_6 = arith.constant dense<0.000000e+00> : vector<128xf32>
    %7 = vector.multi_reduction <add>, %6, %cst_6 [0] : vector<128x128xf32> to vector<128xf32>
    %8 = vector.shape_cast %7 : vector<128xf32> to vector<1x128xf32>
    %9 = vector.shape_cast %5 : vector<1x128xf32> to vector<1x1x128xf32>
    %10 = vector.shape_cast %9 : vector<1x1x128xf32> to vector<1x1x128xf32>
    %11 = vector.broadcast %10 : vector<1x1x128xf32> to vector<1x8x128xf32>
    %c0_7 = arith.constant 0 : index
    %c0_8 = arith.constant 0 : index
    %c0_9 = arith.constant 0 : index
    %12 = vector.load %arg4[%c0_7, %c0_8, %c0_9] : memref<1x8x128xf32, #tpu.memory_space<vmem>>, vector<1x8x128xf32>
    tpu.vector_store %arg4[%c0_7, %c0_8, %c0_9], %11 {strides = array<i32>} : memref<1x8x128xf32, #tpu.memory_space<vmem>>, vector<1x8x128xf32>,
    %13 = vector.shape_cast %8 : vector<1x128xf32> to vector<1x1x128xf32>
    %14 = vector.shape_cast %13 : vector<1x1x128xf32> to vector<1x1x128xf32>
    %15 = vector.broadcast %14 : vector<1x1x128xf32> to vector<1x8x128xf32>
    %c0_10 = arith.constant 0 : index
    %c0_11 = arith.constant 0 : index
    %c0_12 = arith.constant 0 : index
    %16 = vector.load %arg5[%c0_10, %c0_11, %c0_12] : memref<1x8x128xf32, #tpu.memory_space<vmem>>, vector<1x8x128xf32>
    tpu.vector_store %arg5[%c0_10, %c0_11, %c0_12], %15 {strides = array<i32>} : memref<1x8x128xf32, #tpu.memory_space<vmem>>, vector<1x8x128xf32>,
    return
  }
  func.func @transform_0(%arg0: i32) -> (i32, i32) {
    %c0_i32 = arith.constant 0 : i32
    %c0_i32_0 = arith.constant 0 : i32
    return %arg0, %c0_i32 : i32, i32
  }
  func.func @transform_1(%arg0: i32) -> (i32, i32) {
    %c0_i32 = arith.constant 0 : i32
    %c0_i32_0 = arith.constant 0 : i32
    %c0_i32_1 = arith.constant 0 : i32
    return %c0_i32, %c0_i32_0 : i32, i32
  }
  func.func @transform_2(%arg0: i32) -> (i32, i32) {
    %c0_i32 = arith.constant 0 : i32
    %c0_i32_0 = arith.constant 0 : i32
    return %arg0, %c0_i32 : i32, i32
  }
  func.func @transform_3(%arg0: i32) -> (i32, i32, i32) {
    %c0_i32 = arith.constant 0 : i32
    %c0_i32_0 = arith.constant 0 : i32
    %c0_i32_1 = arith.constant 0 : i32
    return %arg0, %c0_i32, %c0_i32_0 : i32, i32, i32
  }
  func.func @transform_4(%arg0: i32) -> (i32, i32, i32) {
    %c0_i32 = arith.constant 0 : i32
    %c0_i32_0 = arith.constant 0 : i32
    %c0_i32_1 = arith.constant 0 : i32
    return %arg0, %c0_i32, %c0_i32_0 : i32, i32, i32
  }
}

</mosaic_0001>

<llo_original>
// kernel: basic_block.5
$region0: #{basic_block.5}
  #allocation0 [shape = 'u32[]', space=smem, size = 0x4, offset = 0x4, fixed_abs, tag = 'smem constant byte address 0x4 - core index']
  #allocation1 [shape = 'u32[144,128]{1,0:T(1,128)}', space=vmem, size = 0x12000, scoped, tag = 'internal scratch']
  %s0 = inlined_call_operand.vmem [shape: f32[128,128], index: 0, kind: input, shape index: {}]
  %s1 = inlined_call_operand.vmem [shape: f32[1,128], index: 1, kind: input, shape index: {}]
  %s2 = inlined_call_operand.vmem [shape: f32[1,128], index: 2, kind: input, shape index: {}]
  %s3 = inlined_call_operand.vmem [shape: bf16[128,128], index: 3, kind: output, shape index: {}]
  %s4 = sld [smem:[#allocation0]]
  $region22: #{basic_block.5} parent=0
    _
  %s6 = ssub.s32 1, %s4
  %s7 = scalar_select 0, %s6, %s4
  // Predicated region
  $region2: #{basic_block.5} parent=0 // pred_check
    _
  $region3: #{basic_block.5} parent=0 // pred_check_branch
    %9 = sbr.rel (0) target = $region5
  $region4: #{basic_block.5} parent=0 // pred_region
    _
  $region5: #{basic_block.5} parent=0 // pred_fallthru
    _
  // Predicated region
  $region6: #{basic_block.5} parent=0 // pred_check
    _
  $region7: #{basic_block.5} parent=0 // pred_check_branch
    %11 = sbr.rel (0) target = $region9
  $region8: #{basic_block.5} parent=0 // pred_region
    _
  $region9: #{basic_block.5} parent=0 // pred_fallthru
    _
  // Predicated region
  $region10: #{basic_block.5} parent=0 // pred_check
    _
  $region11: #{basic_block.5} parent=0 // pred_check_branch
    %13 = sbr.rel (0) target = $region13
  $region12: #{basic_block.5} parent=0 // pred_region
    _
  $region13: #{basic_block.5} parent=0 // pred_fallthru
    _
  %v14 = vld [vmem:[%s0] sm:$0xff]
  %v15 = vld [vmem:[%s0 + $0x8] sm:$0xff]
  %v16 = vld [vmem:[%s0 + $0x10] sm:$0xff]
  %v17 = vld [vmem:[%s0 + $0x18] sm:$0xff]
  %v18 = vld [vmem:[%s0 + $0x20] sm:$0xff]
  %v19 = vld [vmem:[%s0 + $0x28] sm:$0xff]
  %v20 = vld [vmem:[%s0 + $0x30] sm:$0xff]
  %v21 = vld [vmem:[%s0 + $0x38] sm:$0xff]
  %v22 = vld [vmem:[%s0 + $0x40] sm:$0xff]
  %v23 = vld [vmem:[%s0 + $0x48] sm:$0xff]
  %v24 = vld [vmem:[%s0 + $0x50] sm:$0xff]
  %v25 = vld [vmem:[%s0 + $0x58] sm:$0xff]
  %v26 = vld [vmem:[%s0 + $0x60] sm:$0xff]
  %v27 = vld [vmem:[%s0 + $0x68] sm:$0xff]
  %v28 = vld [vmem:[%s0 + $0x70] sm:$0xff]
  %v29 = vld [vmem:[%s0 + $0x78] sm:$0xff]
  %v30 = vld [vmem:[%s1] sm:$0x1]
  %v32 = vlaneseq
  %v33 = vshrl.u32 %v32, 7
  %v34 = vsub.s32 0, %v33
  %v35 = vrot.slane %v30, %v34
  %v37 = vmul.f32 %v14, %v35
  %v38 = vmul.f32 %v15, %v35
  %v39 = vmul.f32 %v16, %v35
  %v40 = vmul.f32 %v17, %v35
  %v41 = vmul.f32 %v18, %v35
  %v42 = vmul.f32 %v19, %v35
  %v43 = vmul.f32 %v20, %v35
  %v44 = vmul.f32 %v21, %v35
  %v45 = vmul.f32 %v22, %v35
  %v46 = vmul.f32 %v23, %v35
  %v47 = vmul.f32 %v24, %v35
  %v48 = vmul.f32 %v25, %v35
  %v49 = vmul.f32 %v26, %v35
  %v50 = vmul.f32 %v27, %v35
  %v51 = vmul.f32 %v28, %v35
  %v52 = vmul.f32 %v29, %v35
  %v53 = vld [vmem:[%s2] sm:$0x1]
  %v55 = vlaneseq
  %v56 = vshrl.u32 %v55, 7
  %v57 = vsub.s32 0, %v56
  %v58 = vrot.slane %v53, %v57
  %v60 = vadd.f32 %v37, %v58
  %v61 = vadd.f32 %v38, %v58
  %v62 = vadd.f32 %v39, %v58
  %v63 = vadd.f32 %v40, %v58
  %v64 = vadd.f32 %v41, %v58
  %v65 = vadd.f32 %v42, %v58
  %v66 = vadd.f32 %v43, %v58
  %v67 = vadd.f32 %v44, %v58
  %v68 = vadd.f32 %v45, %v58
  %v69 = vadd.f32 %v46, %v58
  %v70 = vadd.f32 %v47, %v58
  %v71 = vadd.f32 %v48, %v58
  %v72 = vadd.f32 %v49, %v58
  %v73 = vadd.f32 %v50, %v58
  %v74 = vadd.f32 %v51, %v58
  %v75 = vadd.f32 %v52, %v58
  %v76 = vmax.f32 %v60, 0.0
  %v77 = vmax.f32 %v61, 0.0
  %v78 = vmax.f32 %v62, 0.0
  %v79 = vmax.f32 %v63, 0.0
  %v80 = vmax.f32 %v64, 0.0
  %v81 = vmax.f32 %v65, 0.0
  %v82 = vmax.f32 %v66, 0.0
  %v83 = vmax.f32 %v67, 0.0
  %v84 = vmax.f32 %v68, 0.0
  %v85 = vmax.f32 %v69, 0.0
  %v86 = vmax.f32 %v70, 0.0
  %v87 = vmax.f32 %v71, 0.0
  %v88 = vmax.f32 %v72, 0.0
  %v89 = vmax.f32 %v73, 0.0
  %v90 = vmax.f32 %v74, 0.0
  %v91 = vmax.f32 %v75, 0.0
  %v92 = vpack.c.bf16 %v77, %v76
  %v93 = vpack.c.bf16 %v79, %v78
  %v94 = vpack.c.bf16 %v81, %v80
  %v95 = vpack.c.bf16 %v83, %v82
  %v96 = vpack.c.bf16 %v85, %v84
  %v97 = vpack.c.bf16 %v87, %v86
  %v98 = vpack.c.bf16 %v89, %v88
  %v99 = vpack.c.bf16 %v91, %v90
  %v108 = vunpack.c.l.b16 %v92
  %v109 = vunpack.c.h.b16 %v92
  %v110 = vunpack.c.l.b16 %v93
  %v111 = vunpack.c.h.b16 %v93
  %v112 = vunpack.c.l.b16 %v94
  %v113 = vunpack.c.h.b16 %v94
  %v114 = vunpack.c.l.b16 %v95
  %v115 = vunpack.c.h.b16 %v95
  %v116 = vunpack.c.l.b16 %v96
  %v117 = vunpack.c.h.b16 %v96
  %v118 = vunpack.c.l.b16 %v97
  %v119 = vunpack.c.h.b16 %v97
  %v120 = vunpack.c.l.b16 %v98
  %v121 = vunpack.c.h.b16 %v98
  %v122 = vunpack.c.l.b16 %v99
  %v123 = vunpack.c.h.b16 %v99
  %v124 = vpack.c.b16 %v108, %v108
  %v125 = vpack.c.b16 %v109, %v109
  %v126 = vpack.c.b16 %v110, %v110
  %v127 = vpack.c.b16 %v111, %v111
  %v128 = vpack.c.b16 %v112, %v112
  %v129 = vpack.c.b16 %v113, %v113
  %v130 = vpack.c.b16 %v114, %v114
  %v131 = vpack.c.b16 %v115, %v115
  %v132 = vpack.c.b16 %v116, %v116
  %v133 = vpack.c.b16 %v117, %v117
  %v134 = vpack.c.b16 %v118, %v118
  %v135 = vpack.c.b16 %v119, %v119
  %v136 = vpack.c.b16 %v120, %v120
  %v137 = vpack.c.b16 %v121, %v121
  %v138 = vpack.c.b16 %v122, %v122
  %v139 = vpack.c.b16 %v123, %v123
  %156 = vst [vmem:[%s3] sm:$0xf] %v124
  %157 = vst [vmem:[%s3 + $0x4] sm:$0xf] %v125
  %158 = vst [vmem:[%s3 + $0x8] sm:$0xf] %v126
  %159 = vst [vmem:[%s3 + $0xc] sm:$0xf] %v127
  %160 = vst [vmem:[%s3 + $0x10] sm:$0xf] %v128
  %161 = vst [vmem:[%s3 + $0x14] sm:$0xf] %v129
  %162 = vst [vmem:[%s3 + $0x18] sm:$0xf] %v130
  %163 = vst [vmem:[%s3 + $0x1c] sm:$0xf] %v131
  %164 = vst [vmem:[%s3 + $0x20] sm:$0xf] %v132
  %165 = vst [vmem:[%s3 + $0x24] sm:$0xf] %v133
  %166 = vst [vmem:[%s3 + $0x28] sm:$0xf] %v134
  %167 = vst [vmem:[%s3 + $0x2c] sm:$0xf] %v135
  %168 = vst [vmem:[%s3 + $0x30] sm:$0xf] %v136
  %169 = vst [vmem:[%s3 + $0x34] sm:$0xf] %v137
  %170 = vst [vmem:[%s3 + $0x38] sm:$0xf] %v138
  %171 = vst [vmem:[%s3 + $0x3c] sm:$0xf] %v139
  // Predicated region
  $region14: #{basic_block.5} parent=0 // pred_check
    _
  $region15: #{basic_block.5} parent=0 // pred_check_branch
    %173 = sbr.rel (0) target = $region17
  $region16: #{basic_block.5} parent=0 // pred_region
    _
  $region17: #{basic_block.5} parent=0 // pred_fallthru
    _
  // Predicated region
  $region18: #{basic_block.5} parent=0 // pred_check
    _
  $region19: #{basic_block.5} parent=0 // pred_check_branch
    %175 = sbr.rel (0) target = $region21
  $region20: #{basic_block.5} parent=0 // pred_region
    _
  $region21: #{basic_block.5} parent=0 // pred_fallthru
    _

// kernel: basic_block.7
$region0: #{basic_block.7}
  #allocation0 [shape = 'u32[]', space=smem, size = 0x4, offset = 0x4, fixed_abs, tag = 'smem constant byte address 0x4 - core index']
  #allocation1 [shape = 'u32[144,128]{1,0:T(1,128)}', space=vmem, size = 0x12000, scoped, tag = 'internal scratch']
  %s0 = inlined_call_operand.vmem [shape: f32[128,128], index: 0, kind: input, shape index: {}]
  %s1 = inlined_call_operand.vmem [shape: f32[128,128], index: 1, kind: input, shape index: {}]
  %s2 = inlined_call_operand.vmem [shape: f32[1,128], index: 2, kind: input, shape index: {}]
  %s3 = inlined_call_operand.vmem [shape: f32[1,128], index: 3, kind: input, shape index: {}]
  %s4 = inlined_call_operand.vmem [shape: f32[1,128], index: 4, kind: input, shape index: {}]
  %s5 = inlined_call_operand.vmem [shape: f32[1,128], index: 5, kind: input, shape index: {}]
  %s6 = inlined_call_operand.vmem [shape: f32[128,128], index: 6, kind: output, shape index: {}]
  %s7 = sld [smem:[#allocation0]]
  $region34: #{basic_block.7} parent=0
    _
  %s9 = ssub.s32 1, %s7
  %s10 = scalar_select 0, %s9, %s7
  // Predicated region
  $region2: #{basic_block.7} parent=0 // pred_check
    _
  $region3: #{basic_block.7} parent=0 // pred_check_branch
    %12 = sbr.rel (0) target = $region5
  $region4: #{basic_block.7} parent=0 // pred_region
    _
  $region5: #{basic_block.7} parent=0 // pred_fallthru
    _
  // Predicated region
  $region6: #{basic_block.7} parent=0 // pred_check
    _
  $region7: #{basic_block.7} parent=0 // pred_check_branch
    %14 = sbr.rel (0) target = $region9
  $region8: #{basic_block.7} parent=0 // pred_region
    _
  $region9: #{basic_block.7} parent=0 // pred_fallthru
    _
  // Predicated region
  $region10: #{basic_block.7} parent=0 // pred_check
    _
  $region11: #{basic_block.7} parent=0 // pred_check_branch
    %16 = sbr.rel (0) target = $region13
  $region12: #{basic_block.7} parent=0 // pred_region
    _
  $region13: #{basic_block.7} parent=0 // pred_fallthru
    _
  // Predicated region
  $region14: #{basic_block.7} parent=0 // pred_check
    _
  $region15: #{basic_block.7} parent=0 // pred_check_branch
    %18 = sbr.rel (0) target = $region17
  $region16: #{basic_block.7} parent=0 // pred_region
    _
  $region17: #{basic_block.7} parent=0 // pred_fallthru
    _
  // Predicated region
  $region18: #{basic_block.7} parent=0 // pred_check
    _
  $region19: #{basic_block.7} parent=0 // pred_check_branch
    %20 = sbr.rel (0) target = $region21
  $region20: #{basic_block.7} parent=0 // pred_region
    _
  $region21: #{basic_block.7} parent=0 // pred_fallthru
    _
  // Predicated region
  $region22: #{basic_block.7} parent=0 // pred_check
    _
  $region23: #{basic_block.7} parent=0 // pred_check_branch
    %22 = sbr.rel (0) target = $region25
  $region24: #{basic_block.7} parent=0 // pred_region
    _
  $region25: #{basic_block.7} parent=0 // pred_fallthru
    _
  %v23 = vld [vmem:[%s0] sm:$0xff]
  %v24 = vld [vmem:[%s0 + $0x8] sm:$0xff]
  %v25 = vld [vmem:[%s0 + $0x10] sm:$0xff]
  %v26 = vld [vmem:[%s0 + $0x18] sm:$0xff]
  %v27 = vld [vmem:[%s0 + $0x20] sm:$0xff]
  %v28 = vld [vmem:[%s0 + $0x28] sm:$0xff]
  %v29 = vld [vmem:[%s0 + $0x30] sm:$0xff]
  %v30 = vld [vmem:[%s0 + $0x38] sm:$0xff]
  %v31 = vld [vmem:[%s0 + $0x40] sm:$0xff]
  %v32 = vld [vmem:[%s0 + $0x48] sm:$0xff]
  %v33 = vld [vmem:[%s0 + $0x50] sm:$0xff]
  %v34 = vld [vmem:[%s0 + $0x58] sm:$0xff]
  %v35 = vld [vmem:[%s0 + $0x60] sm:$0xff]
  %v36 = vld [vmem:[%s0 + $0x68] sm:$0xff]
  %v37 = vld [vmem:[%s0 + $0x70] sm:$0xff]
  %v38 = vld [vmem:[%s0 + $0x78] sm:$0xff]
  %v39 = vld [vmem:[%s2] sm:$0x1]
  %v41 = vlaneseq
  %v42 = vshrl.u32 %v41, 7
  %v43 = vsub.s32 0, %v42
  %v44 = vrot.slane %v39, %v43
  %v46 = vmul.f32 %v23, %v44
  %v47 = vmul.f32 %v24, %v44
  %v48 = vmul.f32 %v25, %v44
  %v49 = vmul.f32 %v26, %v44
  %v50 = vmul.f32 %v27, %v44
  %v51 = vmul.f32 %v28, %v44
  %v52 = vmul.f32 %v29, %v44
  %v53 = vmul.f32 %v30, %v44
  %v54 = vmul.f32 %v31, %v44
  %v55 = vmul.f32 %v32, %v44
  %v56 = vmul.f32 %v33, %v44
  %v57 = vmul.f32 %v34, %v44
  %v58 = vmul.f32 %v35, %v44
  %v59 = vmul.f32 %v36, %v44
  %v60 = vmul.f32 %v37, %v44
  %v61 = vmul.f32 %v38, %v44
  %v62 = vld [vmem:[%s3] sm:$0x1]
  %v64 = vlaneseq
  %v65 = vshrl.u32 %v64, 7
  %v66 = vsub.s32 0, %v65
  %v67 = vrot.slane %v62, %v66
  %v69 = vadd.f32 %v46, %v67
  %v70 = vadd.f32 %v47, %v67
  %v71 = vadd.f32 %v48, %v67
  %v72 = vadd.f32 %v49, %v67
  %v73 = vadd.f32 %v50, %v67
  %v74 = vadd.f32 %v51, %v67
  %v75 = vadd.f32 %v52, %v67
  %v76 = vadd.f32 %v53, %v67
  %v77 = vadd.f32 %v54, %v67
  %v78 = vadd.f32 %v55, %v67
  %v79 = vadd.f32 %v56, %v67
  %v80 = vadd.f32 %v57, %v67
  %v81 = vadd.f32 %v58, %v67
  %v82 = vadd.f32 %v59, %v67
  %v83 = vadd.f32 %v60, %v67
  %v84 = vadd.f32 %v61, %v67
  %v85 = vld [vmem:[%s1] sm:$0xff]
  %v86 = vld [vmem:[%s1 + $0x8] sm:$0xff]
  %v87 = vld [vmem:[%s1 + $0x10] sm:$0xff]
  %v88 = vld [vmem:[%s1 + $0x18] sm:$0xff]
  %v89 = vld [vmem:[%s1 + $0x20] sm:$0xff]
  %v90 = vld [vmem:[%s1 + $0x28] sm:$0xff]
  %v91 = vld [vmem:[%s1 + $0x30] sm:$0xff]
  %v92 = vld [vmem:[%s1 + $0x38] sm:$0xff]
  %v93 = vld [vmem:[%s1 + $0x40] sm:$0xff]
  %v94 = vld [vmem:[%s1 + $0x48] sm:$0xff]
  %v95 = vld [vmem:[%s1 + $0x50] sm:$0xff]
  %v96 = vld [vmem:[%s1 + $0x58] sm:$0xff]
  %v97 = vld [vmem:[%s1 + $0x60] sm:$0xff]
  %v98 = vld [vmem:[%s1 + $0x68] sm:$0xff]
  %v99 = vld [vmem:[%s1 + $0x70] sm:$0xff]
  %v100 = vld [vmem:[%s1 + $0x78] sm:$0xff]
  %v101 = vld [vmem:[%s4] sm:$0x1]
  %v103 = vlaneseq
  %v104 = vshrl.u32 %v103, 7
  %v105 = vsub.s32 0, %v104
  %v106 = vrot.slane %v101, %v105
  %v108 = vmul.f32 %v85, %v106
  %v109 = vmul.f32 %v86, %v106
  %v110 = vmul.f32 %v87, %v106
  %v111 = vmul.f32 %v88, %v106
  %v112 = vmul.f32 %v89, %v106
  %v113 = vmul.f32 %v90, %v106
  %v114 = vmul.f32 %v91, %v106
  %v115 = vmul.f32 %v92, %v106
  %v116 = vmul.f32 %v93, %v106
  %v117 = vmul.f32 %v94, %v106
  %v118 = vmul.f32 %v95, %v106
  %v119 = vmul.f32 %v96, %v106
  %v120 = vmul.f32 %v97, %v106
  %v121 = vmul.f32 %v98, %v106
  %v122 = vmul.f32 %v99, %v106
  %v123 = vmul.f32 %v100, %v106
  %v124 = vld [vmem:[%s5] sm:$0x1]
  %v126 = vlaneseq
  %v127 = vshrl.u32 %v126, 7
  %v128 = vsub.s32 0, %v127
  %v129 = vrot.slane %v124, %v128
  %v131 = vadd.f32 %v108, %v129
  %v132 = vadd.f32 %v109, %v129
  %v133 = vadd.f32 %v110, %v129
  %v134 = vadd.f32 %v111, %v129
  %v135 = vadd.f32 %v112, %v129
  %v136 = vadd.f32 %v113, %v129
  %v137 = vadd.f32 %v114, %v129
  %v138 = vadd.f32 %v115, %v129
  %v139 = vadd.f32 %v116, %v129
  %v140 = vadd.f32 %v117, %v129
  %v141 = vadd.f32 %v118, %v129
  %v142 = vadd.f32 %v119, %v129
  %v143 = vadd.f32 %v120, %v129
  %v144 = vadd.f32 %v121, %v129
  %v145 = vadd.f32 %v122, %v129
  %v146 = vadd.f32 %v123, %v129
  %v147 = vadd.f32 %v69, %v131
  %v148 = vadd.f32 %v70, %v132
  %v149 = vadd.f32 %v71, %v133
  %v150 = vadd.f32 %v72, %v134
  %v151 = vadd.f32 %v73, %v135
  %v152 = vadd.f32 %v74, %v136
  %v153 = vadd.f32 %v75, %v137
  %v154 = vadd.f32 %v76, %v138
  %v155 = vadd.f32 %v77, %v139
  %v156 = vadd.f32 %v78, %v140
  %v157 = vadd.f32 %v79, %v141
  %v158 = vadd.f32 %v80, %v142
  %v159 = vadd.f32 %v81, %v143
  %v160 = vadd.f32 %v82, %v144
  %v161 = vadd.f32 %v83, %v145
  %v162 = vadd.f32 %v84, %v146
  %v163 = vmax.f32 %v147, 0.0
  %v164 = vmax.f32 %v148, 0.0
  %v165 = vmax.f32 %v149, 0.0
  %v166 = vmax.f32 %v150, 0.0
  %v167 = vmax.f32 %v151, 0.0
  %v168 = vmax.f32 %v152, 0.0
  %v169 = vmax.f32 %v153, 0.0
  %v170 = vmax.f32 %v154, 0.0
  %v171 = vmax.f32 %v155, 0.0
  %v172 = vmax.f32 %v156, 0.0
  %v173 = vmax.f32 %v157, 0.0
  %v174 = vmax.f32 %v158, 0.0
  %v175 = vmax.f32 %v159, 0.0
  %v176 = vmax.f32 %v160, 0.0
  %v177 = vmax.f32 %v161, 0.0
  %v178 = vmax.f32 %v162, 0.0
  %179 = vst [vmem:[%s6] sm:$0xff] %v163
  %180 = vst [vmem:[%s6 + $0x8] sm:$0xff] %v164
  %181 = vst [vmem:[%s6 + $0x10] sm:$0xff] %v165
  %182 = vst [vmem:[%s6 + $0x18] sm:$0xff] %v166
  %183 = vst [vmem:[%s6 + $0x20] sm:$0xff] %v167
  %184 = vst [vmem:[%s6 + $0x28] sm:$0xff] %v168
  %185 = vst [vmem:[%s6 + $0x30] sm:$0xff] %v169
  %186 = vst [vmem:[%s6 + $0x38] sm:$0xff] %v170
  %187 = vst [vmem:[%s6 + $0x40] sm:$0xff] %v171
  %188 = vst [vmem:[%s6 + $0x48] sm:$0xff] %v172
  %189 = vst [vmem:[%s6 + $0x50] sm:$0xff] %v173
  %190 = vst [vmem:[%s6 + $0x58] sm:$0xff] %v174
  %191 = vst [vmem:[%s6 + $0x60] sm:$0xff] %v175
  %192 = vst [vmem:[%s6 + $0x68] sm:$0xff] %v176
  %193 = vst [vmem:[%s6 + $0x70] sm:$0xff] %v177
  %194 = vst [vmem:[%s6 + $0x78] sm:$0xff] %v178
  // Predicated region
  $region26: #{basic_block.7} parent=0 // pred_check
    _
  $region27: #{basic_block.7} parent=0 // pred_check_branch
    %196 = sbr.rel (0) target = $region29
  $region28: #{basic_block.7} parent=0 // pred_region
    _
  $region29: #{basic_block.7} parent=0 // pred_fallthru
    _
  // Predicated region
  $region30: #{basic_block.7} parent=0 // pred_check
    _
  $region31: #{basic_block.7} parent=0 // pred_check_branch
    %198 = sbr.rel (0) target = $region33
  $region32: #{basic_block.7} parent=0 // pred_region
    _
  $region33: #{basic_block.7} parent=0 // pred_fallthru
    _

// kernel: basic_block.4
$region0: #{basic_block.4}
  #allocation0 [shape = 'u32[]', space=smem, size = 0x4, offset = 0x4, fixed_abs, tag = 'smem constant byte address 0x4 - core index']
  #allocation1 [shape = 'u32[144,128]{1,0:T(1,128)}', space=vmem, size = 0x12000, scoped, tag = 'internal scratch']
  %s0 = inlined_call_operand.vmem [shape: bf16[128,1152], index: 0, kind: input, shape index: {}]
  %s1 = inlined_call_operand.vmem [shape: bf16[1152,128], index: 1, kind: input, shape index: {}]
  %s2 = inlined_call_operand.vmem [shape: bf16[128,128], index: 2, kind: input, shape index: {}]
  %s3 = inlined_call_operand.vmem [shape: bf16[128,128], index: 3, kind: input, shape index: {}]
  %s4 = inlined_call_operand.vmem [shape: f32[128,128], index: 4, kind: output, shape index: {0}]
  %s5 = inlined_call_operand.vmem [shape: f32[128,128], index: 5, kind: output, shape index: {1}]
  %s6 = inlined_call_operand.vmem [shape: f32[1,8,128], index: 6, kind: output, shape index: {2}]
  %s7 = inlined_call_operand.vmem [shape: f32[1,8,128], index: 7, kind: output, shape index: {3}]
  %s8 = inlined_call_operand.vmem [shape: f32[1,8,128], index: 8, kind: output, shape index: {4}]
  %s9 = inlined_call_operand.vmem [shape: f32[1,8,128], index: 9, kind: output, shape index: {5}]
  %10 = xla_tuple %s4, %s5, %s6, %s7, %s8, %s9
  %s11 = sld [smem:[#allocation0]]
  $region66: #{basic_block.4} parent=0
    _
  %s13 = ssub.s32 1, %s11
  %s14 = scalar_select 0, %s13, %s11
  // Predicated region
  $region2: #{basic_block.4} parent=0 // pred_check
    _
  $region3: #{basic_block.4} parent=0 // pred_check_branch
    %16 = sbr.rel (0) target = $region5
  $region4: #{basic_block.4} parent=0 // pred_region
    _
  $region5: #{basic_block.4} parent=0 // pred_fallthru
    _
  // Predicated region
  $region6: #{basic_block.4} parent=0 // pred_check
    _
  $region7: #{basic_block.4} parent=0 // pred_check_branch
    %18 = sbr.rel (0) target = $region9
  $region8: #{basic_block.4} parent=0 // pred_region
    _
  $region9: #{basic_block.4} parent=0 // pred_fallthru
    _
  // Predicated region
  $region10: #{basic_block.4} parent=0 // pred_check
    _
  $region11: #{basic_block.4} parent=0 // pred_check_branch
    %20 = sbr.rel (0) target = $region13
  $region12: #{basic_block.4} parent=0 // pred_region
    _
  $region13: #{basic_block.4} parent=0 // pred_fallthru
    _
  // Predicated region
  $region14: #{basic_block.4} parent=0 // pred_check
    _
  $region15: #{basic_block.4} parent=0 // pred_check_branch
    %22 = sbr.rel (0) target = $region17
  $region16: #{basic_block.4} parent=0 // pred_region
    _
  $region17: #{basic_block.4} parent=0 // pred_fallthru
    _
  %v24 = vld [vmem:[%s0] sm:$0xff]
  %v25 = vld [vmem:[%s0 + $0x8] sm:$0xff]
  %v26 = vld [vmem:[%s0 + $0x10] sm:$0xff]
  %v27 = vld [vmem:[%s0 + $0x18] sm:$0xff]
  %v28 = vld [vmem:[%s0 + $0x20] sm:$0xf]
  %v29 = vld [vmem:[%s0 + $0x24] sm:$0xff]
  %v30 = vld [vmem:[%s0 + $0x2c] sm:$0xff]
  %v31 = vld [vmem:[%s0 + $0x34] sm:$0xff]
  %v32 = vld [vmem:[%s0 + $0x3c] sm:$0xff]
  %v33 = vld [vmem:[%s0 + $0x44] sm:$0xf]
  %v34 = vld [vmem:[%s0 + $0x48] sm:$0xff]
  %v35 = vld [vmem:[%s0 + $0x50] sm:$0xff]
  %v36 = vld [vmem:[%s0 + $0x58] sm:$0xff]
  %v37 = vld [vmem:[%s0 + $0x60] sm:$0xff]
  %v38 = vld [vmem:[%s0 + $0x68] sm:$0xf]
  %v39 = vld [vmem:[%s0 + $0x6c] sm:$0xff]
  %v40 = vld [vmem:[%s0 + $0x74] sm:$0xff]
  %v41 = vld [vmem:[%s0 + $0x7c] sm:$0xff]
  %v42 = vld [vmem:[%s0 + $0x84] sm:$0xff]
  %v43 = vld [vmem:[%s0 + $0x8c] sm:$0xf]
  %v44 = vld [vmem:[%s0 + $0x90] sm:$0xff]
  %v45 = vld [vmem:[%s0 + $0x98] sm:$0xff]
  %v46 = vld [vmem:[%s0 + $0xa0] sm:$0xff]
  %v47 = vld [vmem:[%s0 + $0xa8] sm:$0xff]
  %v48 = vld [vmem:[%s0 + $0xb0] sm:$0xf]
  %v49 = vld [vmem:[%s0 + $0xb4] sm:$0xff]
  %v50 = vld [vmem:[%s0 + $0xbc] sm:$0xff]
  %v51 = vld [vmem:[%s0 + $0xc4] sm:$0xff]
  %v52 = vld [vmem:[%s0 + $0xcc] sm:$0xff]
  %v53 = vld [vmem:[%s0 + $0xd4] sm:$0xf]
  %v54 = vld [vmem:[%s0 + $0xd8] sm:$0xff]
  %v55 = vld [vmem:[%s0 + $0xe0] sm:$0xff]
  %v56 = vld [vmem:[%s0 + $0xe8] sm:$0xff]
  %v57 = vld [vmem:[%s0 + $0xf0] sm:$0xff]
  %v58 = vld [vmem:[%s0 + $0xf8] sm:$0xf]
  %v59 = vld [vmem:[%s0 + $0xfc] sm:$0xff]
  %v60 = vld [vmem:[%s0 + $0x104] sm:$0xff]
  %v61 = vld [vmem:[%s0 + $0x10c] sm:$0xff]
  %v62 = vld [vmem:[%s0 + $0x114] sm:$0xff]
  %v63 = vld [vmem:[%s0 + $0x11c] sm:$0xf]
  %v64 = vld [vmem:[%s0 + $0x120] sm:$0xff]
  %v65 = vld [vmem:[%s0 + $0x128] sm:$0xff]
  %v66 = vld [vmem:[%s0 + $0x130] sm:$0xff]
  %v67 = vld [vmem:[%s0 + $0x138] sm:$0xff]
  %v68 = vld [vmem:[%s0 + $0x140] sm:$0xf]
  %v69 = vld [vmem:[%s0 + $0x144] sm:$0xff]
  %v70 = vld [vmem:[%s0 + $0x14c] sm:$0xff]
  %v71 = vld [vmem:[%s0 + $0x154] sm:$0xff]
  %v72 = vld [vmem:[%s0 + $0x15c] sm:$0xff]
  %v73 = vld [vmem:[%s0 + $0x164] sm:$0xf]
  %v74 = vld [vmem:[%s0 + $0x168] sm:$0xff]
  %v75 = vld [vmem:[%s0 + $0x170] sm:$0xff]
  %v76 = vld [vmem:[%s0 + $0x178] sm:$0xff]
  %v77 = vld [vmem:[%s0 + $0x180] sm:$0xff]
  %v78 = vld [vmem:[%s0 + $0x188] sm:$0xf]
  %v79 = vld [vmem:[%s0 + $0x18c] sm:$0xff]
  %v80 = vld [vmem:[%s0 + $0x194] sm:$0xff]
  %v81 = vld [vmem:[%s0 + $0x19c] sm:$0xff]
  %v82 = vld [vmem:[%s0 + $0x1a4] sm:$0xff]
  %v83 = vld [vmem:[%s0 + $0x1ac] sm:$0xf]
  %v84 = vld [vmem:[%s0 + $0x1b0] sm:$0xff]
  %v85 = vld [vmem:[%s0 + $0x1b8] sm:$0xff]
  %v86 = vld [vmem:[%s0 + $0x1c0] sm:$0xff]
  %v87 = vld [vmem:[%s0 + $0x1c8] sm:$0xff]
  %v88 = vld [vmem:[%s0 + $0x1d0] sm:$0xf]
  %v89 = vld [vmem:[%s0 + $0x1d4] sm:$0xff]
  %v90 = vld [vmem:[%s0 + $0x1dc] sm:$0xff]
  %v91 = vld [vmem:[%s0 + $0x1e4] sm:$0xff]
  %v92 = vld [vmem:[%s0 + $0x1ec] sm:$0xff]
  %v93 = vld [vmem:[%s0 + $0x1f4] sm:$0xf]
  %v94 = vld [vmem:[%s0 + $0x1f8] sm:$0xff]
  %v95 = vld [vmem:[%s0 + $0x200] sm:$0xff]
  %v96 = vld [vmem:[%s0 + $0x208] sm:$0xff]
  %v97 = vld [vmem:[%s0 + $0x210] sm:$0xff]
  %v98 = vld [vmem:[%s0 + $0x218] sm:$0xf]
  %v99 = vld [vmem:[%s0 + $0x21c] sm:$0xff]
  %v100 = vld [vmem:[%s0 + $0x224] sm:$0xff]
  %v101 = vld [vmem:[%s0 + $0x22c] sm:$0xff]
  %v102 = vld [vmem:[%s0 + $0x234] sm:$0xff]
  %v103 = vld [vmem:[%s0 + $0x23c] sm:$0xf]
  %v104 = vld [vmem:[%s1] sm:$0xf]
  %v105 = vld [vmem:[%s1 + $0x4] sm:$0xf]
  %v106 = vld [vmem:[%s1 + $0x8] sm:$0xf]
  %v107 = vld [vmem:[%s1 + $0xc] sm:$0xf]
  %v108 = vld [vmem:[%s1 + $0x10] sm:$0xf]
  %v109 = vld [vmem:[%s1 + $0x14] sm:$0xf]
  %v110 = vld [vmem:[%s1 + $0x18] sm:$0xf]
  %v111 = vld [vmem:[%s1 + $0x1c] sm:$0xf]
  %v112 = vld [vmem:[%s1 + $0x20] sm:$0xf]
  %v113 = vld [vmem:[%s1 + $0x24] sm:$0xf]
  %v114 = vld [vmem:[%s1 + $0x28] sm:$0xf]
  %v115 = vld [vmem:[%s1 + $0x2c] sm:$0xf]
  %v116 = vld [vmem:[%s1 + $0x30] sm:$0xf]
  %v117 = vld [vmem:[%s1 + $0x34] sm:$0xf]
  %v118 = vld [vmem:[%s1 + $0x38] sm:$0xf]
  %v119 = vld [vmem:[%s1 + $0x3c] sm:$0xf]
  %v120 = vld [vmem:[%s1 + $0x40] sm:$0xf]
  %v121 = vld [vmem:[%s1 + $0x44] sm:$0xf]
  %v122 = vld [vmem:[%s1 + $0x48] sm:$0xf]
  %v123 = vld [vmem:[%s1 + $0x4c] sm:$0xf]
  %v124 = vld [vmem:[%s1 + $0x50] sm:$0xf]
  %v125 = vld [vmem:[%s1 + $0x54] sm:$0xf]
  %v126 = vld [vmem:[%s1 + $0x58] sm:$0xf]
  %v127 = vld [vmem:[%s1 + $0x5c] sm:$0xf]
  %v128 = vld [vmem:[%s1 + $0x60] sm:$0xf]
  %v129 = vld [vmem:[%s1 + $0x64] sm:$0xf]
  %v130 = vld [vmem:[%s1 + $0x68] sm:$0xf]
  %v131 = vld [vmem:[%s1 + $0x6c] sm:$0xf]
  %v132 = vld [vmem:[%s1 + $0x70] sm:$0xf]
  %v133 = vld [vmem:[%s1 + $0x74] sm:$0xf]
  %v134 = vld [vmem:[%s1 + $0x78] sm:$0xf]
  %v135 = vld [vmem:[%s1 + $0x7c] sm:$0xf]
  %v136 = vld [vmem:[%s1 + $0x80] sm:$0xf]
  %v137 = vld [vmem:[%s1 + $0x84] sm:$0xf]
  %v138 = vld [vmem:[%s1 + $0x88] sm:$0xf]
  %v139 = vld [vmem:[%s1 + $0x8c] sm:$0xf]
  %v140 = vld [vmem:[%s1 + $0x90] sm:$0xf]
  %v141 = vld [vmem:[%s1 + $0x94] sm:$0xf]
  %v142 = vld [vmem:[%s1 + $0x98] sm:$0xf]
  %v143 = vld [vmem:[%s1 + $0x9c] sm:$0xf]
  %v144 = vld [vmem:[%s1 + $0xa0] sm:$0xf]
  %v145 = vld [vmem:[%s1 + $0xa4] sm:$0xf]
  %v146 = vld [vmem:[%s1 + $0xa8] sm:$0xf]
  %v147 = vld [vmem:[%s1 + $0xac] sm:$0xf]
  %v148 = vld [vmem:[%s1 + $0xb0] sm:$0xf]
  %v149 = vld [vmem:[%s1 + $0xb4] sm:$0xf]
  %v150 = vld [vmem:[%s1 + $0xb8] sm:$0xf]
  %v151 = vld [vmem:[%s1 + $0xbc] sm:$0xf]
  %v152 = vld [vmem:[%s1 + $0xc0] sm:$0xf]
  %v153 = vld [vmem:[%s1 + $0xc4] sm:$0xf]
  %v154 = vld [vmem:[%s1 + $0xc8] sm:$0xf]
  %v155 = vld [vmem:[%s1 + $0xcc] sm:$0xf]
  %v156 = vld [vmem:[%s1 + $0xd0] sm:$0xf]
  %v157 = vld [vmem:[%s1 + $0xd4] sm:$0xf]
  %v158 = vld [vmem:[%s1 + $0xd8] sm:$0xf]
  %v159 = vld [vmem:[%s1 + $0xdc] sm:$0xf]
  %v160 = vld [vmem:[%s1 + $0xe0] sm:$0xf]
  %v161 = vld [vmem:[%s1 + $0xe4] sm:$0xf]
  %v162 = vld [vmem:[%s1 + $0xe8] sm:$0xf]
  %v163 = vld [vmem:[%s1 + $0xec] sm:$0xf]
  %v164 = vld [vmem:[%s1 + $0xf0] sm:$0xf]
  %v165 = vld [vmem:[%s1 + $0xf4] sm:$0xf]
  %v166 = vld [vmem:[%s1 + $0xf8] sm:$0xf]
  %v167 = vld [vmem:[%s1 + $0xfc] sm:$0xf]
  %v168 = vld [vmem:[%s1 + $0x100] sm:$0xf]
  %v169 = vld [vmem:[%s1 + $0x104] sm:$0xf]
  %v170 = vld [vmem:[%s1 + $0x108] sm:$0xf]
  %v171 = vld [vmem:[%s1 + $0x10c] sm:$0xf]
  %v172 = vld [vmem:[%s1 + $0x110] sm:$0xf]
  %v173 = vld [vmem:[%s1 + $0x114] sm:$0xf]
  %v174 = vld [vmem:[%s1 + $0x118] sm:$0xf]
  %v175 = vld [vmem:[%s1 + $0x11c] sm:$0xf]
  %v176 = vld [vmem:[%s1 + $0x120] sm:$0xf]
  %v177 = vld [vmem:[%s1 + $0x124] sm:$0xf]
  %v178 = vld [vmem:[%s1 + $0x128] sm:$0xf]
  %v179 = vld [vmem:[%s1 + $0x12c] sm:$0xf]
  %v180 = vld [vmem:[%s1 + $0x130] sm:$0xf]
  %v181 = vld [vmem:[%s1 + $0x134] sm:$0xf]
  %v182 = vld [vmem:[%s1 + $0x138] sm:$0xf]
  %v183 = vld [vmem:[%s1 + $0x13c] sm:$0xf]
  %v184 = vld [vmem:[%s1 + $0x140] sm:$0xf]
  %v185 = vld [vmem:[%s1 + $0x144] sm:$0xf]
  %v186 = vld [vmem:[%s1 + $0x148] sm:$0xf]
  %v187 = vld [vmem:[%s1 + $0x14c] sm:$0xf]
  %v188 = vld [vmem:[%s1 + $0x150] sm:$0xf]
  %v189 = vld [vmem:[%s1 + $0x154] sm:$0xf]
  %v190 = vld [vmem:[%s1 + $0x158] sm:$0xf]
  %v191 = vld [vmem:[%s1 + $0x15c] sm:$0xf]
  %v192 = vld [vmem:[%s1 + $0x160] sm:$0xf]
  %v193 = vld [vmem:[%s1 + $0x164] sm:$0xf]
  %v194 = vld [vmem:[%s1 + $0x168] sm:$0xf]
  %v195 = vld [vmem:[%s1 + $0x16c] sm:$0xf]
  %v196 = vld [vmem:[%s1 + $0x170] sm:$0xf]
  %v197 = vld [vmem:[%s1 + $0x174] sm:$0xf]
  %v198 = vld [vmem:[%s1 + $0x178] sm:$0xf]
  %v199 = vld [vmem:[%s1 + $0x17c] sm:$0xf]
  %v200 = vld [vmem:[%s1 + $0x180] sm:$0xf]
  %v201 = vld [vmem:[%s1 + $0x184] sm:$0xf]
  %v202 = vld [vmem:[%s1 + $0x188] sm:$0xf]
  %v203 = vld [vmem:[%s1 + $0x18c] sm:$0xf]
  %v204 = vld [vmem:[%s1 + $0x190] sm:$0xf]
  %v205 = vld [vmem:[%s1 + $0x194] sm:$0xf]
  %v206 = vld [vmem:[%s1 + $0x198] sm:$0xf]
  %v207 = vld [vmem:[%s1 + $0x19c] sm:$0xf]
  %v208 = vld [vmem:[%s1 + $0x1a0] sm:$0xf]
  %v209 = vld [vmem:[%s1 + $0x1a4] sm:$0xf]
  %v210 = vld [vmem:[%s1 + $0x1a8] sm:$0xf]
  %v211 = vld [vmem:[%s1 + $0x1ac] sm:$0xf]
  %v212 = vld [vmem:[%s1 + $0x1b0] sm:$0xf]
  %v213 = vld [vmem:[%s1 + $0x1b4] sm:$0xf]
  %v214 = vld [vmem:[%s1 + $0x1b8] sm:$0xf]
  %v215 = vld [vmem:[%s1 + $0x1bc] sm:$0xf]
  %v216 = vld [vmem:[%s1 + $0x1c0] sm:$0xf]
  %v217 = vld [vmem:[%s1 + $0x1c4] sm:$0xf]
  %v218 = vld [vmem:[%s1 + $0x1c8] sm:$0xf]
  %v219 = vld [vmem:[%s1 + $0x1cc] sm:$0xf]
  %v220 = vld [vmem:[%s1 + $0x1d0] sm:$0xf]
  %v221 = vld [vmem:[%s1 + $0x1d4] sm:$0xf]
  %v222 = vld [vmem:[%s1 + $0x1d8] sm:$0xf]
  %v223 = vld [vmem:[%s1 + $0x1dc] sm:$0xf]
  %v224 = vld [vmem:[%s1 + $0x1e0] sm:$0xf]
  %v225 = vld [vmem:[%s1 + $0x1e4] sm:$0xf]
  %v226 = vld [vmem:[%s1 + $0x1e8] sm:$0xf]
  %v227 = vld [vmem:[%s1 + $0x1ec] sm:$0xf]
  %v228 = vld [vmem:[%s1 + $0x1f0] sm:$0xf]
  %v229 = vld [vmem:[%s1 + $0x1f4] sm:$0xf]
  %v230 = vld [vmem:[%s1 + $0x1f8] sm:$0xf]
  %v231 = vld [vmem:[%s1 + $0x1fc] sm:$0xf]
  %v232 = vld [vmem:[%s1 + $0x200] sm:$0xf]
  %v233 = vld [vmem:[%s1 + $0x204] sm:$0xf]
  %v234 = vld [vmem:[%s1 + $0x208] sm:$0xf]
  %v235 = vld [vmem:[%s1 + $0x20c] sm:$0xf]
  %v236 = vld [vmem:[%s1 + $0x210] sm:$0xf]
  %v237 = vld [vmem:[%s1 + $0x214] sm:$0xf]
  %v238 = vld [vmem:[%s1 + $0x218] sm:$0xf]
  %v239 = vld [vmem:[%s1 + $0x21c] sm:$0xf]
  %v240 = vld [vmem:[%s1 + $0x220] sm:$0xf]
  %v241 = vld [vmem:[%s1 + $0x224] sm:$0xf]
  %v242 = vld [vmem:[%s1 + $0x228] sm:$0xf]
  %v243 = vld [vmem:[%s1 + $0x22c] sm:$0xf]
  %v244 = vld [vmem:[%s1 + $0x230] sm:$0xf]
  %v245 = vld [vmem:[%s1 + $0x234] sm:$0xf]
  %v246 = vld [vmem:[%s1 + $0x238] sm:$0xf]
  %v247 = vld [vmem:[%s1 + $0x23c] sm:$0xf]
  %v328 = vunpack.c.l.b16 %v24
  %v329 = vunpack.c.h.b16 %v24
  %v330 = vunpack.c.l.b16 %v25
  %v331 = vunpack.c.h.b16 %v25
  %v332 = vunpack.c.l.b16 %v26
  %v333 = vunpack.c.h.b16 %v26
  %v334 = vunpack.c.l.b16 %v27
  %v335 = vunpack.c.h.b16 %v27
  %v336 = vunpack.c.l.b16 %v28
  %v337 = vunpack.c.l.b16 %v29
  %v338 = vunpack.c.h.b16 %v29
  %v339 = vunpack.c.l.b16 %v30
  %v340 = vunpack.c.h.b16 %v30
  %v341 = vunpack.c.l.b16 %v31
  %v342 = vunpack.c.h.b16 %v31
  %v343 = vunpack.c.l.b16 %v32
  %v344 = vunpack.c.h.b16 %v32
  %v345 = vunpack.c.l.b16 %v33
  %v346 = vunpack.c.l.b16 %v34
  %v347 = vunpack.c.h.b16 %v34
  %v348 = vunpack.c.l.b16 %v35
  %v349 = vunpack.c.h.b16 %v35
  %v350 = vunpack.c.l.b16 %v36
  %v351 = vunpack.c.h.b16 %v36
  %v352 = vunpack.c.l.b16 %v37
  %v353 = vunpack.c.h.b16 %v37
  %v354 = vunpack.c.l.b16 %v38
  %v355 = vunpack.c.l.b16 %v39
  %v356 = vunpack.c.h.b16 %v39
  %v357 = vunpack.c.l.b16 %v40
  %v358 = vunpack.c.h.b16 %v40
  %v359 = vunpack.c.l.b16 %v41
  %v360 = vunpack.c.h.b16 %v41
  %v361 = vunpack.c.l.b16 %v42
  %v362 = vunpack.c.h.b16 %v42
  %v363 = vunpack.c.l.b16 %v43
  %v364 = vunpack.c.l.b16 %v44
  %v365 = vunpack.c.h.b16 %v44
  %v366 = vunpack.c.l.b16 %v45
  %v367 = vunpack.c.h.b16 %v45
  %v368 = vunpack.c.l.b16 %v46
  %v369 = vunpack.c.h.b16 %v46
  %v370 = vunpack.c.l.b16 %v47
  %v371 = vunpack.c.h.b16 %v47
  %v372 = vunpack.c.l.b16 %v48
  %v373 = vunpack.c.l.b16 %v49
  %v374 = vunpack.c.h.b16 %v49
  %v375 = vunpack.c.l.b16 %v50
  %v376 = vunpack.c.h.b16 %v50
  %v377 = vunpack.c.l.b16 %v51
  %v378 = vunpack.c.h.b16 %v51
  %v379 = vunpack.c.l.b16 %v52
  %v380 = vunpack.c.h.b16 %v52
  %v381 = vunpack.c.l.b16 %v53
  %v382 = vunpack.c.l.b16 %v54
  %v383 = vunpack.c.h.b16 %v54
  %v384 = vunpack.c.l.b16 %v55
  %v385 = vunpack.c.h.b16 %v55
  %v386 = vunpack.c.l.b16 %v56
  %v387 = vunpack.c.h.b16 %v56
  %v388 = vunpack.c.l.b16 %v57
  %v389 = vunpack.c.h.b16 %v57
  %v390 = vunpack.c.l.b16 %v58
  %v391 = vunpack.c.l.b16 %v59
  %v392 = vunpack.c.h.b16 %v59
  %v393 = vunpack.c.l.b16 %v60
  %v394 = vunpack.c.h.b16 %v60
  %v395 = vunpack.c.l.b16 %v61
  %v396 = vunpack.c.h.b16 %v61
  %v397 = vunpack.c.l.b16 %v62
  %v398 = vunpack.c.h.b16 %v62
  %v399 = vunpack.c.l.b16 %v63
  %v400 = vunpack.c.l.b16 %v64
  %v401 = vunpack.c.h.b16 %v64
  %v402 = vunpack.c.l.b16 %v65
  %v403 = vunpack.c.h.b16 %v65
  %v404 = vunpack.c.l.b16 %v66
  %v405 = vunpack.c.h.b16 %v66
  %v406 = vunpack.c.l.b16 %v67
  %v407 = vunpack.c.h.b16 %v67
  %v408 = vunpack.c.l.b16 %v68
  %v409 = vunpack.c.l.b16 %v69
  %v410 = vunpack.c.h.b16 %v69
  %v411 = vunpack.c.l.b16 %v70
  %v412 = vunpack.c.h.b16 %v70
  %v413 = vunpack.c.l.b16 %v71
  %v414 = vunpack.c.h.b16 %v71
  %v415 = vunpack.c.l.b16 %v72
  %v416 = vunpack.c.h.b16 %v72
  %v417 = vunpack.c.l.b16 %v73
  %v418 = vunpack.c.l.b16 %v74
  %v419 = vunpack.c.h.b16 %v74
  %v420 = vunpack.c.l.b16 %v75
  %v421 = vunpack.c.h.b16 %v75
  %v422 = vunpack.c.l.b16 %v76
  %v423 = vunpack.c.h.b16 %v76
  %v424 = vunpack.c.l.b16 %v77
  %v425 = vunpack.c.h.b16 %v77
  %v426 = vunpack.c.l.b16 %v78
  %v427 = vunpack.c.l.b16 %v79
  %v428 = vunpack.c.h.b16 %v79
  %v429 = vunpack.c.l.b16 %v80
  %v430 = vunpack.c.h.b16 %v80
  %v431 = vunpack.c.l.b16 %v81
  %v432 = vunpack.c.h.b16 %v81
  %v433 = vunpack.c.l.b16 %v82
  %v434 = vunpack.c.h.b16 %v82
  %v435 = vunpack.c.l.b16 %v83
  %v436 = vunpack.c.l.b16 %v84
  %v437 = vunpack.c.h.b16 %v84
  %v438 = vunpack.c.l.b16 %v85
  %v439 = vunpack.c.h.b16 %v85
  %v440 = vunpack.c.l.b16 %v86
  %v441 = vunpack.c.h.b16 %v86
  %v442 = vunpack.c.l.b16 %v87
  %v443 = vunpack.c.h.b16 %v87
  %v444 = vunpack.c.l.b16 %v88
  %v445 = vunpack.c.l.b16 %v89
  %v446 = vunpack.c.h.b16 %v89
  %v447 = vunpack.c.l.b16 %v90
  %v448 = vunpack.c.h.b16 %v90
  %v449 = vunpack.c.l.b16 %v91
  %v450 = vunpack.c.h.b16 %v91
  %v451 = vunpack.c.l.b16 %v92
  %v452 = vunpack.c.h.b16 %v92
  %v453 = vunpack.c.l.b16 %v93
  %v454 = vunpack.c.l.b16 %v94
  %v455 = vunpack.c.h.b16 %v94
  %v456 = vunpack.c.l.b16 %v95
  %v457 = vunpack.c.h.b16 %v95
  %v458 = vunpack.c.l.b16 %v96
  %v459 = vunpack.c.h.b16 %v96
  %v460 = vunpack.c.l.b16 %v97
  %v461 = vunpack.c.h.b16 %v97
  %v462 = vunpack.c.l.b16 %v98
  %v463 = vunpack.c.l.b16 %v99
  %v464 = vunpack.c.h.b16 %v99
  %v465 = vunpack.c.l.b16 %v100
  %v466 = vunpack.c.h.b16 %v100
  %v467 = vunpack.c.l.b16 %v101
  %v468 = vunpack.c.h.b16 %v101
  %v469 = vunpack.c.l.b16 %v102
  %v470 = vunpack.c.h.b16 %v102
  %v471 = vunpack.c.l.b16 %v103
  %v472 = vpack.c.b16 %v337, %v328
  %v473 = vpack.c.b16 %v338, %v329
  %v474 = vpack.c.b16 %v339, %v330
  %v475 = vpack.c.b16 %v340, %v331
  %v476 = vpack.c.b16 %v341, %v332
  %v477 = vpack.c.b16 %v342, %v333
  %v478 = vpack.c.b16 %v343, %v334
  %v479 = vpack.c.b16 %v344, %v335
  %v480 = vpack.c.b16 %v345, %v336
  %v481 = vpack.c.b16 %v355, %v346
  %v482 = vpack.c.b16 %v356, %v347
  %v483 = vpack.c.b16 %v357, %v348
  %v484 = vpack.c.b16 %v358, %v349
  %v485 = vpack.c.b16 %v359, %v350
  %v486 = vpack.c.b16 %v360, %v351
  %v487 = vpack.c.b16 %v361, %v352
  %v488 = vpack.c.b16 %v362, %v353
  %v489 = vpack.c.b16 %v363, %v354
  %v490 = vpack.c.b16 %v373, %v364
  %v491 = vpack.c.b16 %v374, %v365
  %v492 = vpack.c.b16 %v375, %v366
  %v493 = vpack.c.b16 %v376, %v367
  %v494 = vpack.c.b16 %v377, %v368
  %v495 = vpack.c.b16 %v378, %v369
  %v496 = vpack.c.b16 %v379, %v370
  %v497 = vpack.c.b16 %v380, %v371
  %v498 = vpack.c.b16 %v381, %v372
  %v499 = vpack.c.b16 %v391, %v382
  %v500 = vpack.c.b16 %v392, %v383
  %v501 = vpack.c.b16 %v393, %v384
  %v502 = vpack.c.b16 %v394, %v385
  %v503 = vpack.c.b16 %v395, %v386
  %v504 = vpack.c.b16 %v396, %v387
  %v505 = vpack.c.b16 %v397, %v388
  %v506 = vpack.c.b16 %v398, %v389
  %v507 = vpack.c.b16 %v399, %v390
  %v508 = vpack.c.b16 %v409, %v400
  %v509 = vpack.c.b16 %v410, %v401
  %v510 = vpack.c.b16 %v411, %v402
  %v511 = vpack.c.b16 %v412, %v403
  %v512 = vpack.c.b16 %v413, %v404
  %v513 = vpack.c.b16 %v414, %v405
  %v514 = vpack.c.b16 %v415, %v406
  %v515 = vpack.c.b16 %v416, %v407
  %v516 = vpack.c.b16 %v417, %v408
  %v517 = vpack.c.b16 %v427, %v418
  %v518 = vpack.c.b16 %v428, %v419
  %v519 = vpack.c.b16 %v429, %v420
  %v520 = vpack.c.b16 %v430, %v421
  %v521 = vpack.c.b16 %v431, %v422
  %v522 = vpack.c.b16 %v432, %v423
  %v523 = vpack.c.b16 %v433, %v424
  %v524 = vpack.c.b16 %v434, %v425
  %v525 = vpack.c.b16 %v435, %v426
  %v526 = vpack.c.b16 %v445, %v436
  %v527 = vpack.c.b16 %v446, %v437
  %v528 = vpack.c.b16 %v447, %v438
  %v529 = vpack.c.b16 %v448, %v439
  %v530 = vpack.c.b16 %v449, %v440
  %v531 = vpack.c.b16 %v450, %v441
  %v532 = vpack.c.b16 %v451, %v442
  %v533 = vpack.c.b16 %v452, %v443
  %v534 = vpack.c.b16 %v453, %v444
  %v535 = vpack.c.b16 %v463, %v454
  %v536 = vpack.c.b16 %v464, %v455
  %v537 = vpack.c.b16 %v465, %v456
  %v538 = vpack.c.b16 %v466, %v457
  %v539 = vpack.c.b16 %v467, %v458
  %v540 = vpack.c.b16 %v468, %v459
  %v541 = vpack.c.b16 %v469, %v460
  %v542 = vpack.c.b16 %v470, %v461
  %v543 = vpack.c.b16 %v471, %v462
  %v760 = vunpack.c.l.b16 %v104
  %v761 = vunpack.c.l.b16 %v105
  %v762 = vunpack.c.l.b16 %v106
  %v763 = vunpack.c.l.b16 %v107
  %v764 = vunpack.c.l.b16 %v108
  %v765 = vunpack.c.l.b16 %v109
  %v766 = vunpack.c.l.b16 %v110
  %v767 = vunpack.c.l.b16 %v111
  %v768 = vunpack.c.l.b16 %v112
  %v769 = vunpack.c.l.b16 %v113
  %v770 = vunpack.c.l.b16 %v114
  %v771 = vunpack.c.l.b16 %v115
  %v772 = vunpack.c.l.b16 %v116
  %v773 = vunpack.c.l.b16 %v117
  %v774 = vunpack.c.l.b16 %v118
  %v775 = vunpack.c.l.b16 %v119
  %v776 = vunpack.c.l.b16 %v120
  %v777 = vunpack.c.l.b16 %v121
  %v778 = vunpack.c.l.b16 %v122
  %v779 = vunpack.c.l.b16 %v123
  %v780 = vunpack.c.l.b16 %v124
  %v781 = vunpack.c.l.b16 %v125
  %v782 = vunpack.c.l.b16 %v126
  %v783 = vunpack.c.l.b16 %v127
  %v784 = vunpack.c.l.b16 %v128
  %v785 = vunpack.c.l.b16 %v129
  %v786 = vunpack.c.l.b16 %v130
  %v787 = vunpack.c.l.b16 %v131
  %v788 = vunpack.c.l.b16 %v132
  %v789 = vunpack.c.l.b16 %v133
  %v790 = vunpack.c.l.b16 %v134
  %v791 = vunpack.c.l.b16 %v135
  %v792 = vunpack.c.l.b16 %v136
  %v793 = vunpack.c.l.b16 %v137
  %v794 = vunpack.c.l.b16 %v138
  %v795 = vunpack.c.l.b16 %v139
  %v796 = vunpack.c.l.b16 %v140
  %v797 = vunpack.c.l.b16 %v141
  %v798 = vunpack.c.l.b16 %v142
  %v799 = vunpack.c.l.b16 %v143
  %v800 = vunpack.c.l.b16 %v144
  %v801 = vunpack.c.l.b16 %v145
  %v802 = vunpack.c.l.b16 %v146
  %v803 = vunpack.c.l.b16 %v147
  %v804 = vunpack.c.l.b16 %v148
  %v805 = vunpack.c.l.b16 %v149
  %v806 = vunpack.c.l.b16 %v150
  %v807 = vunpack.c.l.b16 %v151
  %v808 = vunpack.c.l.b16 %v152
  %v809 = vunpack.c.l.b16 %v153
  %v810 = vunpack.c.l.b16 %v154
  %v811 = vunpack.c.l.b16 %v155
  %v812 = vunpack.c.l.b16 %v156
  %v813 = vunpack.c.l.b16 %v157
  %v814 = vunpack.c.l.b16 %v158
  %v815 = vunpack.c.l.b16 %v159
  %v816 = vunpack.c.l.b16 %v160
  %v817 = vunpack.c.l.b16 %v161
  %v818 = vunpack.c.l.b16 %v162
  %v819 = vunpack.c.l.b16 %v163
  %v820 = vunpack.c.l.b16 %v164
  %v821 = vunpack.c.l.b16 %v165
  %v822 = vunpack.c.l.b16 %v166
  %v823 = vunpack.c.l.b16 %v167
  %v824 = vunpack.c.l.b16 %v168
  %v825 = vunpack.c.l.b16 %v169
  %v826 = vunpack.c.l.b16 %v170
  %v827 = vunpack.c.l.b16 %v171
  %v828 = vunpack.c.l.b16 %v172
  %v829 = vunpack.c.l.b16 %v173
  %v830 = vunpack.c.l.b16 %v174
  %v831 = vunpack.c.l.b16 %v175
  %v832 = vunpack.c.l.b16 %v176
  %v833 = vunpack.c.l.b16 %v177
  %v834 = vunpack.c.l.b16 %v178
  %v835 = vunpack.c.l.b16 %v179
  %v836 = vunpack.c.l.b16 %v180
  %v837 = vunpack.c.l.b16 %v181
  %v838 = vunpack.c.l.b16 %v182
  %v839 = vunpack.c.l.b16 %v183
  %v840 = vunpack.c.l.b16 %v184
  %v841 = vunpack.c.l.b16 %v185
  %v842 = vunpack.c.l.b16 %v186
  %v843 = vunpack.c.l.b16 %v187
  %v844 = vunpack.c.l.b16 %v188
  %v845 = vunpack.c.l.b16 %v189
  %v846 = vunpack.c.l.b16 %v190
  %v847 = vunpack.c.l.b16 %v191
  %v848 = vunpack.c.l.b16 %v192
  %v849 = vunpack.c.l.b16 %v193
  %v850 = vunpack.c.l.b16 %v194
  %v851 = vunpack.c.l.b16 %v195
  %v852 = vunpack.c.l.b16 %v196
  %v853 = vunpack.c.l.b16 %v197
  %v854 = vunpack.c.l.b16 %v198
  %v855 = vunpack.c.l.b16 %v199
  %v856 = vunpack.c.l.b16 %v200
  %v857 = vunpack.c.l.b16 %v201
  %v858 = vunpack.c.l.b16 %v202
  %v859 = vunpack.c.l.b16 %v203
  %v860 = vunpack.c.l.b16 %v204
  %v861 = vunpack.c.l.b16 %v205
  %v862 = vunpack.c.l.b16 %v206
  %v863 = vunpack.c.l.b16 %v207
  %v864 = vunpack.c.l.b16 %v208
  %v865 = vunpack.c.l.b16 %v209
  %v866 = vunpack.c.l.b16 %v210
  %v867 = vunpack.c.l.b16 %v211
  %v868 = vunpack.c.l.b16 %v212
  %v869 = vunpack.c.l.b16 %v213
  %v870 = vunpack.c.l.b16 %v214
  %v871 = vunpack.c.l.b16 %v215
  %v872 = vunpack.c.l.b16 %v216
  %v873 = vunpack.c.l.b16 %v217
  %v874 = vunpack.c.l.b16 %v218
  %v875 = vunpack.c.l.b16 %v219
  %v876 = vunpack.c.l.b16 %v220
  %v877 = vunpack.c.l.b16 %v221
  %v878 = vunpack.c.l.b16 %v222
  %v879 = vunpack.c.l.b16 %v223
  %v880 = vunpack.c.l.b16 %v224
  %v881 = vunpack.c.l.b16 %v225
  %v882 = vunpack.c.l.b16 %v226
  %v883 = vunpack.c.l.b16 %v227
  %v884 = vunpack.c.l.b16 %v228
  %v885 = vunpack.c.l.b16 %v229
  %v886 = vunpack.c.l.b16 %v230
  %v887 = vunpack.c.l.b16 %v231
  %v888 = vunpack.c.l.b16 %v232
  %v889 = vunpack.c.l.b16 %v233
  %v890 = vunpack.c.l.b16 %v234
  %v891 = vunpack.c.l.b16 %v235
  %v892 = vunpack.c.l.b16 %v236
  %v893 = vunpack.c.l.b16 %v237
  %v894 = vunpack.c.l.b16 %v238
  %v895 = vunpack.c.l.b16 %v239
  %v896 = vunpack.c.l.b16 %v240
  %v897 = vunpack.c.l.b16 %v241
  %v898 = vunpack.c.l.b16 %v242
  %v899 = vunpack.c.l.b16 %v243
  %v900 = vunpack.c.l.b16 %v244
  %v901 = vunpack.c.l.b16 %v245
  %v902 = vunpack.c.l.b16 %v246
  %v903 = vunpack.c.l.b16 %v247
  %v904 = vpack.c.b16 %v761, %v760
  %v905 = vpack.c.b16 %v763, %v762
  %v906 = vpack.c.b16 %v765, %v764
  %v907 = vpack.c.b16 %v767, %v766
  %v908 = vpack.c.b16 %v769, %v768
  %v909 = vpack.c.b16 %v771, %v770
  %v910 = vpack.c.b16 %v773, %v772
  %v911 = vpack.c.b16 %v775, %v774
  %v912 = vpack.c.b16 %v777, %v776
  %v913 = vpack.c.b16 %v779, %v778
  %v914 = vpack.c.b16 %v781, %v780
  %v915 = vpack.c.b16 %v783, %v782
  %v916 = vpack.c.b16 %v785, %v784
  %v917 = vpack.c.b16 %v787, %v786
  %v918 = vpack.c.b16 %v789, %v788
  %v919 = vpack.c.b16 %v791, %v790
  %v920 = vpack.c.b16 %v793, %v792
  %v921 = vpack.c.b16 %v795, %v794
  %v922 = vpack.c.b16 %v797, %v796
  %v923 = vpack.c.b16 %v799, %v798
  %v924 = vpack.c.b16 %v801, %v800
  %v925 = vpack.c.b16 %v803, %v802
  %v926 = vpack.c.b16 %v805, %v804
  %v927 = vpack.c.b16 %v807, %v806
  %v928 = vpack.c.b16 %v809, %v808
  %v929 = vpack.c.b16 %v811, %v810
  %v930 = vpack.c.b16 %v813, %v812
  %v931 = vpack.c.b16 %v815, %v814
  %v932 = vpack.c.b16 %v817, %v816
  %v933 = vpack.c.b16 %v819, %v818
  %v934 = vpack.c.b16 %v821, %v820
  %v935 = vpack.c.b16 %v823, %v822
  %v936 = vpack.c.b16 %v825, %v824
  %v937 = vpack.c.b16 %v827, %v826
  %v938 = vpack.c.b16 %v829, %v828
  %v939 = vpack.c.b16 %v831, %v830
  %v940 = vpack.c.b16 %v833, %v832
  %v941 = vpack.c.b16 %v835, %v834
  %v942 = vpack.c.b16 %v837, %v836
  %v943 = vpack.c.b16 %v839, %v838
  %v944 = vpack.c.b16 %v841, %v840
  %v945 = vpack.c.b16 %v843, %v842
  %v946 = vpack.c.b16 %v845, %v844
  %v947 = vpack.c.b16 %v847, %v846
  %v948 = vpack.c.b16 %v849, %v848
  %v949 = vpack.c.b16 %v851, %v850
  %v950 = vpack.c.b16 %v853, %v852
  %v951 = vpack.c.b16 %v855, %v854
  %v952 = vpack.c.b16 %v857, %v856
  %v953 = vpack.c.b16 %v859, %v858
  %v954 = vpack.c.b16 %v861, %v860
  %v955 = vpack.c.b16 %v863, %v862
  %v956 = vpack.c.b16 %v865, %v864
  %v957 = vpack.c.b16 %v867, %v866
  %v958 = vpack.c.b16 %v869, %v868
  %v959 = vpack.c.b16 %v871, %v870
  %v960 = vpack.c.b16 %v873, %v872
  %v961 = vpack.c.b16 %v875, %v874
  %v962 = vpack.c.b16 %v877, %v876
  %v963 = vpack.c.b16 %v879, %v878
  %v964 = vpack.c.b16 %v881, %v880
  %v965 = vpack.c.b16 %v883, %v882
  %v966 = vpack.c.b16 %v885, %v884
  %v967 = vpack.c.b16 %v887, %v886
  %v968 = vpack.c.b16 %v889, %v888
  %v969 = vpack.c.b16 %v891, %v890
  %v970 = vpack.c.b16 %v893, %v892
  %v971 = vpack.c.b16 %v895, %v894
  %v972 = vpack.c.b16 %v897, %v896
  %v973 = vpack.c.b16 %v899, %v898
  %v974 = vpack.c.b16 %v901, %v900
  %v975 = vpack.c.b16 %v903, %v902
  %1048 = vmatprep.subr.bf16.mxu0 0
  %1049 = vmatpush1.bf16.msra.mxu0 %v904
  %1050 = vmatprep.subr.bf16.mxu0 0
  %1051 = vmatpush1.bf16.msra.mxu0 %v905
  %1052 = vmatprep.subr.bf16.mxu0 0
  %1053 = vmatpush1.bf16.msra.mxu0 %v906
  %1054 = vmatprep.subr.bf16.mxu0 0
  %1055 = vmatpush1.bf16.msra.mxu0 %v907
  %1056 = vmatprep.subr.bf16.mxu0 0
  %1057 = vmatpush1.bf16.msra.mxu0 %v908
  %1058 = vmatprep.subr.bf16.mxu0 0
  %1059 = vmatpush1.bf16.msra.mxu0 %v909
  %1060 = vmatprep.subr.bf16.mxu0 0
  %1061 = vmatpush1.bf16.msra.mxu0 %v910
  %1062 = vmatprep.subr.bf16.mxu0 0
  %1063 = vmatpush1.bf16.msra.mxu0 %v911
  %1064 = vmatprep.subr.bf16.mxu0 0
  %1065 = vmatpush1.bf16.msra.mxu0 %v912
  %1066 = vmatprep.subr.bf16.mxu0 0
  %1067 = vmatpush1.bf16.msra.mxu0 %v913
  %1068 = vmatprep.subr.bf16.mxu0 0
  %1069 = vmatpush1.bf16.msra.mxu0 %v914
  %1070 = vmatprep.subr.bf16.mxu0 0
  %1071 = vmatpush1.bf16.msra.mxu0 %v915
  %1072 = vmatprep.subr.bf16.mxu0 0
  %1073 = vmatpush1.bf16.msra.mxu0 %v916
  %1074 = vmatprep.subr.bf16.mxu0 0
  %1075 = vmatpush1.bf16.msra.mxu0 %v917
  %1076 = vmatprep.subr.bf16.mxu0 0
  %1077 = vmatpush1.bf16.msra.mxu0 %v918
  %1078 = vmatprep.subr.bf16.mxu0 0
  %1079 = vmatpush1.bf16.msra.mxu0 %v919
  %1080 = vmatprep.mubr.bf16.mxu0 %v473
  %1081 = vmatmul.mubr.bf16.gmra.mrb[0].mxu0 %v472
  %v1082 = vpop.f32.mrb[0].mxu0
  %v1083 = vadd.f32 0.0, %v1082
  %v1084 = vpop.f32.mrb[0].mxu0
  %v1085 = vpop.f32.mrb[0].mxu0
  %v1086 = vadd.f32 0.0, %v1085
  %v1087 = vpop.f32.mrb[0].mxu0
  %1088 = vmatprep.mubr.bf16.mxu0 %v482
  %1089 = vmatmul.mubr.bf16.gmra.mrb[0].mxu0 %v481
  %v1090 = vpop.f32.mrb[0].mxu0
  %v1091 = vadd.f32 0.0, %v1090
  %v1092 = vpop.f32.mrb[0].mxu0
  %v1093 = vpop.f32.mrb[0].mxu0
  %v1094 = vadd.f32 0.0, %v1093
  %v1095 = vpop.f32.mrb[0].mxu0
  %1096 = vmatprep.mubr.bf16.mxu0 %v491
  %1097 = vmatmul.mubr.bf16.gmra.mrb[0].mxu0 %v490
  %v1098 = vpop.f32.mrb[0].mxu0
  %v1099 = vadd.f32 0.0, %v1098
  %v1100 = vpop.f32.mrb[0].mxu0
  %v1101 = vpop.f32.mrb[0].mxu0
  %v1102 = vadd.f32 0.0, %v1101
  %v1103 = vpop.f32.mrb[0].mxu0
  %1104 = vmatprep.mubr.bf16.mxu0 %v500
  %1105 = vmatmul.mubr.bf16.gmra.mrb[0].mxu0 %v499
  %v1106 = vpop.f32.mrb[0].mxu0
  %v1107 = vadd.f32 0.0, %v1106
  %v1108 = vpop.f32.mrb[0].mxu0
  %v1109 = vpop.f32.mrb[0].mxu0
  %v1110 = vadd.f32 0.0, %v1109
  %v1111 = vpop.f32.mrb[0].mxu0
  %1112 = vmatprep.mubr.bf16.mxu0 %v509
  %1113 = vmatmul.mubr.bf16.gmra.mrb[0].mxu0 %v508
  %v1114 = vpop.f32.mrb[0].mxu0
  %v1115 = vadd.f32 0.0, %v1114
  %v1116 = vpop.f32.mrb[0].mxu0
  %v1117 = vpop.f32.mrb[0].mxu0
  %v1118 = vadd.f32 0.0, %v1117
  %v1119 = vpop.f32.mrb[0].mxu0
  %1120 = vmatprep.mubr.bf16.mxu0 %v518
  %1121 = vmatmul.mubr.bf16.gmra.mrb[0].mxu0 %v517
  %v1122 = vpop.f32.mrb[0].mxu0
  %v1123 = vadd.f32 0.0, %v1122
  %v1124 = vpop.f32.mrb[0].mxu0
  %v1125 = vpop.f32.mrb[0].mxu0
  %v1126 = vadd.f32 0.0, %v1125
  %v1127 = vpop.f32.mrb[0].mxu0
  %1128 = vmatprep.mubr.bf16.mxu0 %v527
  %1129 = vmatmul.mubr.bf16.gmra.mrb[0].mxu0 %v526
  %v1130 = vpop.f32.mrb[0].mxu0
  %v1131 = vadd.f32 0.0, %v1130
  %v1132 = vpop.f32.mrb[0].mxu0
  %v1133 = vpop.f32.mrb[0].mxu0
  %v1134 = vadd.f32 0.0, %v1133
  %v1135 = vpop.f32.mrb[0].mxu0
  %1136 = vmatprep.mubr.bf16.mxu0 %v536
  %1137 = vmatmul.mubr.bf16.gmra.mrb[0].mxu0 %v535
  %v1138 = vpop.f32.mrb[0].mxu0
  %v1139 = vadd.f32 0.0, %v1138
  %v1140 = vpop.f32.mrb[0].mxu0
  %v1141 = vpop.f32.mrb[0].mxu0
  %v1142 = vadd.f32 0.0, %v1141
  %v1143 = vpop.f32.mrb[0].mxu0
  %1144 = vdwg.mxu0
  %1145 = vmatprep.subr.bf16.mxu0 0
  %1146 = vmatpush1.bf16.msra.mxu0 %v920
  %1147 = vmatprep.subr.bf16.mxu0 0
  %1148 = vmatpush1.bf16.msra.mxu0 %v921
  %1149 = vmatprep.subr.bf16.mxu0 0
  %1150 = vmatpush1.bf16.msra.mxu0 %v922
  %1151 = vmatprep.subr.bf16.mxu0 0
  %1152 = vmatpush1.bf16.msra.mxu0 %v923
  %1153 = vmatprep.subr.bf16.mxu0 0
  %1154 = vmatpush1.bf16.msra.mxu0 %v924
  %1155 = vmatprep.subr.bf16.mxu0 0
  %1156 = vmatpush1.bf16.msra.mxu0 %v925
  %1157 = vmatprep.subr.bf16.mxu0 0
  %1158 = vmatpush1.bf16.msra.mxu0 %v926
  %1159 = vmatprep.subr.bf16.mxu0 0
  %1160 = vmatpush1.bf16.msra.mxu0 %v927
  %1161 = vmatprep.subr.bf16.mxu0 0
  %1162 = vmatpush1.bf16.msra.mxu0 %v928
  %1163 = vmatprep.subr.bf16.mxu0 0
  %1164 = vmatpush1.bf16.msra.mxu0 %v929
  %1165 = vmatprep.subr.bf16.mxu0 0
  %1166 = vmatpush1.bf16.msra.mxu0 %v930
  %1167 = vmatprep.subr.bf16.mxu0 0
  %1168 = vmatpush1.bf16.msra.mxu0 %v931
  %1169 = vmatprep.subr.bf16.mxu0 0
  %1170 = vmatpush1.bf16.msra.mxu0 %v932
  %1171 = vmatprep.subr.bf16.mxu0 0
  %1172 = vmatpush1.bf16.msra.mxu0 %v933
  %1173 = vmatprep.subr.bf16.mxu0 0
  %1174 = vmatpush1.bf16.msra.mxu0 %v934
  %1175 = vmatprep.subr.bf16.mxu0 0
  %1176 = vmatpush1.bf16.msra.mxu0 %v935
  %1177 = vmatprep.mubr.bf16.mxu0 %v475
  %1178 = vmatmul.mubr.bf16.gmra.mrb[0].mxu0 %v474
  %v1179 = vpop.f32.mrb[0].mxu0
  %v1180 = vadd.f32 %v1083, %v1179
  %v1181 = vpop.f32.mrb[0].mxu0
  %v1182 = vpop.f32.mrb[0].mxu0
  %v1183 = vadd.f32 %v1086, %v1182
  %v1184 = vpop.f32.mrb[0].mxu0
  %1185 = vmatprep.mubr.bf16.mxu0 %v484
  %1186 = vmatmul.mubr.bf16.gmra.mrb[0].mxu0 %v483
  %v1187 = vpop.f32.mrb[0].mxu0
  %v1188 = vadd.f32 %v1091, %v1187
  %v1189 = vpop.f32.mrb[0].mxu0
  %v1190 = vpop.f32.mrb[0].mxu0
  %v1191 = vadd.f32 %v1094, %v1190
  %v1192 = vpop.f32.mrb[0].mxu0
  %1193 = vmatprep.mubr.bf16.mxu0 %v493
  %1194 = vmatmul.mubr.bf16.gmra.mrb[0].mxu0 %v492
  %v1195 = vpop.f32.mrb[0].mxu0
  %v1196 = vadd.f32 %v1099, %v1195
  %v1197 = vpop.f32.mrb[0].mxu0
  %v1198 = vpop.f32.mrb[0].mxu0
  %v1199 = vadd.f32 %v1102, %v1198
  %v1200 = vpop.f32.mrb[0].mxu0
  %1201 = vmatprep.mubr.bf16.mxu0 %v502
  %1202 = vmatmul.mubr.bf16.gmra.mrb[0].mxu0 %v501
  %v1203 = vpop.f32.mrb[0].mxu0
  %v1204 = vadd.f32 %v1107, %v1203
  %v1205 = vpop.f32.mrb[0].mxu0
  %v1206 = vpop.f32.mrb[0].mxu0
  %v1207 = vadd.f32 %v1110, %v1206
  %v1208 = vpop.f32.mrb[0].mxu0
  %1209 = vmatprep.mubr.bf16.mxu0 %v511
  %1210 = vmatmul.mubr.bf16.gmra.mrb[0].mxu0 %v510
  %v1211 = vpop.f32.mrb[0].mxu0
  %v1212 = vadd.f32 %v1115, %v1211
  %v1213 = vpop.f32.mrb[0].mxu0
  %v1214 = vpop.f32.mrb[0].mxu0
  %v1215 = vadd.f32 %v1118, %v1214
  %v1216 = vpop.f32.mrb[0].mxu0
  %1217 = vmatprep.mubr.bf16.mxu0 %v520
  %1218 = vmatmul.mubr.bf16.gmra.mrb[0].mxu0 %v519
  %v1219 = vpop.f32.mrb[0].mxu0
  %v1220 = vadd.f32 %v1123, %v1219
  %v1221 = vpop.f32.mrb[0].mxu0
  %v1222 = vpop.f32.mrb[0].mxu0
  %v1223 = vadd.f32 %v1126, %v1222
  %v1224 = vpop.f32.mrb[0].mxu0
  %1225 = vmatprep.mubr.bf16.mxu0 %v529
  %1226 = vmatmul.mubr.bf16.gmra.mrb[0].mxu0 %v528
  %v1227 = vpop.f32.mrb[0].mxu0
  %v1228 = vadd.f32 %v1131, %v1227
  %v1229 = vpop.f32.mrb[0].mxu0
  %v1230 = vpop.f32.mrb[0].mxu0
  %v1231 = vadd.f32 %v1134, %v1230
  %v1232 = vpop.f32.mrb[0].mxu0
  %1233 = vmatprep.mubr.bf16.mxu0 %v538
  %1234 = vmatmul.mubr.bf16.gmra.mrb[0].mxu0 %v537
  %v1235 = vpop.f32.mrb[0].mxu0
  %v1236 = vadd.f32 %v1139, %v1235
  %v1237 = vpop.f32.mrb[0].mxu0
  %v1238 = vpop.f32.mrb[0].mxu0
  %v1239 = vadd.f32 %v1142, %v1238
  %v1240 = vpop.f32.mrb[0].mxu0
  %1241 = vdwg.mxu0
  %1242 = vmatprep.subr.bf16.mxu0 0
  %1243 = vmatpush1.bf16.msra.mxu0 %v936
  %1244 = vmatprep.subr.bf16.mxu0 0
  %1245 = vmatpush1.bf16.msra.mxu0 %v937
  %1246 = vmatprep.subr.bf16.mxu0 0
  %1247 = vmatpush1.bf16.msra.mxu0 %v938
  %1248 = vmatprep.subr.bf16.mxu0 0
  %1249 = vmatpush1.bf16.msra.mxu0 %v939
  %1250 = vmatprep.subr.bf16.mxu0 0
  %1251 = vmatpush1.bf16.msra.mxu0 %v940
  %1252 = vmatprep.subr.bf16.mxu0 0
  %1253 = vmatpush1.bf16.msra.mxu0 %v941
  %1254 = vmatprep.subr.bf16.mxu0 0
  %1255 = vmatpush1.bf16.msra.mxu0 %v942
  %1256 = vmatprep.subr.bf16.mxu0 0
  %1257 = vmatpush1.bf16.msra.mxu0 %v943
  %1258 = vmatprep.subr.bf16.mxu0 0
  %1259 = vmatpush1.bf16.msra.mxu0 %v944
  %1260 = vmatprep.subr.bf16.mxu0 0
  %1261 = vmatpush1.bf16.msra.mxu0 %v945
  %1262 = vmatprep.subr.bf16.mxu0 0
  %1263 = vmatpush1.bf16.msra.mxu0 %v946
  %1264 = vmatprep.subr.bf16.mxu0 0
  %1265 = vmatpush1.bf16.msra.mxu0 %v947
  %1266 = vmatprep.subr.bf16.mxu0 0
  %1267 = vmatpush1.bf16.msra.mxu0 %v948
  %1268 = vmatprep.subr.bf16.mxu0 0
  %1269 = vmatpush1.bf16.msra.mxu0 %v949
  %1270 = vmatprep.subr.bf16.mxu0 0
  %1271 = vmatpush1.bf16.msra.mxu0 %v950
  %1272 = vmatprep.subr.bf16.mxu0 0
  %1273 = vmatpush1.bf16.msra.mxu0 %v951
  %1274 = vmatprep.mubr.bf16.mxu0 %v477
  %1275 = vmatmul.mubr.bf16.gmra.mrb[0].mxu0 %v476
  %v1276 = vpop.f32.mrb[0].mxu0
  %v1277 = vadd.f32 %v1180, %v1276
  %v1278 = vpop.f32.mrb[0].mxu0
  %v1279 = vpop.f32.mrb[0].mxu0
  %v1280 = vadd.f32 %v1183, %v1279
  %v1281 = vpop.f32.mrb[0].mxu0
  %1282 = vmatprep.mubr.bf16.mxu0 %v486
  %1283 = vmatmul.mubr.bf16.gmra.mrb[0].mxu0 %v485
  %v1284 = vpop.f32.mrb[0].mxu0
  %v1285 = vadd.f32 %v1188, %v1284
  %v1286 = vpop.f32.mrb[0].mxu0
  %v1287 = vpop.f32.mrb[0].mxu0
  %v1288 = vadd.f32 %v1191, %v1287
  %v1289 = vpop.f32.mrb[0].mxu0
  %1290 = vmatprep.mubr.bf16.mxu0 %v495
  %1291 = vmatmul.mubr.bf16.gmra.mrb[0].mxu0 %v494
  %v1292 = vpop.f32.mrb[0].mxu0
  %v1293 = vadd.f32 %v1196, %v1292
  %v1294 = vpop.f32.mrb[0].mxu0
  %v1295 = vpop.f32.mrb[0].mxu0
  %v1296 = vadd.f32 %v1199, %v1295
  %v1297 = vpop.f32.mrb[0].mxu0
  %1298 = vmatprep.mubr.bf16.mxu0 %v504
  %1299 = vmatmul.mubr.bf16.gmra.mrb[0].mxu0 %v503
  %v1300 = vpop.f32.mrb[0].mxu0
  %v1301 = vadd.f32 %v1204, %v1300
  %v1302 = vpop.f32.mrb[0].mxu0
  %v1303 = vpop.f32.mrb[0].mxu0
  %v1304 = vadd.f32 %v1207, %v1303
  %v1305 = vpop.f32.mrb[0].mxu0
  %1306 = vmatprep.mubr.bf16.mxu0 %v513
  %1307 = vmatmul.mubr.bf16.gmra.mrb[0].mxu0 %v512
  %v1308 = vpop.f32.mrb[0].mxu0
  %v1309 = vadd.f32 %v1212, %v1308
  %v1310 = vpop.f32.mrb[0].mxu0
  %v1311 = vpop.f32.mrb[0].mxu0
  %v1312 = vadd.f32 %v1215, %v1311
  %v1313 = vpop.f32.mrb[0].mxu0
  %1314 = vmatprep.mubr.bf16.mxu0 %v522
  %1315 = vmatmul.mubr.bf16.gmra.mrb[0].mxu0 %v521
  %v1316 = vpop.f32.mrb[0].mxu0
  %v1317 = vadd.f32 %v1220, %v1316
  %v1318 = vpop.f32.mrb[0].mxu0
  %v1319 = vpop.f32.mrb[0].mxu0
  %v1320 = vadd.f32 %v1223, %v1319
  %v1321 = vpop.f32.mrb[0].mxu0
  %1322 = vmatprep.mubr.bf16.mxu0 %v531
  %1323 = vmatmul.mubr.bf16.gmra.mrb[0].mxu0 %v530
  %v1324 = vpop.f32.mrb[0].mxu0
  %v1325 = vadd.f32 %v1228, %v1324
  %v1326 = vpop.f32.mrb[0].mxu0
  %v1327 = vpop.f32.mrb[0].mxu0
  %v1328 = vadd.f32 %v1231, %v1327
  %v1329 = vpop.f32.mrb[0].mxu0
  %1330 = vmatprep.mubr.bf16.mxu0 %v540
  %1331 = vmatmul.mubr.bf16.gmra.mrb[0].mxu0 %v539
  %v1332 = vpop.f32.mrb[0].mxu0
  %v1333 = vadd.f32 %v1236, %v1332
  %v1334 = vpop.f32.mrb[0].mxu0
  %v1335 = vpop.f32.mrb[0].mxu0
  %v1336 = vadd.f32 %v1239, %v1335
  %v1337 = vpop.f32.mrb[0].mxu0
  %1338 = vdwg.mxu0
  %1339 = vmatprep.subr.bf16.mxu0 0
  %1340 = vmatpush1.bf16.msra.mxu0 %v952
  %1341 = vmatprep.subr.bf16.mxu0 0
  %1342 = vmatpush1.bf16.msra.mxu0 %v953
  %1343 = vmatprep.subr.bf16.mxu0 0
  %1344 = vmatpush1.bf16.msra.mxu0 %v954
  %1345 = vmatprep.subr.bf16.mxu0 0
  %1346 = vmatpush1.bf16.msra.mxu0 %v955
  %1347 = vmatprep.subr.bf16.mxu0 0
  %1348 = vmatpush1.bf16.msra.mxu0 %v956
  %1349 = vmatprep.subr.bf16.mxu0 0
  %1350 = vmatpush1.bf16.msra.mxu0 %v957
  %1351 = vmatprep.subr.bf16.mxu0 0
  %1352 = vmatpush1.bf16.msra.mxu0 %v958
  %1353 = vmatprep.subr.bf16.mxu0 0
  %1354 = vmatpush1.bf16.msra.mxu0 %v959
  %1355 = vmatprep.subr.bf16.mxu0 0
  %1356 = vmatpush1.bf16.msra.mxu0 %v960
  %1357 = vmatprep.subr.bf16.mxu0 0
  %1358 = vmatpush1.bf16.msra.mxu0 %v961
  %1359 = vmatprep.subr.bf16.mxu0 0
  %1360 = vmatpush1.bf16.msra.mxu0 %v962
  %1361 = vmatprep.subr.bf16.mxu0 0
  %1362 = vmatpush1.bf16.msra.mxu0 %v963
  %1363 = vmatprep.subr.bf16.mxu0 0
  %1364 = vmatpush1.bf16.msra.mxu0 %v964
  %1365 = vmatprep.subr.bf16.mxu0 0
  %1366 = vmatpush1.bf16.msra.mxu0 %v965
  %1367 = vmatprep.subr.bf16.mxu0 0
  %1368 = vmatpush1.bf16.msra.mxu0 %v966
  %1369 = vmatprep.subr.bf16.mxu0 0
  %1370 = vmatpush1.bf16.msra.mxu0 %v967
  %1371 = vmatprep.mubr.bf16.mxu0 %v479
  %1372 = vmatmul.mubr.bf16.gmra.mrb[0].mxu0 %v478
  %v1373 = vpop.f32.mrb[0].mxu0
  %v1374 = vadd.f32 %v1277, %v1373
  %v1375 = vpop.f32.mrb[0].mxu0
  %v1376 = vpop.f32.mrb[0].mxu0
  %v1377 = vadd.f32 %v1280, %v1376
  %v1378 = vpop.f32.mrb[0].mxu0
  %1379 = vmatprep.mubr.bf16.mxu0 %v488
  %1380 = vmatmul.mubr.bf16.gmra.mrb[0].mxu0 %v487
  %v1381 = vpop.f32.mrb[0].mxu0
  %v1382 = vadd.f32 %v1285, %v1381
  %v1383 = vpop.f32.mrb[0].mxu0
  %v1384 = vpop.f32.mrb[0].mxu0
  %v1385 = vadd.f32 %v1288, %v1384
  %v1386 = vpop.f32.mrb[0].mxu0
  %1387 = vmatprep.mubr.bf16.mxu0 %v497
  %1388 = vmatmul.mubr.bf16.gmra.mrb[0].mxu0 %v496
  %v1389 = vpop.f32.mrb[0].mxu0
  %v1390 = vadd.f32 %v1293, %v1389
  %v1391 = vpop.f32.mrb[0].mxu0
  %v1392 = vpop.f32.mrb[0].mxu0
  %v1393 = vadd.f32 %v1296, %v1392
  %v1394 = vpop.f32.mrb[0].mxu0
  %1395 = vmatprep.mubr.bf16.mxu0 %v506
  %1396 = vmatmul.mubr.bf16.gmra.mrb[0].mxu0 %v505
  %v1397 = vpop.f32.mrb[0].mxu0
  %v1398 = vadd.f32 %v1301, %v1397
  %v1399 = vpop.f32.mrb[0].mxu0
  %v1400 = vpop.f32.mrb[0].mxu0
  %v1401 = vadd.f32 %v1304, %v1400
  %v1402 = vpop.f32.mrb[0].mxu0
  %1403 = vmatprep.mubr.bf16.mxu0 %v515
  %1404 = vmatmul.mubr.bf16.gmra.mrb[0].mxu0 %v514
  %v1405 = vpop.f32.mrb[0].mxu0
  %v1406 = vadd.f32 %v1309, %v1405
  %v1407 = vpop.f32.mrb[0].mxu0
  %v1408 = vpop.f32.mrb[0].mxu0
  %v1409 = vadd.f32 %v1312, %v1408
  %v1410 = vpop.f32.mrb[0].mxu0
  %1411 = vmatprep.mubr.bf16.mxu0 %v524
  %1412 = vmatmul.mubr.bf16.gmra.mrb[0].mxu0 %v523
  %v1413 = vpop.f32.mrb[0].mxu0
  %v1414 = vadd.f32 %v1317, %v1413
  %v1415 = vpop.f32.mrb[0].mxu0
  %v1416 = vpop.f32.mrb[0].mxu0
  %v1417 = vadd.f32 %v1320, %v1416
  %v1418 = vpop.f32.mrb[0].mxu0
  %1419 = vmatprep.mubr.bf16.mxu0 %v533
  %1420 = vmatmul.mubr.bf16.gmra.mrb[0].mxu0 %v532
  %v1421 = vpop.f32.mrb[0].mxu0
  %v1422 = vadd.f32 %v1325, %v1421
  %v1423 = vpop.f32.mrb[0].mxu0
  %v1424 = vpop.f32.mrb[0].mxu0
  %v1425 = vadd.f32 %v1328, %v1424
  %v1426 = vpop.f32.mrb[0].mxu0
  %1427 = vmatprep.mubr.bf16.mxu0 %v542
  %1428 = vmatmul.mubr.bf16.gmra.mrb[0].mxu0 %v541
  %v1429 = vpop.f32.mrb[0].mxu0
  %v1430 = vadd.f32 %v1333, %v1429
  %v1431 = vpop.f32.mrb[0].mxu0
  %v1432 = vpop.f32.mrb[0].mxu0
  %v1433 = vadd.f32 %v1336, %v1432
  %v1434 = vpop.f32.mrb[0].mxu0
  %1435 = vdwg.mxu0
  %1436 = vmatprep.subr.bf16.mxu0 0
  %1437 = vmatpush1.bf16.msra.mxu0 %v968
  %1438 = vmatprep.subr.bf16.mxu0 0
  %1439 = vmatpush1.bf16.msra.mxu0 %v969
  %1440 = vmatprep.subr.bf16.mxu0 0
  %1441 = vmatpush1.bf16.msra.mxu0 %v970
  %1442 = vmatprep.subr.bf16.mxu0 0
  %1443 = vmatpush1.bf16.msra.mxu0 %v971
  %1444 = vmatprep.subr.bf16.mxu0 0
  %1445 = vmatpush1.bf16.msra.mxu0 %v972
  %1446 = vmatprep.subr.bf16.mxu0 0
  %1447 = vmatpush1.bf16.msra.mxu0 %v973
  %1448 = vmatprep.subr.bf16.mxu0 0
  %1449 = vmatpush1.bf16.msra.mxu0 %v974
  %1450 = vmatprep.subr.bf16.mxu0 0
  %1451 = vmatpush1.bf16.msra.mxu0 %v975
  %1452 = vmatprep.subr.bf16.mxu0 0
  %1453 = vmatpush1.bf16.msra.mxu0 0
  %1454 = vmatprep.subr.bf16.mxu0 0
  %1455 = vmatpush1.bf16.msra.mxu0 0
  %1456 = vmatprep.subr.bf16.mxu0 0
  %1457 = vmatpush1.bf16.msra.mxu0 0
  %1458 = vmatprep.subr.bf16.mxu0 0
  %1459 = vmatpush1.bf16.msra.mxu0 0
  %1460 = vmatprep.subr.bf16.mxu0 0
  %1461 = vmatpush1.bf16.msra.mxu0 0
  %1462 = vmatprep.subr.bf16.mxu0 0
  %1463 = vmatpush1.bf16.msra.mxu0 0
  %1464 = vmatprep.subr.bf16.mxu0 0
  %1465 = vmatpush1.bf16.msra.mxu0 0
  %1466 = vmatprep.subr.bf16.mxu0 0
  %1467 = vmatpush1.bf16.msra.mxu0 0
  %1468 = vmatprep.mubr.bf16.mxu0 0
  %1469 = vmatmul.mubr.bf16.gmra.mrb[0].mxu0 %v480
  %v1470 = vpop.f32.mrb[0].mxu0
  %v1471 = vadd.f32 %v1374, %v1470
  %v1472 = vpop.f32.mrb[0].mxu0
  %v1473 = vpop.f32.mrb[0].mxu0
  %v1474 = vadd.f32 %v1377, %v1473
  %v1475 = vpop.f32.mrb[0].mxu0
  %1476 = vmatprep.mubr.bf16.mxu0 0
  %1477 = vmatmul.mubr.bf16.gmra.mrb[0].mxu0 %v489
  %v1478 = vpop.f32.mrb[0].mxu0
  %v1479 = vadd.f32 %v1382, %v1478
  %v1480 = vpop.f32.mrb[0].mxu0
  %v1481 = vpop.f32.mrb[0].mxu0
  %v1482 = vadd.f32 %v1385, %v1481
  %v1483 = vpop.f32.mrb[0].mxu0
  %1484 = vmatprep.mubr.bf16.mxu0 0
  %1485 = vmatmul.mubr.bf16.gmra.mrb[0].mxu0 %v498
  %v1486 = vpop.f32.mrb[0].mxu0
  %v1487 = vadd.f32 %v1390, %v1486
  %v1488 = vpop.f32.mrb[0].mxu0
  %v1489 = vpop.f32.mrb[0].mxu0
  %v1490 = vadd.f32 %v1393, %v1489
  %v1491 = vpop.f32.mrb[0].mxu0
  %1492 = vmatprep.mubr.bf16.mxu0 0
  %1493 = vmatmul.mubr.bf16.gmra.mrb[0].mxu0 %v507
  %v1494 = vpop.f32.mrb[0].mxu0
  %v1495 = vadd.f32 %v1398, %v1494
  %v1496 = vpop.f32.mrb[0].mxu0
  %v1497 = vpop.f32.mrb[0].mxu0
  %v1498 = vadd.f32 %v1401, %v1497
  %v1499 = vpop.f32.mrb[0].mxu0
  %1500 = vmatprep.mubr.bf16.mxu0 0
  %1501 = vmatmul.mubr.bf16.gmra.mrb[0].mxu0 %v516
  %v1502 = vpop.f32.mrb[0].mxu0
  %v1503 = vadd.f32 %v1406, %v1502
  %v1504 = vpop.f32.mrb[0].mxu0
  %v1505 = vpop.f32.mrb[0].mxu0
  %v1506 = vadd.f32 %v1409, %v1505
  %v1507 = vpop.f32.mrb[0].mxu0
  %1508 = vmatprep.mubr.bf16.mxu0 0
  %1509 = vmatmul.mubr.bf16.gmra.mrb[0].mxu0 %v525
  %v1510 = vpop.f32.mrb[0].mxu0
  %v1511 = vadd.f32 %v1414, %v1510
  %v1512 = vpop.f32.mrb[0].mxu0
  %v1513 = vpop.f32.mrb[0].mxu0
  %v1514 = vadd.f32 %v1417, %v1513
  %v1515 = vpop.f32.mrb[0].mxu0
  %1516 = vmatprep.mubr.bf16.mxu0 0
  %1517 = vmatmul.mubr.bf16.gmra.mrb[0].mxu0 %v534
  %v1518 = vpop.f32.mrb[0].mxu0
  %v1519 = vadd.f32 %v1422, %v1518
  %v1520 = vpop.f32.mrb[0].mxu0
  %v1521 = vpop.f32.mrb[0].mxu0
  %v1522 = vadd.f32 %v1425, %v1521
  %v1523 = vpop.f32.mrb[0].mxu0
  %1524 = vmatprep.mubr.bf16.mxu0 0
  %1525 = vmatmul.mubr.bf16.gmra.mrb[0].mxu0 %v543
  %v1526 = vpop.f32.mrb[0].mxu0
  %v1527 = vadd.f32 %v1430, %v1526
  %v1528 = vpop.f32.mrb[0].mxu0
  %v1529 = vpop.f32.mrb[0].mxu0
  %v1530 = vadd.f32 %v1433, %v1529
  %v1531 = vpop.f32.mrb[0].mxu0
  %1532 = vdwg.mxu0
  %1533 = vst [vmem:[%s4] sm:$0xff] %v1471
  %1534 = vst [vmem:[%s4 + $0x8] sm:$0xff] %v1474
  %1535 = vst [vmem:[%s4 + $0x10] sm:$0xff] %v1479
  %1536 = vst [vmem:[%s4 + $0x18] sm:$0xff] %v1482
  %1537 = vst [vmem:[%s4 + $0x20] sm:$0xff] %v1487
  %1538 = vst [vmem:[%s4 + $0x28] sm:$0xff] %v1490
  %1539 = vst [vmem:[%s4 + $0x30] sm:$0xff] %v1495
  %1540 = vst [vmem:[%s4 + $0x38] sm:$0xff] %v1498
  %1541 = vst [vmem:[%s4 + $0x40] sm:$0xff] %v1503
  %1542 = vst [vmem:[%s4 + $0x48] sm:$0xff] %v1506
  %1543 = vst [vmem:[%s4 + $0x50] sm:$0xff] %v1511
  %1544 = vst [vmem:[%s4 + $0x58] sm:$0xff] %v1514
  %1545 = vst [vmem:[%s4 + $0x60] sm:$0xff] %v1519
  %1546 = vst [vmem:[%s4 + $0x68] sm:$0xff] %v1522
  %1547 = vst [vmem:[%s4 + $0x70] sm:$0xff] %v1527
  %1548 = vst [vmem:[%s4 + $0x78] sm:$0xff] %v1530
  %v1549 = vadd.f32 %v1471, %v1474
  %v1550 = vadd.f32 %v1549, %v1479
  %v1551 = vadd.f32 %v1550, %v1482
  %v1552 = vadd.f32 %v1551, %v1487
  %v1553 = vadd.f32 %v1552, %v1490
  %v1554 = vadd.f32 %v1553, %v1495
  %v1555 = vadd.f32 %v1554, %v1498
  %v1556 = vadd.f32 %v1555, %v1503
  %v1557 = vadd.f32 %v1556, %v1506
  %v1558 = vadd.f32 %v1557, %v1511
  %v1559 = vadd.f32 %v1558, %v1514
  %v1560 = vadd.f32 %v1559, %v1519
  %v1561 = vadd.f32 %v1560, %v1522
  %v1562 = vadd.f32 %v1561, %v1527
  %v1563 = vadd.f32 %v1562, %v1530
  %v1564 = vrot.slane %v1563, 4
  %v1565 = vadd.f32 %v1563, %v1564
  %v1566 = vrot.slane %v1565, 2
  %v1567 = vadd.f32 %v1565, %v1566
  %v1568 = vrot.slane %v1567, 1
  %v1569 = vadd.f32 %v1567, %v1568
  %v1570 = vmul.f32 %v1471, %v1471
  %v1571 = vmul.f32 %v1474, %v1474
  %v1572 = vmul.f32 %v1479, %v1479
  %v1573 = vmul.f32 %v1482, %v1482
  %v1574 = vmul.f32 %v1487, %v1487
  %v1575 = vmul.f32 %v1490, %v1490
  %v1576 = vmul.f32 %v1495, %v1495
  %v1577 = vmul.f32 %v1498, %v1498
  %v1578 = vmul.f32 %v1503, %v1503
  %v1579 = vmul.f32 %v1506, %v1506
  %v1580 = vmul.f32 %v1511, %v1511
  %v1581 = vmul.f32 %v1514, %v1514
  %v1582 = vmul.f32 %v1519, %v1519
  %v1583 = vmul.f32 %v1522, %v1522
  %v1584 = vmul.f32 %v1527, %v1527
  %v1585 = vmul.f32 %v1530, %v1530
  %v1586 = vadd.f32 %v1570, %v1571
  %v1587 = vadd.f32 %v1586, %v1572
  %v1588 = vadd.f32 %v1587, %v1573
  %v1589 = vadd.f32 %v1588, %v1574
  %v1590 = vadd.f32 %v1589, %v1575
  %v1591 = vadd.f32 %v1590, %v1576
  %v1592 = vadd.f32 %v1591, %v1577
  %v1593 = vadd.f32 %v1592, %v1578
  %v1594 = vadd.f32 %v1593, %v1579
  %v1595 = vadd.f32 %v1594, %v1580
  %v1596 = vadd.f32 %v1595, %v1581
  %v1597 = vadd.f32 %v1596, %v1582
  %v1598 = vadd.f32 %v1597, %v1583
  %v1599 = vadd.f32 %v1598, %v1584
  %v1600 = vadd.f32 %v1599, %v1585
  %v1601 = vrot.slane %v1600, 4
  %v1602 = vadd.f32 %v1600, %v1601
  %v1603 = vrot.slane %v1602, 2
  %v1604 = vadd.f32 %v1602, %v1603
  %v1605 = vrot.slane %v1604, 1
  %v1606 = vadd.f32 %v1604, %v1605
  %1607 = vst [vmem:[%s6] sm:$0xff] %v1569
  %1608 = vst [vmem:[%s7] sm:$0xff] %v1606
  %v1609 = vld [vmem:[%s2] sm:$0xf]
  %v1610 = vld [vmem:[%s2 + $0x4] sm:$0xf]
  %v1611 = vld [vmem:[%s2 + $0x8] sm:$0xf]
  %v1612 = vld [vmem:[%s2 + $0xc] sm:$0xf]
  %v1613 = vld [vmem:[%s2 + $0x10] sm:$0xf]
  %v1614 = vld [vmem:[%s2 + $0x14] sm:$0xf]
  %v1615 = vld [vmem:[%s2 + $0x18] sm:$0xf]
  %v1616 = vld [vmem:[%s2 + $0x1c] sm:$0xf]
  %v1617 = vld [vmem:[%s2 + $0x20] sm:$0xf]
  %v1618 = vld [vmem:[%s2 + $0x24] sm:$0xf]
  %v1619 = vld [vmem:[%s2 + $0x28] sm:$0xf]
  %v1620 = vld [vmem:[%s2 + $0x2c] sm:$0xf]
  %v1621 = vld [vmem:[%s2 + $0x30] sm:$0xf]
  %v1622 = vld [vmem:[%s2 + $0x34] sm:$0xf]
  %v1623 = vld [vmem:[%s2 + $0x38] sm:$0xf]
  %v1624 = vld [vmem:[%s2 + $0x3c] sm:$0xf]
  %v1625 = vld [vmem:[%s3] sm:$0xf]
  %v1626 = vld [vmem:[%s3 + $0x4] sm:$0xf]
  %v1627 = vld [vmem:[%s3 + $0x8] sm:$0xf]
  %v1628 = vld [vmem:[%s3 + $0xc] sm:$0xf]
  %v1629 = vld [vmem:[%s3 + $0x10] sm:$0xf]
  %v1630 = vld [vmem:[%s3 + $0x14] sm:$0xf]
  %v1631 = vld [vmem:[%s3 + $0x18] sm:$0xf]
  %v1632 = vld [vmem:[%s3 + $0x1c] sm:$0xf]
  %v1633 = vld [vmem:[%s3 + $0x20] sm:$0xf]
  %v1634 = vld [vmem:[%s3 + $0x24] sm:$0xf]
  %v1635 = vld [vmem:[%s3 + $0x28] sm:$0xf]
  %v1636 = vld [vmem:[%s3 + $0x2c] sm:$0xf]
  %v1637 = vld [vmem:[%s3 + $0x30] sm:$0xf]
  %v1638 = vld [vmem:[%s3 + $0x34] sm:$0xf]
  %v1639 = vld [vmem:[%s3 + $0x38] sm:$0xf]
  %v1640 = vld [vmem:[%s3 + $0x3c] sm:$0xf]
  %v1657 = vunpack.c.l.b16 %v1609
  %v1658 = vunpack.c.l.b16 %v1610
  %v1659 = vunpack.c.l.b16 %v1611
  %v1660 = vunpack.c.l.b16 %v1612
  %v1661 = vunpack.c.l.b16 %v1613
  %v1662 = vunpack.c.l.b16 %v1614
  %v1663 = vunpack.c.l.b16 %v1615
  %v1664 = vunpack.c.l.b16 %v1616
  %v1665 = vunpack.c.l.b16 %v1617
  %v1666 = vunpack.c.l.b16 %v1618
  %v1667 = vunpack.c.l.b16 %v1619
  %v1668 = vunpack.c.l.b16 %v1620
  %v1669 = vunpack.c.l.b16 %v1621
  %v1670 = vunpack.c.l.b16 %v1622
  %v1671 = vunpack.c.l.b16 %v1623
  %v1672 = vunpack.c.l.b16 %v1624
  %v1673 = vpack.c.b16 %v1658, %v1657
  %v1674 = vpack.c.b16 %v1660, %v1659
  %v1675 = vpack.c.b16 %v1662, %v1661
  %v1676 = vpack.c.b16 %v1664, %v1663
  %v1677 = vpack.c.b16 %v1666, %v1665
  %v1678 = vpack.c.b16 %v1668, %v1667
  %v1679 = vpack.c.b16 %v1670, %v1669
  %v1680 = vpack.c.b16 %v1672, %v1671
  %v1705 = vunpack.c.l.b16 %v1625
  %v1706 = vunpack.c.l.b16 %v1626
  %v1707 = vunpack.c.l.b16 %v1627
  %v1708 = vunpack.c.l.b16 %v1628
  %v1709 = vunpack.c.l.b16 %v1629
  %v1710 = vunpack.c.l.b16 %v1630
  %v1711 = vunpack.c.l.b16 %v1631
  %v1712 = vunpack.c.l.b16 %v1632
  %v1713 = vunpack.c.l.b16 %v1633
  %v1714 = vunpack.c.l.b16 %v1634
  %v1715 = vunpack.c.l.b16 %v1635
  %v1716 = vunpack.c.l.b16 %v1636
  %v1717 = vunpack.c.l.b16 %v1637
  %v1718 = vunpack.c.l.b16 %v1638
  %v1719 = vunpack.c.l.b16 %v1639
  %v1720 = vunpack.c.l.b16 %v1640
  %v1721 = vpack.c.b16 %v1706, %v1705
  %v1722 = vpack.c.b16 %v1708, %v1707
  %v1723 = vpack.c.b16 %v1710, %v1709
  %v1724 = vpack.c.b16 %v1712, %v1711
  %v1725 = vpack.c.b16 %v1714, %v1713
  %v1726 = vpack.c.b16 %v1716, %v1715
  %v1727 = vpack.c.b16 %v1718, %v1717
  %v1728 = vpack.c.b16 %v1720, %v1719
  %1737 = vmatprep.subr.bf16.mxu0 0
  %1738 = vmatpush1.bf16.msra.mxu0 %v1721
  %1739 = vmatprep.subr.bf16.mxu0 0
  %1740 = vmatpush1.bf16.msra.mxu0 %v1722
  %1741 = vmatprep.subr.bf16.mxu0 0
  %1742 = vmatpush1.bf16.msra.mxu0 %v1723
  %1743 = vmatprep.subr.bf16.mxu0 0
  %1744 = vmatpush1.bf16.msra.mxu0 %v1724
  %1745 = vmatprep.subr.bf16.mxu0 0
  %1746 = vmatpush1.bf16.msra.mxu0 %v1725
  %1747 = vmatprep.subr.bf16.mxu0 0
  %1748 = vmatpush1.bf16.msra.mxu0 %v1726
  %1749 = vmatprep.subr.bf16.mxu0 0
  %1750 = vmatpush1.bf16.msra.mxu0 %v1727
  %1751 = vmatprep.subr.bf16.mxu0 0
  %1752 = vmatpush1.bf16.msra.mxu0 %v1728
  %1753 = vmatprep.subr.bf16.mxu0 0
  %1754 = vmatpush1.bf16.msra.mxu0 0
  %1755 = vmatprep.subr.bf16.mxu0 0
  %1756 = vmatpush1.bf16.msra.mxu0 0
  %1757 = vmatprep.subr.bf16.mxu0 0
  %1758 = vmatpush1.bf16.msra.mxu0 0
  %1759 = vmatprep.subr.bf16.mxu0 0
  %1760 = vmatpush1.bf16.msra.mxu0 0
  %1761 = vmatprep.subr.bf16.mxu0 0
  %1762 = vmatpush1.bf16.msra.mxu0 0
  %1763 = vmatprep.subr.bf16.mxu0 0
  %1764 = vmatpush1.bf16.msra.mxu0 0
  %1765 = vmatprep.subr.bf16.mxu0 0
  %1766 = vmatpush1.bf16.msra.mxu0 0
  %1767 = vmatprep.subr.bf16.mxu0 0
  %1768 = vmatpush1.bf16.msra.mxu0 0
  %1769 = vmatprep.mubr.bf16.mxu0 0
  %1770 = vmatmul.mubr.bf16.gmra.mrb[0].mxu0 %v1673
  %v1771 = vpop.f32.mrb[0].mxu0
  %v1772 = vadd.f32 0.0, %v1771
  %v1773 = vpop.f32.mrb[0].mxu0
  %v1774 = vpop.f32.mrb[0].mxu0
  %v1775 = vadd.f32 0.0, %v1774
  %v1776 = vpop.f32.mrb[0].mxu0
  %1777 = vmatprep.mubr.bf16.mxu0 0
  %1778 = vmatmul.mubr.bf16.gmra.mrb[0].mxu0 %v1674
  %v1779 = vpop.f32.mrb[0].mxu0
  %v1780 = vadd.f32 0.0, %v1779
  %v1781 = vpop.f32.mrb[0].mxu0
  %v1782 = vpop.f32.mrb[0].mxu0
  %v1783 = vadd.f32 0.0, %v1782
  %v1784 = vpop.f32.mrb[0].mxu0
  %1785 = vmatprep.mubr.bf16.mxu0 0
  %1786 = vmatmul.mubr.bf16.gmra.mrb[0].mxu0 %v1675
  %v1787 = vpop.f32.mrb[0].mxu0
  %v1788 = vadd.f32 0.0, %v1787
  %v1789 = vpop.f32.mrb[0].mxu0
  %v1790 = vpop.f32.mrb[0].mxu0
  %v1791 = vadd.f32 0.0, %v1790
  %v1792 = vpop.f32.mrb[0].mxu0
  %1793 = vmatprep.mubr.bf16.mxu0 0
  %1794 = vmatmul.mubr.bf16.gmra.mrb[0].mxu0 %v1676
  %v1795 = vpop.f32.mrb[0].mxu0
  %v1796 = vadd.f32 0.0, %v1795
  %v1797 = vpop.f32.mrb[0].mxu0
  %v1798 = vpop.f32.mrb[0].mxu0
  %v1799 = vadd.f32 0.0, %v1798
  %v1800 = vpop.f32.mrb[0].mxu0
  %1801 = vmatprep.mubr.bf16.mxu0 0
  %1802 = vmatmul.mubr.bf16.gmra.mrb[0].mxu0 %v1677
  %v1803 = vpop.f32.mrb[0].mxu0
  %v1804 = vadd.f32 0.0, %v1803
  %v1805 = vpop.f32.mrb[0].mxu0
  %v1806 = vpop.f32.mrb[0].mxu0
  %v1807 = vadd.f32 0.0, %v1806
  %v1808 = vpop.f32.mrb[0].mxu0
  %1809 = vmatprep.mubr.bf16.mxu0 0
  %1810 = vmatmul.mubr.bf16.gmra.mrb[0].mxu0 %v1678
  %v1811 = vpop.f32.mrb[0].mxu0
  %v1812 = vadd.f32 0.0, %v1811
  %v1813 = vpop.f32.mrb[0].mxu0
  %v1814 = vpop.f32.mrb[0].mxu0
  %v1815 = vadd.f32 0.0, %v1814
  %v1816 = vpop.f32.mrb[0].mxu0
  %1817 = vmatprep.mubr.bf16.mxu0 0
  %1818 = vmatmul.mubr.bf16.gmra.mrb[0].mxu0 %v1679
  %v1819 = vpop.f32.mrb[0].mxu0
  %v1820 = vadd.f32 0.0, %v1819
  %v1821 = vpop.f32.mrb[0].mxu0
  %v1822 = vpop.f32.mrb[0].mxu0
  %v1823 = vadd.f32 0.0, %v1822
  %v1824 = vpop.f32.mrb[0].mxu0
  %1825 = vmatprep.mubr.bf16.mxu0 0
  %1826 = vmatmul.mubr.bf16.gmra.mrb[0].mxu0 %v1680
  %v1827 = vpop.f32.mrb[0].mxu0
  %v1828 = vadd.f32 0.0, %v1827
  %v1829 = vpop.f32.mrb[0].mxu0
  %v1830 = vpop.f32.mrb[0].mxu0
  %v1831 = vadd.f32 0.0, %v1830
  %v1832 = vpop.f32.mrb[0].mxu0
  %1833 = vdwg.mxu0
  %1834 = vst [vmem:[%s5] sm:$0xff] %v1772
  %1835 = vst [vmem:[%s5 + $0x8] sm:$0xff] %v1775
  %1836 = vst [vmem:[%s5 + $0x10] sm:$0xff] %v1780
  %1837 = vst [vmem:[%s5 + $0x18] sm:$0xff] %v1783
  %1838 = vst [vmem:[%s5 + $0x20] sm:$0xff] %v1788
  %1839 = vst [vmem:[%s5 + $0x28] sm:$0xff] %v1791
  %1840 = vst [vmem:[%s5 + $0x30] sm:$0xff] %v1796
  %1841 = vst [vmem:[%s5 + $0x38] sm:$0xff] %v1799
  %1842 = vst [vmem:[%s5 + $0x40] sm:$0xff] %v1804
  %1843 = vst [vmem:[%s5 + $0x48] sm:$0xff] %v1807
  %1844 = vst [vmem:[%s5 + $0x50] sm:$0xff] %v1812
  %1845 = vst [vmem:[%s5 + $0x58] sm:$0xff] %v1815
  %1846 = vst [vmem:[%s5 + $0x60] sm:$0xff] %v1820
  %1847 = vst [vmem:[%s5 + $0x68] sm:$0xff] %v1823
  %1848 = vst [vmem:[%s5 + $0x70] sm:$0xff] %v1828
  %1849 = vst [vmem:[%s5 + $0x78] sm:$0xff] %v1831
  %v1850 = vadd.f32 %v1772, %v1775
  %v1851 = vadd.f32 %v1850, %v1780
  %v1852 = vadd.f32 %v1851, %v1783
  %v1853 = vadd.f32 %v1852, %v1788
  %v1854 = vadd.f32 %v1853, %v1791
  %v1855 = vadd.f32 %v1854, %v1796
  %v1856 = vadd.f32 %v1855, %v1799
  %v1857 = vadd.f32 %v1856, %v1804
  %v1858 = vadd.f32 %v1857, %v1807
  %v1859 = vadd.f32 %v1858, %v1812
  %v1860 = vadd.f32 %v1859, %v1815
  %v1861 = vadd.f32 %v1860, %v1820
  %v1862 = vadd.f32 %v1861, %v1823
  %v1863 = vadd.f32 %v1862, %v1828
  %v1864 = vadd.f32 %v1863, %v1831
  %v1865 = vrot.slane %v1864, 4
  %v1866 = vadd.f32 %v1864, %v1865
  %v1867 = vrot.slane %v1866, 2
  %v1868 = vadd.f32 %v1866, %v1867
  %v1869 = vrot.slane %v1868, 1
  %v1870 = vadd.f32 %v1868, %v1869
  %v1871 = vmul.f32 %v1772, %v1772
  %v1872 = vmul.f32 %v1775, %v1775
  %v1873 = vmul.f32 %v1780, %v1780
  %v1874 = vmul.f32 %v1783, %v1783
  %v1875 = vmul.f32 %v1788, %v1788
  %v1876 = vmul.f32 %v1791, %v1791
  %v1877 = vmul.f32 %v1796, %v1796
  %v1878 = vmul.f32 %v1799, %v1799
  %v1879 = vmul.f32 %v1804, %v1804
  %v1880 = vmul.f32 %v1807, %v1807
  %v1881 = vmul.f32 %v1812, %v1812
  %v1882 = vmul.f32 %v1815, %v1815
  %v1883 = vmul.f32 %v1820, %v1820
  %v1884 = vmul.f32 %v1823, %v1823
  %v1885 = vmul.f32 %v1828, %v1828
  %v1886 = vmul.f32 %v1831, %v1831
  %v1887 = vadd.f32 %v1871, %v1872
  %v1888 = vadd.f32 %v1887, %v1873
  %v1889 = vadd.f32 %v1888, %v1874
  %v1890 = vadd.f32 %v1889, %v1875
  %v1891 = vadd.f32 %v1890, %v1876
  %v1892 = vadd.f32 %v1891, %v1877
  %v1893 = vadd.f32 %v1892, %v1878
  %v1894 = vadd.f32 %v1893, %v1879
  %v1895 = vadd.f32 %v1894, %v1880
  %v1896 = vadd.f32 %v1895, %v1881
  %v1897 = vadd.f32 %v1896, %v1882
  %v1898 = vadd.f32 %v1897, %v1883
  %v1899 = vadd.f32 %v1898, %v1884
  %v1900 = vadd.f32 %v1899, %v1885
  %v1901 = vadd.f32 %v1900, %v1886
  %v1902 = vrot.slane %v1901, 4
  %v1903 = vadd.f32 %v1901, %v1902
  %v1904 = vrot.slane %v1903, 2
  %v1905 = vadd.f32 %v1903, %v1904
  %v1906 = vrot.slane %v1905, 1
  %v1907 = vadd.f32 %v1905, %v1906
  %1908 = vst [vmem:[%s8] sm:$0xff] %v1870
  %1909 = vst [vmem:[%s9] sm:$0xff] %v1907
  // Predicated region
  $region18: #{basic_block.4} parent=0 // pred_check
    _
  $region19: #{basic_block.4} parent=0 // pred_check_branch
    %1911 = sbr.rel (0) target = $region21
  $region20: #{basic_block.4} parent=0 // pred_region
    _
  $region21: #{basic_block.4} parent=0 // pred_fallthru
    _
  // Predicated region
  $region22: #{basic_block.4} parent=0 // pred_check
    _
  $region23: #{basic_block.4} parent=0 // pred_check_branch
    %1913 = sbr.rel (0) target = $region25
  $region24: #{basic_block.4} parent=0 // pred_region
    _
  $region25: #{basic_block.4} parent=0 // pred_fallthru
    _
  // Predicated region
  $region26: #{basic_block.4} parent=0 // pred_check
    _
  $region27: #{basic_block.4} parent=0 // pred_check_branch
    %1915 = sbr.rel (0) target = $region29
  $region28: #{basic_block.4} parent=0 // pred_region
    _
  $region29: #{basic_block.4} parent=0 // pred_fallthru
    _
  // Predicated region
  $region30: #{basic_block.4} parent=0 // pred_check
    _
  $region31: #{basic_block.4} parent=0 // pred_check_branch
    %1917 = sbr.rel (0) target = $region33
  $region32: #{basic_block.4} parent=0 // pred_region
    _
  $region33: #{basic_block.4} parent=0 // pred_fallthru
    _
  // Predicated region
  $region34: #{basic_block.4} parent=0 // pred_check
    _
  $region35: #{basic_block.4} parent=0 // pred_check_branch
    %1919 = sbr.rel (0) target = $region37
  $region36: #{basic_block.4} parent=0 // pred_region
    _
  $region37: #{basic_block.4} parent=0 // pred_fallthru
    _
  // Predicated region
  $region38: #{basic_block.4} parent=0 // pred_check
    _
  $region39: #{basic_block.4} parent=0 // pred_check_branch
    %1921 = sbr.rel (0) target = $region41
  $region40: #{basic_block.4} parent=0 // pred_region
    _
  $region41: #{basic_block.4} parent=0 // pred_fallthru
    _
  // Predicated region
  $region42: #{basic_block.4} parent=0 // pred_check
    _
  $region43: #{basic_block.4} parent=0 // pred_check_branch
    %1923 = sbr.rel (0) target = $region45
  $region44: #{basic_block.4} parent=0 // pred_region
    _
  $region45: #{basic_block.4} parent=0 // pred_fallthru
    _
  // Predicated region
  $region46: #{basic_block.4} parent=0 // pred_check
    _
  $region47: #{basic_block.4} parent=0 // pred_check_branch
    %1925 = sbr.rel (0) target = $region49
  $region48: #{basic_block.4} parent=0 // pred_region
    _
  $region49: #{basic_block.4} parent=0 // pred_fallthru
    _
  // Predicated region
  $region50: #{basic_block.4} parent=0 // pred_check
    _
  $region51: #{basic_block.4} parent=0 // pred_check_branch
    %1927 = sbr.rel (0) target = $region53
  $region52: #{basic_block.4} parent=0 // pred_region
    _
  $region53: #{basic_block.4} parent=0 // pred_fallthru
    _
  // Predicated region
  $region54: #{basic_block.4} parent=0 // pred_check
    _
  $region55: #{basic_block.4} parent=0 // pred_check_branch
    %1929 = sbr.rel (0) target = $region57
  $region56: #{basic_block.4} parent=0 // pred_region
    _
  $region57: #{basic_block.4} parent=0 // pred_fallthru
    _
  // Predicated region
  $region58: #{basic_block.4} parent=0 // pred_check
    _
  $region59: #{basic_block.4} parent=0 // pred_check_branch
    %1931 = sbr.rel (0) target = $region61
  $region60: #{basic_block.4} parent=0 // pred_region
    _
  $region61: #{basic_block.4} parent=0 // pred_fallthru
    _
  // Predicated region
  $region62: #{basic_block.4} parent=0 // pred_check
    _
  $region63: #{basic_block.4} parent=0 // pred_check_branch
    %1933 = sbr.rel (0) target = $region65
  $region64: #{basic_block.4} parent=0 // pred_region
    _
  $region65: #{basic_block.4} parent=0 // pred_fallthru
    _

// kernel: basic_block.6
$region0: #{basic_block.6}
  #allocation0 [shape = 'u32[]', space=smem, size = 0x4, offset = 0x4, fixed_abs, tag = 'smem constant byte address 0x4 - core index']
  #allocation1 [shape = 'u32[144,128]{1,0:T(1,128)}', space=vmem, size = 0x12000, scoped, tag = 'internal scratch']
  %s0 = inlined_call_operand.vmem [shape: bf16[128,1152], index: 0, kind: input, shape index: {}]
  %s1 = inlined_call_operand.vmem [shape: bf16[1152,128], index: 1, kind: input, shape index: {}]
  %s2 = inlined_call_operand.vmem [shape: f32[128,128], index: 2, kind: output, shape index: {0}]
  %s3 = inlined_call_operand.vmem [shape: f32[1,8,128], index: 3, kind: output, shape index: {1}]
  %s4 = inlined_call_operand.vmem [shape: f32[1,8,128], index: 4, kind: output, shape index: {2}]
  %5 = xla_tuple %s2, %s3, %s4
  %s6 = sld [smem:[#allocation0]]
  $region34: #{basic_block.6} parent=0
    _
  %s8 = ssub.s32 1, %s6
  %s9 = scalar_select 0, %s8, %s6
  // Predicated region
  $region2: #{basic_block.6} parent=0 // pred_check
    _
  $region3: #{basic_block.6} parent=0 // pred_check_branch
    %11 = sbr.rel (0) target = $region5
  $region4: #{basic_block.6} parent=0 // pred_region
    _
  $region5: #{basic_block.6} parent=0 // pred_fallthru
    _
  // Predicated region
  $region6: #{basic_block.6} parent=0 // pred_check
    _
  $region7: #{basic_block.6} parent=0 // pred_check_branch
    %13 = sbr.rel (0) target = $region9
  $region8: #{basic_block.6} parent=0 // pred_region
    _
  $region9: #{basic_block.6} parent=0 // pred_fallthru
    _
  %v15 = vld [vmem:[%s0] sm:$0xff]
  %v16 = vld [vmem:[%s0 + $0x8] sm:$0xff]
  %v17 = vld [vmem:[%s0 + $0x10] sm:$0xff]
  %v18 = vld [vmem:[%s0 + $0x18] sm:$0xff]
  %v19 = vld [vmem:[%s0 + $0x20] sm:$0xf]
  %v20 = vld [vmem:[%s0 + $0x24] sm:$0xff]
  %v21 = vld [vmem:[%s0 + $0x2c] sm:$0xff]
  %v22 = vld [vmem:[%s0 + $0x34] sm:$0xff]
  %v23 = vld [vmem:[%s0 + $0x3c] sm:$0xff]
  %v24 = vld [vmem:[%s0 + $0x44] sm:$0xf]
  %v25 = vld [vmem:[%s0 + $0x48] sm:$0xff]
  %v26 = vld [vmem:[%s0 + $0x50] sm:$0xff]
  %v27 = vld [vmem:[%s0 + $0x58] sm:$0xff]
  %v28 = vld [vmem:[%s0 + $0x60] sm:$0xff]
  %v29 = vld [vmem:[%s0 + $0x68] sm:$0xf]
  %v30 = vld [vmem:[%s0 + $0x6c] sm:$0xff]
  %v31 = vld [vmem:[%s0 + $0x74] sm:$0xff]
  %v32 = vld [vmem:[%s0 + $0x7c] sm:$0xff]
  %v33 = vld [vmem:[%s0 + $0x84] sm:$0xff]
  %v34 = vld [vmem:[%s0 + $0x8c] sm:$0xf]
  %v35 = vld [vmem:[%s0 + $0x90] sm:$0xff]
  %v36 = vld [vmem:[%s0 + $0x98] sm:$0xff]
  %v37 = vld [vmem:[%s0 + $0xa0] sm:$0xff]
  %v38 = vld [vmem:[%s0 + $0xa8] sm:$0xff]
  %v39 = vld [vmem:[%s0 + $0xb0] sm:$0xf]
  %v40 = vld [vmem:[%s0 + $0xb4] sm:$0xff]
  %v41 = vld [vmem:[%s0 + $0xbc] sm:$0xff]
  %v42 = vld [vmem:[%s0 + $0xc4] sm:$0xff]
  %v43 = vld [vmem:[%s0 + $0xcc] sm:$0xff]
  %v44 = vld [vmem:[%s0 + $0xd4] sm:$0xf]
  %v45 = vld [vmem:[%s0 + $0xd8] sm:$0xff]
  %v46 = vld [vmem:[%s0 + $0xe0] sm:$0xff]
  %v47 = vld [vmem:[%s0 + $0xe8] sm:$0xff]
  %v48 = vld [vmem:[%s0 + $0xf0] sm:$0xff]
  %v49 = vld [vmem:[%s0 + $0xf8] sm:$0xf]
  %v50 = vld [vmem:[%s0 + $0xfc] sm:$0xff]
  %v51 = vld [vmem:[%s0 + $0x104] sm:$0xff]
  %v52 = vld [vmem:[%s0 + $0x10c] sm:$0xff]
  %v53 = vld [vmem:[%s0 + $0x114] sm:$0xff]
  %v54 = vld [vmem:[%s0 + $0x11c] sm:$0xf]
  %v55 = vld [vmem:[%s0 + $0x120] sm:$0xff]
  %v56 = vld [vmem:[%s0 + $0x128] sm:$0xff]
  %v57 = vld [vmem:[%s0 + $0x130] sm:$0xff]
  %v58 = vld [vmem:[%s0 + $0x138] sm:$0xff]
  %v59 = vld [vmem:[%s0 + $0x140] sm:$0xf]
  %v60 = vld [vmem:[%s0 + $0x144] sm:$0xff]
  %v61 = vld [vmem:[%s0 + $0x14c] sm:$0xff]
  %v62 = vld [vmem:[%s0 + $0x154] sm:$0xff]
  %v63 = vld [vmem:[%s0 + $0x15c] sm:$0xff]
  %v64 = vld [vmem:[%s0 + $0x164] sm:$0xf]
  %v65 = vld [vmem:[%s0 + $0x168] sm:$0xff]
  %v66 = vld [vmem:[%s0 + $0x170] sm:$0xff]
  %v67 = vld [vmem:[%s0 + $0x178] sm:$0xff]
  %v68 = vld [vmem:[%s0 + $0x180] sm:$0xff]
  %v69 = vld [vmem:[%s0 + $0x188] sm:$0xf]
  %v70 = vld [vmem:[%s0 + $0x18c] sm:$0xff]
  %v71 = vld [vmem:[%s0 + $0x194] sm:$0xff]
  %v72 = vld [vmem:[%s0 + $0x19c] sm:$0xff]
  %v73 = vld [vmem:[%s0 + $0x1a4] sm:$0xff]
  %v74 = vld [vmem:[%s0 + $0x1ac] sm:$0xf]
  %v75 = vld [vmem:[%s0 + $0x1b0] sm:$0xff]
  %v76 = vld [vmem:[%s0 + $0x1b8] sm:$0xff]
  %v77 = vld [vmem:[%s0 + $0x1c0] sm:$0xff]
  %v78 = vld [vmem:[%s0 + $0x1c8] sm:$0xff]
  %v79 = vld [vmem:[%s0 + $0x1d0] sm:$0xf]
  %v80 = vld [vmem:[%s0 + $0x1d4] sm:$0xff]
  %v81 = vld [vmem:[%s0 + $0x1dc] sm:$0xff]
  %v82 = vld [vmem:[%s0 + $0x1e4] sm:$0xff]
  %v83 = vld [vmem:[%s0 + $0x1ec] sm:$0xff]
  %v84 = vld [vmem:[%s0 + $0x1f4] sm:$0xf]
  %v85 = vld [vmem:[%s0 + $0x1f8] sm:$0xff]
  %v86 = vld [vmem:[%s0 + $0x200] sm:$0xff]
  %v87 = vld [vmem:[%s0 + $0x208] sm:$0xff]
  %v88 = vld [vmem:[%s0 + $0x210] sm:$0xff]
  %v89 = vld [vmem:[%s0 + $0x218] sm:$0xf]
  %v90 = vld [vmem:[%s0 + $0x21c] sm:$0xff]
  %v91 = vld [vmem:[%s0 + $0x224] sm:$0xff]
  %v92 = vld [vmem:[%s0 + $0x22c] sm:$0xff]
  %v93 = vld [vmem:[%s0 + $0x234] sm:$0xff]
  %v94 = vld [vmem:[%s0 + $0x23c] sm:$0xf]
  %v95 = vld [vmem:[%s1] sm:$0xf]
  %v96 = vld [vmem:[%s1 + $0x4] sm:$0xf]
  %v97 = vld [vmem:[%s1 + $0x8] sm:$0xf]
  %v98 = vld [vmem:[%s1 + $0xc] sm:$0xf]
  %v99 = vld [vmem:[%s1 + $0x10] sm:$0xf]
  %v100 = vld [vmem:[%s1 + $0x14] sm:$0xf]
  %v101 = vld [vmem:[%s1 + $0x18] sm:$0xf]
  %v102 = vld [vmem:[%s1 + $0x1c] sm:$0xf]
  %v103 = vld [vmem:[%s1 + $0x20] sm:$0xf]
  %v104 = vld [vmem:[%s1 + $0x24] sm:$0xf]
  %v105 = vld [vmem:[%s1 + $0x28] sm:$0xf]
  %v106 = vld [vmem:[%s1 + $0x2c] sm:$0xf]
  %v107 = vld [vmem:[%s1 + $0x30] sm:$0xf]
  %v108 = vld [vmem:[%s1 + $0x34] sm:$0xf]
  %v109 = vld [vmem:[%s1 + $0x38] sm:$0xf]
  %v110 = vld [vmem:[%s1 + $0x3c] sm:$0xf]
  %v111 = vld [vmem:[%s1 + $0x40] sm:$0xf]
  %v112 = vld [vmem:[%s1 + $0x44] sm:$0xf]
  %v113 = vld [vmem:[%s1 + $0x48] sm:$0xf]
  %v114 = vld [vmem:[%s1 + $0x4c] sm:$0xf]
  %v115 = vld [vmem:[%s1 + $0x50] sm:$0xf]
  %v116 = vld [vmem:[%s1 + $0x54] sm:$0xf]
  %v117 = vld [vmem:[%s1 + $0x58] sm:$0xf]
  %v118 = vld [vmem:[%s1 + $0x5c] sm:$0xf]
  %v119 = vld [vmem:[%s1 + $0x60] sm:$0xf]
  %v120 = vld [vmem:[%s1 + $0x64] sm:$0xf]
  %v121 = vld [vmem:[%s1 + $0x68] sm:$0xf]
  %v122 = vld [vmem:[%s1 + $0x6c] sm:$0xf]
  %v123 = vld [vmem:[%s1 + $0x70] sm:$0xf]
  %v124 = vld [vmem:[%s1 + $0x74] sm:$0xf]
  %v125 = vld [vmem:[%s1 + $0x78] sm:$0xf]
  %v126 = vld [vmem:[%s1 + $0x7c] sm:$0xf]
  %v127 = vld [vmem:[%s1 + $0x80] sm:$0xf]
  %v128 = vld [vmem:[%s1 + $0x84] sm:$0xf]
  %v129 = vld [vmem:[%s1 + $0x88] sm:$0xf]
  %v130 = vld [vmem:[%s1 + $0x8c] sm:$0xf]
  %v131 = vld [vmem:[%s1 + $0x90] sm:$0xf]
  %v132 = vld [vmem:[%s1 + $0x94] sm:$0xf]
  %v133 = vld [vmem:[%s1 + $0x98] sm:$0xf]
  %v134 = vld [vmem:[%s1 + $0x9c] sm:$0xf]
  %v135 = vld [vmem:[%s1 + $0xa0] sm:$0xf]
  %v136 = vld [vmem:[%s1 + $0xa4] sm:$0xf]
  %v137 = vld [vmem:[%s1 + $0xa8] sm:$0xf]
  %v138 = vld [vmem:[%s1 + $0xac] sm:$0xf]
  %v139 = vld [vmem:[%s1 + $0xb0] sm:$0xf]
  %v140 = vld [vmem:[%s1 + $0xb4] sm:$0xf]
  %v141 = vld [vmem:[%s1 + $0xb8] sm:$0xf]
  %v142 = vld [vmem:[%s1 + $0xbc] sm:$0xf]
  %v143 = vld [vmem:[%s1 + $0xc0] sm:$0xf]
  %v144 = vld [vmem:[%s1 + $0xc4] sm:$0xf]
  %v145 = vld [vmem:[%s1 + $0xc8] sm:$0xf]
  %v146 = vld [vmem:[%s1 + $0xcc] sm:$0xf]
  %v147 = vld [vmem:[%s1 + $0xd0] sm:$0xf]
  %v148 = vld [vmem:[%s1 + $0xd4] sm:$0xf]
  %v149 = vld [vmem:[%s1 + $0xd8] sm:$0xf]
  %v150 = vld [vmem:[%s1 + $0xdc] sm:$0xf]
  %v151 = vld [vmem:[%s1 + $0xe0] sm:$0xf]
  %v152 = vld [vmem:[%s1 + $0xe4] sm:$0xf]
  %v153 = vld [vmem:[%s1 + $0xe8] sm:$0xf]
  %v154 = vld [vmem:[%s1 + $0xec] sm:$0xf]
  %v155 = vld [vmem:[%s1 + $0xf0] sm:$0xf]
  %v156 = vld [vmem:[%s1 + $0xf4] sm:$0xf]
  %v157 = vld [vmem:[%s1 + $0xf8] sm:$0xf]
  %v158 = vld [vmem:[%s1 + $0xfc] sm:$0xf]
  %v159 = vld [vmem:[%s1 + $0x100] sm:$0xf]
  %v160 = vld [vmem:[%s1 + $0x104] sm:$0xf]
  %v161 = vld [vmem:[%s1 + $0x108] sm:$0xf]
  %v162 = vld [vmem:[%s1 + $0x10c] sm:$0xf]
  %v163 = vld [vmem:[%s1 + $0x110] sm:$0xf]
  %v164 = vld [vmem:[%s1 + $0x114] sm:$0xf]
  %v165 = vld [vmem:[%s1 + $0x118] sm:$0xf]
  %v166 = vld [vmem:[%s1 + $0x11c] sm:$0xf]
  %v167 = vld [vmem:[%s1 + $0x120] sm:$0xf]
  %v168 = vld [vmem:[%s1 + $0x124] sm:$0xf]
  %v169 = vld [vmem:[%s1 + $0x128] sm:$0xf]
  %v170 = vld [vmem:[%s1 + $0x12c] sm:$0xf]
  %v171 = vld [vmem:[%s1 + $0x130] sm:$0xf]
  %v172 = vld [vmem:[%s1 + $0x134] sm:$0xf]
  %v173 = vld [vmem:[%s1 + $0x138] sm:$0xf]
  %v174 = vld [vmem:[%s1 + $0x13c] sm:$0xf]
  %v175 = vld [vmem:[%s1 + $0x140] sm:$0xf]
  %v176 = vld [vmem:[%s1 + $0x144] sm:$0xf]
  %v177 = vld [vmem:[%s1 + $0x148] sm:$0xf]
  %v178 = vld [vmem:[%s1 + $0x14c] sm:$0xf]
  %v179 = vld [vmem:[%s1 + $0x150] sm:$0xf]
  %v180 = vld [vmem:[%s1 + $0x154] sm:$0xf]
  %v181 = vld [vmem:[%s1 + $0x158] sm:$0xf]
  %v182 = vld [vmem:[%s1 + $0x15c] sm:$0xf]
  %v183 = vld [vmem:[%s1 + $0x160] sm:$0xf]
  %v184 = vld [vmem:[%s1 + $0x164] sm:$0xf]
  %v185 = vld [vmem:[%s1 + $0x168] sm:$0xf]
  %v186 = vld [vmem:[%s1 + $0x16c] sm:$0xf]
  %v187 = vld [vmem:[%s1 + $0x170] sm:$0xf]
  %v188 = vld [vmem:[%s1 + $0x174] sm:$0xf]
  %v189 = vld [vmem:[%s1 + $0x178] sm:$0xf]
  %v190 = vld [vmem:[%s1 + $0x17c] sm:$0xf]
  %v191 = vld [vmem:[%s1 + $0x180] sm:$0xf]
  %v192 = vld [vmem:[%s1 + $0x184] sm:$0xf]
  %v193 = vld [vmem:[%s1 + $0x188] sm:$0xf]
  %v194 = vld [vmem:[%s1 + $0x18c] sm:$0xf]
  %v195 = vld [vmem:[%s1 + $0x190] sm:$0xf]
  %v196 = vld [vmem:[%s1 + $0x194] sm:$0xf]
  %v197 = vld [vmem:[%s1 + $0x198] sm:$0xf]
  %v198 = vld [vmem:[%s1 + $0x19c] sm:$0xf]
  %v199 = vld [vmem:[%s1 + $0x1a0] sm:$0xf]
  %v200 = vld [vmem:[%s1 + $0x1a4] sm:$0xf]
  %v201 = vld [vmem:[%s1 + $0x1a8] sm:$0xf]
  %v202 = vld [vmem:[%s1 + $0x1ac] sm:$0xf]
  %v203 = vld [vmem:[%s1 + $0x1b0] sm:$0xf]
  %v204 = vld [vmem:[%s1 + $0x1b4] sm:$0xf]
  %v205 = vld [vmem:[%s1 + $0x1b8] sm:$0xf]
  %v206 = vld [vmem:[%s1 + $0x1bc] sm:$0xf]
  %v207 = vld [vmem:[%s1 + $0x1c0] sm:$0xf]
  %v208 = vld [vmem:[%s1 + $0x1c4] sm:$0xf]
  %v209 = vld [vmem:[%s1 + $0x1c8] sm:$0xf]
  %v210 = vld [vmem:[%s1 + $0x1cc] sm:$0xf]
  %v211 = vld [vmem:[%s1 + $0x1d0] sm:$0xf]
  %v212 = vld [vmem:[%s1 + $0x1d4] sm:$0xf]
  %v213 = vld [vmem:[%s1 + $0x1d8] sm:$0xf]
  %v214 = vld [vmem:[%s1 + $0x1dc] sm:$0xf]
  %v215 = vld [vmem:[%s1 + $0x1e0] sm:$0xf]
  %v216 = vld [vmem:[%s1 + $0x1e4] sm:$0xf]
  %v217 = vld [vmem:[%s1 + $0x1e8] sm:$0xf]
  %v218 = vld [vmem:[%s1 + $0x1ec] sm:$0xf]
  %v219 = vld [vmem:[%s1 + $0x1f0] sm:$0xf]
  %v220 = vld [vmem:[%s1 + $0x1f4] sm:$0xf]
  %v221 = vld [vmem:[%s1 + $0x1f8] sm:$0xf]
  %v222 = vld [vmem:[%s1 + $0x1fc] sm:$0xf]
  %v223 = vld [vmem:[%s1 + $0x200] sm:$0xf]
  %v224 = vld [vmem:[%s1 + $0x204] sm:$0xf]
  %v225 = vld [vmem:[%s1 + $0x208] sm:$0xf]
  %v226 = vld [vmem:[%s1 + $0x20c] sm:$0xf]
  %v227 = vld [vmem:[%s1 + $0x210] sm:$0xf]
  %v228 = vld [vmem:[%s1 + $0x214] sm:$0xf]
  %v229 = vld [vmem:[%s1 + $0x218] sm:$0xf]
  %v230 = vld [vmem:[%s1 + $0x21c] sm:$0xf]
  %v231 = vld [vmem:[%s1 + $0x220] sm:$0xf]
  %v232 = vld [vmem:[%s1 + $0x224] sm:$0xf]
  %v233 = vld [vmem:[%s1 + $0x228] sm:$0xf]
  %v234 = vld [vmem:[%s1 + $0x22c] sm:$0xf]
  %v235 = vld [vmem:[%s1 + $0x230] sm:$0xf]
  %v236 = vld [vmem:[%s1 + $0x234] sm:$0xf]
  %v237 = vld [vmem:[%s1 + $0x238] sm:$0xf]
  %v238 = vld [vmem:[%s1 + $0x23c] sm:$0xf]
  %v319 = vunpack.c.l.b16 %v15
  %v320 = vunpack.c.h.b16 %v15
  %v321 = vunpack.c.l.b16 %v16
  %v322 = vunpack.c.h.b16 %v16
  %v323 = vunpack.c.l.b16 %v17
  %v324 = vunpack.c.h.b16 %v17
  %v325 = vunpack.c.l.b16 %v18
  %v326 = vunpack.c.h.b16 %v18
  %v327 = vunpack.c.l.b16 %v19
  %v328 = vunpack.c.l.b16 %v20
  %v329 = vunpack.c.h.b16 %v20
  %v330 = vunpack.c.l.b16 %v21
  %v331 = vunpack.c.h.b16 %v21
  %v332 = vunpack.c.l.b16 %v22
  %v333 = vunpack.c.h.b16 %v22
  %v334 = vunpack.c.l.b16 %v23
  %v335 = vunpack.c.h.b16 %v23
  %v336 = vunpack.c.l.b16 %v24
  %v337 = vunpack.c.l.b16 %v25
  %v338 = vunpack.c.h.b16 %v25
  %v339 = vunpack.c.l.b16 %v26
  %v340 = vunpack.c.h.b16 %v26
  %v341 = vunpack.c.l.b16 %v27
  %v342 = vunpack.c.h.b16 %v27
  %v343 = vunpack.c.l.b16 %v28
  %v344 = vunpack.c.h.b16 %v28
  %v345 = vunpack.c.l.b16 %v29
  %v346 = vunpack.c.l.b16 %v30
  %v347 = vunpack.c.h.b16 %v30
  %v348 = vunpack.c.l.b16 %v31
  %v349 = vunpack.c.h.b16 %v31
  %v350 = vunpack.c.l.b16 %v32
  %v351 = vunpack.c.h.b16 %v32
  %v352 = vunpack.c.l.b16 %v33
  %v353 = vunpack.c.h.b16 %v33
  %v354 = vunpack.c.l.b16 %v34
  %v355 = vunpack.c.l.b16 %v35
  %v356 = vunpack.c.h.b16 %v35
  %v357 = vunpack.c.l.b16 %v36
  %v358 = vunpack.c.h.b16 %v36
  %v359 = vunpack.c.l.b16 %v37
  %v360 = vunpack.c.h.b16 %v37
  %v361 = vunpack.c.l.b16 %v38
  %v362 = vunpack.c.h.b16 %v38
  %v363 = vunpack.c.l.b16 %v39
  %v364 = vunpack.c.l.b16 %v40
  %v365 = vunpack.c.h.b16 %v40
  %v366 = vunpack.c.l.b16 %v41
  %v367 = vunpack.c.h.b16 %v41
  %v368 = vunpack.c.l.b16 %v42
  %v369 = vunpack.c.h.b16 %v42
  %v370 = vunpack.c.l.b16 %v43
  %v371 = vunpack.c.h.b16 %v43
  %v372 = vunpack.c.l.b16 %v44
  %v373 = vunpack.c.l.b16 %v45
  %v374 = vunpack.c.h.b16 %v45
  %v375 = vunpack.c.l.b16 %v46
  %v376 = vunpack.c.h.b16 %v46
  %v377 = vunpack.c.l.b16 %v47
  %v378 = vunpack.c.h.b16 %v47
  %v379 = vunpack.c.l.b16 %v48
  %v380 = vunpack.c.h.b16 %v48
  %v381 = vunpack.c.l.b16 %v49
  %v382 = vunpack.c.l.b16 %v50
  %v383 = vunpack.c.h.b16 %v50
  %v384 = vunpack.c.l.b16 %v51
  %v385 = vunpack.c.h.b16 %v51
  %v386 = vunpack.c.l.b16 %v52
  %v387 = vunpack.c.h.b16 %v52
  %v388 = vunpack.c.l.b16 %v53
  %v389 = vunpack.c.h.b16 %v53
  %v390 = vunpack.c.l.b16 %v54
  %v391 = vunpack.c.l.b16 %v55
  %v392 = vunpack.c.h.b16 %v55
  %v393 = vunpack.c.l.b16 %v56
  %v394 = vunpack.c.h.b16 %v56
  %v395 = vunpack.c.l.b16 %v57
  %v396 = vunpack.c.h.b16 %v57
  %v397 = vunpack.c.l.b16 %v58
  %v398 = vunpack.c.h.b16 %v58
  %v399 = vunpack.c.l.b16 %v59
  %v400 = vunpack.c.l.b16 %v60
  %v401 = vunpack.c.h.b16 %v60
  %v402 = vunpack.c.l.b16 %v61
  %v403 = vunpack.c.h.b16 %v61
  %v404 = vunpack.c.l.b16 %v62
  %v405 = vunpack.c.h.b16 %v62
  %v406 = vunpack.c.l.b16 %v63
  %v407 = vunpack.c.h.b16 %v63
  %v408 = vunpack.c.l.b16 %v64
  %v409 = vunpack.c.l.b16 %v65
  %v410 = vunpack.c.h.b16 %v65
  %v411 = vunpack.c.l.b16 %v66
  %v412 = vunpack.c.h.b16 %v66
  %v413 = vunpack.c.l.b16 %v67
  %v414 = vunpack.c.h.b16 %v67
  %v415 = vunpack.c.l.b16 %v68
  %v416 = vunpack.c.h.b16 %v68
  %v417 = vunpack.c.l.b16 %v69
  %v418 = vunpack.c.l.b16 %v70
  %v419 = vunpack.c.h.b16 %v70
  %v420 = vunpack.c.l.b16 %v71
  %v421 = vunpack.c.h.b16 %v71
  %v422 = vunpack.c.l.b16 %v72
  %v423 = vunpack.c.h.b16 %v72
  %v424 = vunpack.c.l.b16 %v73
  %v425 = vunpack.c.h.b16 %v73
  %v426 = vunpack.c.l.b16 %v74
  %v427 = vunpack.c.l.b16 %v75
  %v428 = vunpack.c.h.b16 %v75
  %v429 = vunpack.c.l.b16 %v76
  %v430 = vunpack.c.h.b16 %v76
  %v431 = vunpack.c.l.b16 %v77
  %v432 = vunpack.c.h.b16 %v77
  %v433 = vunpack.c.l.b16 %v78
  %v434 = vunpack.c.h.b16 %v78
  %v435 = vunpack.c.l.b16 %v79
  %v436 = vunpack.c.l.b16 %v80
  %v437 = vunpack.c.h.b16 %v80
  %v438 = vunpack.c.l.b16 %v81
  %v439 = vunpack.c.h.b16 %v81
  %v440 = vunpack.c.l.b16 %v82
  %v441 = vunpack.c.h.b16 %v82
  %v442 = vunpack.c.l.b16 %v83
  %v443 = vunpack.c.h.b16 %v83
  %v444 = vunpack.c.l.b16 %v84
  %v445 = vunpack.c.l.b16 %v85
  %v446 = vunpack.c.h.b16 %v85
  %v447 = vunpack.c.l.b16 %v86
  %v448 = vunpack.c.h.b16 %v86
  %v449 = vunpack.c.l.b16 %v87
  %v450 = vunpack.c.h.b16 %v87
  %v451 = vunpack.c.l.b16 %v88
  %v452 = vunpack.c.h.b16 %v88
  %v453 = vunpack.c.l.b16 %v89
  %v454 = vunpack.c.l.b16 %v90
  %v455 = vunpack.c.h.b16 %v90
  %v456 = vunpack.c.l.b16 %v91
  %v457 = vunpack.c.h.b16 %v91
  %v458 = vunpack.c.l.b16 %v92
  %v459 = vunpack.c.h.b16 %v92
  %v460 = vunpack.c.l.b16 %v93
  %v461 = vunpack.c.h.b16 %v93
  %v462 = vunpack.c.l.b16 %v94
  %v463 = vpack.c.b16 %v328, %v319
  %v464 = vpack.c.b16 %v329, %v320
  %v465 = vpack.c.b16 %v330, %v321
  %v466 = vpack.c.b16 %v331, %v322
  %v467 = vpack.c.b16 %v332, %v323
  %v468 = vpack.c.b16 %v333, %v324
  %v469 = vpack.c.b16 %v334, %v325
  %v470 = vpack.c.b16 %v335, %v326
  %v471 = vpack.c.b16 %v336, %v327
  %v472 = vpack.c.b16 %v346, %v337
  %v473 = vpack.c.b16 %v347, %v338
  %v474 = vpack.c.b16 %v348, %v339
  %v475 = vpack.c.b16 %v349, %v340
  %v476 = vpack.c.b16 %v350, %v341
  %v477 = vpack.c.b16 %v351, %v342
  %v478 = vpack.c.b16 %v352, %v343
  %v479 = vpack.c.b16 %v353, %v344
  %v480 = vpack.c.b16 %v354, %v345
  %v481 = vpack.c.b16 %v364, %v355
  %v482 = vpack.c.b16 %v365, %v356
  %v483 = vpack.c.b16 %v366, %v357
  %v484 = vpack.c.b16 %v367, %v358
  %v485 = vpack.c.b16 %v368, %v359
  %v486 = vpack.c.b16 %v369, %v360
  %v487 = vpack.c.b16 %v370, %v361
  %v488 = vpack.c.b16 %v371, %v362
  %v489 = vpack.c.b16 %v372, %v363
  %v490 = vpack.c.b16 %v382, %v373
  %v491 = vpack.c.b16 %v383, %v374
  %v492 = vpack.c.b16 %v384, %v375
  %v493 = vpack.c.b16 %v385, %v376
  %v494 = vpack.c.b16 %v386, %v377
  %v495 = vpack.c.b16 %v387, %v378
  %v496 = vpack.c.b16 %v388, %v379
  %v497 = vpack.c.b16 %v389, %v380
  %v498 = vpack.c.b16 %v390, %v381
  %v499 = vpack.c.b16 %v400, %v391
  %v500 = vpack.c.b16 %v401, %v392
  %v501 = vpack.c.b16 %v402, %v393
  %v502 = vpack.c.b16 %v403, %v394
  %v503 = vpack.c.b16 %v404, %v395
  %v504 = vpack.c.b16 %v405, %v396
  %v505 = vpack.c.b16 %v406, %v397
  %v506 = vpack.c.b16 %v407, %v398
  %v507 = vpack.c.b16 %v408, %v399
  %v508 = vpack.c.b16 %v418, %v409
  %v509 = vpack.c.b16 %v419, %v410
  %v510 = vpack.c.b16 %v420, %v411
  %v511 = vpack.c.b16 %v421, %v412
  %v512 = vpack.c.b16 %v422, %v413
  %v513 = vpack.c.b16 %v423, %v414
  %v514 = vpack.c.b16 %v424, %v415
  %v515 = vpack.c.b16 %v425, %v416
  %v516 = vpack.c.b16 %v426, %v417
  %v517 = vpack.c.b16 %v436, %v427
  %v518 = vpack.c.b16 %v437, %v428
  %v519 = vpack.c.b16 %v438, %v429
  %v520 = vpack.c.b16 %v439, %v430
  %v521 = vpack.c.b16 %v440, %v431
  %v522 = vpack.c.b16 %v441, %v432
  %v523 = vpack.c.b16 %v442, %v433
  %v524 = vpack.c.b16 %v443, %v434
  %v525 = vpack.c.b16 %v444, %v435
  %v526 = vpack.c.b16 %v454, %v445
  %v527 = vpack.c.b16 %v455, %v446
  %v528 = vpack.c.b16 %v456, %v447
  %v529 = vpack.c.b16 %v457, %v448
  %v530 = vpack.c.b16 %v458, %v449
  %v531 = vpack.c.b16 %v459, %v450
  %v532 = vpack.c.b16 %v460, %v451
  %v533 = vpack.c.b16 %v461, %v452
  %v534 = vpack.c.b16 %v462, %v453
  %v751 = vunpack.c.l.b16 %v95
  %v752 = vunpack.c.l.b16 %v96
  %v753 = vunpack.c.l.b16 %v97
  %v754 = vunpack.c.l.b16 %v98
  %v755 = vunpack.c.l.b16 %v99
  %v756 = vunpack.c.l.b16 %v100
  %v757 = vunpack.c.l.b16 %v101
  %v758 = vunpack.c.l.b16 %v102
  %v759 = vunpack.c.l.b16 %v103
  %v760 = vunpack.c.l.b16 %v104
  %v761 = vunpack.c.l.b16 %v105
  %v762 = vunpack.c.l.b16 %v106
  %v763 = vunpack.c.l.b16 %v107
  %v764 = vunpack.c.l.b16 %v108
  %v765 = vunpack.c.l.b16 %v109
  %v766 = vunpack.c.l.b16 %v110
  %v767 = vunpack.c.l.b16 %v111
  %v768 = vunpack.c.l.b16 %v112
  %v769 = vunpack.c.l.b16 %v113
  %v770 = vunpack.c.l.b16 %v114
  %v771 = vunpack.c.l.b16 %v115
  %v772 = vunpack.c.l.b16 %v116
  %v773 = vunpack.c.l.b16 %v117
  %v774 = vunpack.c.l.b16 %v118
  %v775 = vunpack.c.l.b16 %v119
  %v776 = vunpack.c.l.b16 %v120
  %v777 = vunpack.c.l.b16 %v121
  %v778 = vunpack.c.l.b16 %v122
  %v779 = vunpack.c.l.b16 %v123
  %v780 = vunpack.c.l.b16 %v124
  %v781 = vunpack.c.l.b16 %v125
  %v782 = vunpack.c.l.b16 %v126
  %v783 = vunpack.c.l.b16 %v127
  %v784 = vunpack.c.l.b16 %v128
  %v785 = vunpack.c.l.b16 %v129
  %v786 = vunpack.c.l.b16 %v130
  %v787 = vunpack.c.l.b16 %v131
  %v788 = vunpack.c.l.b16 %v132
  %v789 = vunpack.c.l.b16 %v133
  %v790 = vunpack.c.l.b16 %v134
  %v791 = vunpack.c.l.b16 %v135
  %v792 = vunpack.c.l.b16 %v136
  %v793 = vunpack.c.l.b16 %v137
  %v794 = vunpack.c.l.b16 %v138
  %v795 = vunpack.c.l.b16 %v139
  %v796 = vunpack.c.l.b16 %v140
  %v797 = vunpack.c.l.b16 %v141
  %v798 = vunpack.c.l.b16 %v142
  %v799 = vunpack.c.l.b16 %v143
  %v800 = vunpack.c.l.b16 %v144
  %v801 = vunpack.c.l.b16 %v145
  %v802 = vunpack.c.l.b16 %v146
  %v803 = vunpack.c.l.b16 %v147
  %v804 = vunpack.c.l.b16 %v148
  %v805 = vunpack.c.l.b16 %v149
  %v806 = vunpack.c.l.b16 %v150
  %v807 = vunpack.c.l.b16 %v151
  %v808 = vunpack.c.l.b16 %v152
  %v809 = vunpack.c.l.b16 %v153
  %v810 = vunpack.c.l.b16 %v154
  %v811 = vunpack.c.l.b16 %v155
  %v812 = vunpack.c.l.b16 %v156
  %v813 = vunpack.c.l.b16 %v157
  %v814 = vunpack.c.l.b16 %v158
  %v815 = vunpack.c.l.b16 %v159
  %v816 = vunpack.c.l.b16 %v160
  %v817 = vunpack.c.l.b16 %v161
  %v818 = vunpack.c.l.b16 %v162
  %v819 = vunpack.c.l.b16 %v163
  %v820 = vunpack.c.l.b16 %v164
  %v821 = vunpack.c.l.b16 %v165
  %v822 = vunpack.c.l.b16 %v166
  %v823 = vunpack.c.l.b16 %v167
  %v824 = vunpack.c.l.b16 %v168
  %v825 = vunpack.c.l.b16 %v169
  %v826 = vunpack.c.l.b16 %v170
  %v827 = vunpack.c.l.b16 %v171
  %v828 = vunpack.c.l.b16 %v172
  %v829 = vunpack.c.l.b16 %v173
  %v830 = vunpack.c.l.b16 %v174
  %v831 = vunpack.c.l.b16 %v175
  %v832 = vunpack.c.l.b16 %v176
  %v833 = vunpack.c.l.b16 %v177
  %v834 = vunpack.c.l.b16 %v178
  %v835 = vunpack.c.l.b16 %v179
  %v836 = vunpack.c.l.b16 %v180
  %v837 = vunpack.c.l.b16 %v181
  %v838 = vunpack.c.l.b16 %v182
  %v839 = vunpack.c.l.b16 %v183
  %v840 = vunpack.c.l.b16 %v184
  %v841 = vunpack.c.l.b16 %v185
  %v842 = vunpack.c.l.b16 %v186
  %v843 = vunpack.c.l.b16 %v187
  %v844 = vunpack.c.l.b16 %v188
  %v845 = vunpack.c.l.b16 %v189
  %v846 = vunpack.c.l.b16 %v190
  %v847 = vunpack.c.l.b16 %v191
  %v848 = vunpack.c.l.b16 %v192
  %v849 = vunpack.c.l.b16 %v193
  %v850 = vunpack.c.l.b16 %v194
  %v851 = vunpack.c.l.b16 %v195
  %v852 = vunpack.c.l.b16 %v196
  %v853 = vunpack.c.l.b16 %v197
  %v854 = vunpack.c.l.b16 %v198
  %v855 = vunpack.c.l.b16 %v199
  %v856 = vunpack.c.l.b16 %v200
  %v857 = vunpack.c.l.b16 %v201
  %v858 = vunpack.c.l.b16 %v202
  %v859 = vunpack.c.l.b16 %v203
  %v860 = vunpack.c.l.b16 %v204
  %v861 = vunpack.c.l.b16 %v205
  %v862 = vunpack.c.l.b16 %v206
  %v863 = vunpack.c.l.b16 %v207
  %v864 = vunpack.c.l.b16 %v208
  %v865 = vunpack.c.l.b16 %v209
  %v866 = vunpack.c.l.b16 %v210
  %v867 = vunpack.c.l.b16 %v211
  %v868 = vunpack.c.l.b16 %v212
  %v869 = vunpack.c.l.b16 %v213
  %v870 = vunpack.c.l.b16 %v214
  %v871 = vunpack.c.l.b16 %v215
  %v872 = vunpack.c.l.b16 %v216
  %v873 = vunpack.c.l.b16 %v217
  %v874 = vunpack.c.l.b16 %v218
  %v875 = vunpack.c.l.b16 %v219
  %v876 = vunpack.c.l.b16 %v220
  %v877 = vunpack.c.l.b16 %v221
  %v878 = vunpack.c.l.b16 %v222
  %v879 = vunpack.c.l.b16 %v223
  %v880 = vunpack.c.l.b16 %v224
  %v881 = vunpack.c.l.b16 %v225
  %v882 = vunpack.c.l.b16 %v226
  %v883 = vunpack.c.l.b16 %v227
  %v884 = vunpack.c.l.b16 %v228
  %v885 = vunpack.c.l.b16 %v229
  %v886 = vunpack.c.l.b16 %v230
  %v887 = vunpack.c.l.b16 %v231
  %v888 = vunpack.c.l.b16 %v232
  %v889 = vunpack.c.l.b16 %v233
  %v890 = vunpack.c.l.b16 %v234
  %v891 = vunpack.c.l.b16 %v235
  %v892 = vunpack.c.l.b16 %v236
  %v893 = vunpack.c.l.b16 %v237
  %v894 = vunpack.c.l.b16 %v238
  %v895 = vpack.c.b16 %v752, %v751
  %v896 = vpack.c.b16 %v754, %v753
  %v897 = vpack.c.b16 %v756, %v755
  %v898 = vpack.c.b16 %v758, %v757
  %v899 = vpack.c.b16 %v760, %v759
  %v900 = vpack.c.b16 %v762, %v761
  %v901 = vpack.c.b16 %v764, %v763
  %v902 = vpack.c.b16 %v766, %v765
  %v903 = vpack.c.b16 %v768, %v767
  %v904 = vpack.c.b16 %v770, %v769
  %v905 = vpack.c.b16 %v772, %v771
  %v906 = vpack.c.b16 %v774, %v773
  %v907 = vpack.c.b16 %v776, %v775
  %v908 = vpack.c.b16 %v778, %v777
  %v909 = vpack.c.b16 %v780, %v779
  %v910 = vpack.c.b16 %v782, %v781
  %v911 = vpack.c.b16 %v784, %v783
  %v912 = vpack.c.b16 %v786, %v785
  %v913 = vpack.c.b16 %v788, %v787
  %v914 = vpack.c.b16 %v790, %v789
  %v915 = vpack.c.b16 %v792, %v791
  %v916 = vpack.c.b16 %v794, %v793
  %v917 = vpack.c.b16 %v796, %v795
  %v918 = vpack.c.b16 %v798, %v797
  %v919 = vpack.c.b16 %v800, %v799
  %v920 = vpack.c.b16 %v802, %v801
  %v921 = vpack.c.b16 %v804, %v803
  %v922 = vpack.c.b16 %v806, %v805
  %v923 = vpack.c.b16 %v808, %v807
  %v924 = vpack.c.b16 %v810, %v809
  %v925 = vpack.c.b16 %v812, %v811
  %v926 = vpack.c.b16 %v814, %v813
  %v927 = vpack.c.b16 %v816, %v815
  %v928 = vpack.c.b16 %v818, %v817
  %v929 = vpack.c.b16 %v820, %v819
  %v930 = vpack.c.b16 %v822, %v821
  %v931 = vpack.c.b16 %v824, %v823
  %v932 = vpack.c.b16 %v826, %v825
  %v933 = vpack.c.b16 %v828, %v827
  %v934 = vpack.c.b16 %v830, %v829
  %v935 = vpack.c.b16 %v832, %v831
  %v936 = vpack.c.b16 %v834, %v833
  %v937 = vpack.c.b16 %v836, %v835
  %v938 = vpack.c.b16 %v838, %v837
  %v939 = vpack.c.b16 %v840, %v839
  %v940 = vpack.c.b16 %v842, %v841
  %v941 = vpack.c.b16 %v844, %v843
  %v942 = vpack.c.b16 %v846, %v845
  %v943 = vpack.c.b16 %v848, %v847
  %v944 = vpack.c.b16 %v850, %v849
  %v945 = vpack.c.b16 %v852, %v851
  %v946 = vpack.c.b16 %v854, %v853
  %v947 = vpack.c.b16 %v856, %v855
  %v948 = vpack.c.b16 %v858, %v857
  %v949 = vpack.c.b16 %v860, %v859
  %v950 = vpack.c.b16 %v862, %v861
  %v951 = vpack.c.b16 %v864, %v863
  %v952 = vpack.c.b16 %v866, %v865
  %v953 = vpack.c.b16 %v868, %v867
  %v954 = vpack.c.b16 %v870, %v869
  %v955 = vpack.c.b16 %v872, %v871
  %v956 = vpack.c.b16 %v874, %v873
  %v957 = vpack.c.b16 %v876, %v875
  %v958 = vpack.c.b16 %v878, %v877
  %v959 = vpack.c.b16 %v880, %v879
  %v960 = vpack.c.b16 %v882, %v881
  %v961 = vpack.c.b16 %v884, %v883
  %v962 = vpack.c.b16 %v886, %v885
  %v963 = vpack.c.b16 %v888, %v887
  %v964 = vpack.c.b16 %v890, %v889
  %v965 = vpack.c.b16 %v892, %v891
  %v966 = vpack.c.b16 %v894, %v893
  %1039 = vmatprep.subr.bf16.mxu0 0
  %1040 = vmatpush1.bf16.msra.mxu0 %v895
  %1041 = vmatprep.subr.bf16.mxu0 0
  %1042 = vmatpush1.bf16.msra.mxu0 %v896
  %1043 = vmatprep.subr.bf16.mxu0 0
  %1044 = vmatpush1.bf16.msra.mxu0 %v897
  %1045 = vmatprep.subr.bf16.mxu0 0
  %1046 = vmatpush1.bf16.msra.mxu0 %v898
  %1047 = vmatprep.subr.bf16.mxu0 0
  %1048 = vmatpush1.bf16.msra.mxu0 %v899
  %1049 = vmatprep.subr.bf16.mxu0 0
  %1050 = vmatpush1.bf16.msra.mxu0 %v900
  %1051 = vmatprep.subr.bf16.mxu0 0
  %1052 = vmatpush1.bf16.msra.mxu0 %v901
  %1053 = vmatprep.subr.bf16.mxu0 0
  %1054 = vmatpush1.bf16.msra.mxu0 %v902
  %1055 = vmatprep.subr.bf16.mxu0 0
  %1056 = vmatpush1.bf16.msra.mxu0 %v903
  %1057 = vmatprep.subr.bf16.mxu0 0
  %1058 = vmatpush1.bf16.msra.mxu0 %v904
  %1059 = vmatprep.subr.bf16.mxu0 0
  %1060 = vmatpush1.bf16.msra.mxu0 %v905
  %1061 = vmatprep.subr.bf16.mxu0 0
  %1062 = vmatpush1.bf16.msra.mxu0 %v906
  %1063 = vmatprep.subr.bf16.mxu0 0
  %1064 = vmatpush1.bf16.msra.mxu0 %v907
  %1065 = vmatprep.subr.bf16.mxu0 0
  %1066 = vmatpush1.bf16.msra.mxu0 %v908
  %1067 = vmatprep.subr.bf16.mxu0 0
  %1068 = vmatpush1.bf16.msra.mxu0 %v909
  %1069 = vmatprep.subr.bf16.mxu0 0
  %1070 = vmatpush1.bf16.msra.mxu0 %v910
  %1071 = vmatprep.mubr.bf16.mxu0 %v464
  %1072 = vmatmul.mubr.bf16.gmra.mrb[0].mxu0 %v463
  %v1073 = vpop.f32.mrb[0].mxu0
  %v1074 = vadd.f32 0.0, %v1073
  %v1075 = vpop.f32.mrb[0].mxu0
  %v1076 = vpop.f32.mrb[0].mxu0
  %v1077 = vadd.f32 0.0, %v1076
  %v1078 = vpop.f32.mrb[0].mxu0
  %1079 = vmatprep.mubr.bf16.mxu0 %v473
  %1080 = vmatmul.mubr.bf16.gmra.mrb[0].mxu0 %v472
  %v1081 = vpop.f32.mrb[0].mxu0
  %v1082 = vadd.f32 0.0, %v1081
  %v1083 = vpop.f32.mrb[0].mxu0
  %v1084 = vpop.f32.mrb[0].mxu0
  %v1085 = vadd.f32 0.0, %v1084
  %v1086 = vpop.f32.mrb[0].mxu0
  %1087 = vmatprep.mubr.bf16.mxu0 %v482
  %1088 = vmatmul.mubr.bf16.gmra.mrb[0].mxu0 %v481
  %v1089 = vpop.f32.mrb[0].mxu0
  %v1090 = vadd.f32 0.0, %v1089
  %v1091 = vpop.f32.mrb[0].mxu0
  %v1092 = vpop.f32.mrb[0].mxu0
  %v1093 = vadd.f32 0.0, %v1092
  %v1094 = vpop.f32.mrb[0].mxu0
  %1095 = vmatprep.mubr.bf16.mxu0 %v491
  %1096 = vmatmul.mubr.bf16.gmra.mrb[0].mxu0 %v490
  %v1097 = vpop.f32.mrb[0].mxu0
  %v1098 = vadd.f32 0.0, %v1097
  %v1099 = vpop.f32.mrb[0].mxu0
  %v1100 = vpop.f32.mrb[0].mxu0
  %v1101 = vadd.f32 0.0, %v1100
  %v1102 = vpop.f32.mrb[0].mxu0
  %1103 = vmatprep.mubr.bf16.mxu0 %v500
  %1104 = vmatmul.mubr.bf16.gmra.mrb[0].mxu0 %v499
  %v1105 = vpop.f32.mrb[0].mxu0
  %v1106 = vadd.f32 0.0, %v1105
  %v1107 = vpop.f32.mrb[0].mxu0
  %v1108 = vpop.f32.mrb[0].mxu0
  %v1109 = vadd.f32 0.0, %v1108
  %v1110 = vpop.f32.mrb[0].mxu0
  %1111 = vmatprep.mubr.bf16.mxu0 %v509
  %1112 = vmatmul.mubr.bf16.gmra.mrb[0].mxu0 %v508
  %v1113 = vpop.f32.mrb[0].mxu0
  %v1114 = vadd.f32 0.0, %v1113
  %v1115 = vpop.f32.mrb[0].mxu0
  %v1116 = vpop.f32.mrb[0].mxu0
  %v1117 = vadd.f32 0.0, %v1116
  %v1118 = vpop.f32.mrb[0].mxu0
  %1119 = vmatprep.mubr.bf16.mxu0 %v518
  %1120 = vmatmul.mubr.bf16.gmra.mrb[0].mxu0 %v517
  %v1121 = vpop.f32.mrb[0].mxu0
  %v1122 = vadd.f32 0.0, %v1121
  %v1123 = vpop.f32.mrb[0].mxu0
  %v1124 = vpop.f32.mrb[0].mxu0
  %v1125 = vadd.f32 0.0, %v1124
  %v1126 = vpop.f32.mrb[0].mxu0
  %1127 = vmatprep.mubr.bf16.mxu0 %v527
  %1128 = vmatmul.mubr.bf16.gmra.mrb[0].mxu0 %v526
  %v1129 = vpop.f32.mrb[0].mxu0
  %v1130 = vadd.f32 0.0, %v1129
  %v1131 = vpop.f32.mrb[0].mxu0
  %v1132 = vpop.f32.mrb[0].mxu0
  %v1133 = vadd.f32 0.0, %v1132
  %v1134 = vpop.f32.mrb[0].mxu0
  %1135 = vdwg.mxu0
  %1136 = vmatprep.subr.bf16.mxu0 0
  %1137 = vmatpush1.bf16.msra.mxu0 %v911
  %1138 = vmatprep.subr.bf16.mxu0 0
  %1139 = vmatpush1.bf16.msra.mxu0 %v912
  %1140 = vmatprep.subr.bf16.mxu0 0
  %1141 = vmatpush1.bf16.msra.mxu0 %v913
  %1142 = vmatprep.subr.bf16.mxu0 0
  %1143 = vmatpush1.bf16.msra.mxu0 %v914
  %1144 = vmatprep.subr.bf16.mxu0 0
  %1145 = vmatpush1.bf16.msra.mxu0 %v915
  %1146 = vmatprep.subr.bf16.mxu0 0
  %1147 = vmatpush1.bf16.msra.mxu0 %v916
  %1148 = vmatprep.subr.bf16.mxu0 0
  %1149 = vmatpush1.bf16.msra.mxu0 %v917
  %1150 = vmatprep.subr.bf16.mxu0 0
  %1151 = vmatpush1.bf16.msra.mxu0 %v918
  %1152 = vmatprep.subr.bf16.mxu0 0
  %1153 = vmatpush1.bf16.msra.mxu0 %v919
  %1154 = vmatprep.subr.bf16.mxu0 0
  %1155 = vmatpush1.bf16.msra.mxu0 %v920
  %1156 = vmatprep.subr.bf16.mxu0 0
  %1157 = vmatpush1.bf16.msra.mxu0 %v921
  %1158 = vmatprep.subr.bf16.mxu0 0
  %1159 = vmatpush1.bf16.msra.mxu0 %v922
  %1160 = vmatprep.subr.bf16.mxu0 0
  %1161 = vmatpush1.bf16.msra.mxu0 %v923
  %1162 = vmatprep.subr.bf16.mxu0 0
  %1163 = vmatpush1.bf16.msra.mxu0 %v924
  %1164 = vmatprep.subr.bf16.mxu0 0
  %1165 = vmatpush1.bf16.msra.mxu0 %v925
  %1166 = vmatprep.subr.bf16.mxu0 0
  %1167 = vmatpush1.bf16.msra.mxu0 %v926
  %1168 = vmatprep.mubr.bf16.mxu0 %v466
  %1169 = vmatmul.mubr.bf16.gmra.mrb[0].mxu0 %v465
  %v1170 = vpop.f32.mrb[0].mxu0
  %v1171 = vadd.f32 %v1074, %v1170
  %v1172 = vpop.f32.mrb[0].mxu0
  %v1173 = vpop.f32.mrb[0].mxu0
  %v1174 = vadd.f32 %v1077, %v1173
  %v1175 = vpop.f32.mrb[0].mxu0
  %1176 = vmatprep.mubr.bf16.mxu0 %v475
  %1177 = vmatmul.mubr.bf16.gmra.mrb[0].mxu0 %v474
  %v1178 = vpop.f32.mrb[0].mxu0
  %v1179 = vadd.f32 %v1082, %v1178
  %v1180 = vpop.f32.mrb[0].mxu0
  %v1181 = vpop.f32.mrb[0].mxu0
  %v1182 = vadd.f32 %v1085, %v1181
  %v1183 = vpop.f32.mrb[0].mxu0
  %1184 = vmatprep.mubr.bf16.mxu0 %v484
  %1185 = vmatmul.mubr.bf16.gmra.mrb[0].mxu0 %v483
  %v1186 = vpop.f32.mrb[0].mxu0
  %v1187 = vadd.f32 %v1090, %v1186
  %v1188 = vpop.f32.mrb[0].mxu0
  %v1189 = vpop.f32.mrb[0].mxu0
  %v1190 = vadd.f32 %v1093, %v1189
  %v1191 = vpop.f32.mrb[0].mxu0
  %1192 = vmatprep.mubr.bf16.mxu0 %v493
  %1193 = vmatmul.mubr.bf16.gmra.mrb[0].mxu0 %v492
  %v1194 = vpop.f32.mrb[0].mxu0
  %v1195 = vadd.f32 %v1098, %v1194
  %v1196 = vpop.f32.mrb[0].mxu0
  %v1197 = vpop.f32.mrb[0].mxu0
  %v1198 = vadd.f32 %v1101, %v1197
  %v1199 = vpop.f32.mrb[0].mxu0
  %1200 = vmatprep.mubr.bf16.mxu0 %v502
  %1201 = vmatmul.mubr.bf16.gmra.mrb[0].mxu0 %v501
  %v1202 = vpop.f32.mrb[0].mxu0
  %v1203 = vadd.f32 %v1106, %v1202
  %v1204 = vpop.f32.mrb[0].mxu0
  %v1205 = vpop.f32.mrb[0].mxu0
  %v1206 = vadd.f32 %v1109, %v1205
  %v1207 = vpop.f32.mrb[0].mxu0
  %1208 = vmatprep.mubr.bf16.mxu0 %v511
  %1209 = vmatmul.mubr.bf16.gmra.mrb[0].mxu0 %v510
  %v1210 = vpop.f32.mrb[0].mxu0
  %v1211 = vadd.f32 %v1114, %v1210
  %v1212 = vpop.f32.mrb[0].mxu0
  %v1213 = vpop.f32.mrb[0].mxu0
  %v1214 = vadd.f32 %v1117, %v1213
  %v1215 = vpop.f32.mrb[0].mxu0
  %1216 = vmatprep.mubr.bf16.mxu0 %v520
  %1217 = vmatmul.mubr.bf16.gmra.mrb[0].mxu0 %v519
  %v1218 = vpop.f32.mrb[0].mxu0
  %v1219 = vadd.f32 %v1122, %v1218
  %v1220 = vpop.f32.mrb[0].mxu0
  %v1221 = vpop.f32.mrb[0].mxu0
  %v1222 = vadd.f32 %v1125, %v1221
  %v1223 = vpop.f32.mrb[0].mxu0
  %1224 = vmatprep.mubr.bf16.mxu0 %v529
  %1225 = vmatmul.mubr.bf16.gmra.mrb[0].mxu0 %v528
  %v1226 = vpop.f32.mrb[0].mxu0
  %v1227 = vadd.f32 %v1130, %v1226
  %v1228 = vpop.f32.mrb[0].mxu0
  %v1229 = vpop.f32.mrb[0].mxu0
  %v1230 = vadd.f32 %v1133, %v1229
  %v1231 = vpop.f32.mrb[0].mxu0
  %1232 = vdwg.mxu0
  %1233 = vmatprep.subr.bf16.mxu0 0
  %1234 = vmatpush1.bf16.msra.mxu0 %v927
  %1235 = vmatprep.subr.bf16.mxu0 0
  %1236 = vmatpush1.bf16.msra.mxu0 %v928
  %1237 = vmatprep.subr.bf16.mxu0 0
  %1238 = vmatpush1.bf16.msra.mxu0 %v929
  %1239 = vmatprep.subr.bf16.mxu0 0
  %1240 = vmatpush1.bf16.msra.mxu0 %v930
  %1241 = vmatprep.subr.bf16.mxu0 0
  %1242 = vmatpush1.bf16.msra.mxu0 %v931
  %1243 = vmatprep.subr.bf16.mxu0 0
  %1244 = vmatpush1.bf16.msra.mxu0 %v932
  %1245 = vmatprep.subr.bf16.mxu0 0
  %1246 = vmatpush1.bf16.msra.mxu0 %v933
  %1247 = vmatprep.subr.bf16.mxu0 0
  %1248 = vmatpush1.bf16.msra.mxu0 %v934
  %1249 = vmatprep.subr.bf16.mxu0 0
  %1250 = vmatpush1.bf16.msra.mxu0 %v935
  %1251 = vmatprep.subr.bf16.mxu0 0
  %1252 = vmatpush1.bf16.msra.mxu0 %v936
  %1253 = vmatprep.subr.bf16.mxu0 0
  %1254 = vmatpush1.bf16.msra.mxu0 %v937
  %1255 = vmatprep.subr.bf16.mxu0 0
  %1256 = vmatpush1.bf16.msra.mxu0 %v938
  %1257 = vmatprep.subr.bf16.mxu0 0
  %1258 = vmatpush1.bf16.msra.mxu0 %v939
  %1259 = vmatprep.subr.bf16.mxu0 0
  %1260 = vmatpush1.bf16.msra.mxu0 %v940
  %1261 = vmatprep.subr.bf16.mxu0 0
  %1262 = vmatpush1.bf16.msra.mxu0 %v941
  %1263 = vmatprep.subr.bf16.mxu0 0
  %1264 = vmatpush1.bf16.msra.mxu0 %v942
  %1265 = vmatprep.mubr.bf16.mxu0 %v468
  %1266 = vmatmul.mubr.bf16.gmra.mrb[0].mxu0 %v467
  %v1267 = vpop.f32.mrb[0].mxu0
  %v1268 = vadd.f32 %v1171, %v1267
  %v1269 = vpop.f32.mrb[0].mxu0
  %v1270 = vpop.f32.mrb[0].mxu0
  %v1271 = vadd.f32 %v1174, %v1270
  %v1272 = vpop.f32.mrb[0].mxu0
  %1273 = vmatprep.mubr.bf16.mxu0 %v477
  %1274 = vmatmul.mubr.bf16.gmra.mrb[0].mxu0 %v476
  %v1275 = vpop.f32.mrb[0].mxu0
  %v1276 = vadd.f32 %v1179, %v1275
  %v1277 = vpop.f32.mrb[0].mxu0
  %v1278 = vpop.f32.mrb[0].mxu0
  %v1279 = vadd.f32 %v1182, %v1278
  %v1280 = vpop.f32.mrb[0].mxu0
  %1281 = vmatprep.mubr.bf16.mxu0 %v486
  %1282 = vmatmul.mubr.bf16.gmra.mrb[0].mxu0 %v485
  %v1283 = vpop.f32.mrb[0].mxu0
  %v1284 = vadd.f32 %v1187, %v1283
  %v1285 = vpop.f32.mrb[0].mxu0
  %v1286 = vpop.f32.mrb[0].mxu0
  %v1287 = vadd.f32 %v1190, %v1286
  %v1288 = vpop.f32.mrb[0].mxu0
  %1289 = vmatprep.mubr.bf16.mxu0 %v495
  %1290 = vmatmul.mubr.bf16.gmra.mrb[0].mxu0 %v494
  %v1291 = vpop.f32.mrb[0].mxu0
  %v1292 = vadd.f32 %v1195, %v1291
  %v1293 = vpop.f32.mrb[0].mxu0
  %v1294 = vpop.f32.mrb[0].mxu0
  %v1295 = vadd.f32 %v1198, %v1294
  %v1296 = vpop.f32.mrb[0].mxu0
  %1297 = vmatprep.mubr.bf16.mxu0 %v504
  %1298 = vmatmul.mubr.bf16.gmra.mrb[0].mxu0 %v503
  %v1299 = vpop.f32.mrb[0].mxu0
  %v1300 = vadd.f32 %v1203, %v1299
  %v1301 = vpop.f32.mrb[0].mxu0
  %v1302 = vpop.f32.mrb[0].mxu0
  %v1303 = vadd.f32 %v1206, %v1302
  %v1304 = vpop.f32.mrb[0].mxu0
  %1305 = vmatprep.mubr.bf16.mxu0 %v513
  %1306 = vmatmul.mubr.bf16.gmra.mrb[0].mxu0 %v512
  %v1307 = vpop.f32.mrb[0].mxu0
  %v1308 = vadd.f32 %v1211, %v1307
  %v1309 = vpop.f32.mrb[0].mxu0
  %v1310 = vpop.f32.mrb[0].mxu0
  %v1311 = vadd.f32 %v1214, %v1310
  %v1312 = vpop.f32.mrb[0].mxu0
  %1313 = vmatprep.mubr.bf16.mxu0 %v522
  %1314 = vmatmul.mubr.bf16.gmra.mrb[0].mxu0 %v521
  %v1315 = vpop.f32.mrb[0].mxu0
  %v1316 = vadd.f32 %v1219, %v1315
  %v1317 = vpop.f32.mrb[0].mxu0
  %v1318 = vpop.f32.mrb[0].mxu0
  %v1319 = vadd.f32 %v1222, %v1318
  %v1320 = vpop.f32.mrb[0].mxu0
  %1321 = vmatprep.mubr.bf16.mxu0 %v531
  %1322 = vmatmul.mubr.bf16.gmra.mrb[0].mxu0 %v530
  %v1323 = vpop.f32.mrb[0].mxu0
  %v1324 = vadd.f32 %v1227, %v1323
  %v1325 = vpop.f32.mrb[0].mxu0
  %v1326 = vpop.f32.mrb[0].mxu0
  %v1327 = vadd.f32 %v1230, %v1326
  %v1328 = vpop.f32.mrb[0].mxu0
  %1329 = vdwg.mxu0
  %1330 = vmatprep.subr.bf16.mxu0 0
  %1331 = vmatpush1.bf16.msra.mxu0 %v943
  %1332 = vmatprep.subr.bf16.mxu0 0
  %1333 = vmatpush1.bf16.msra.mxu0 %v944
  %1334 = vmatprep.subr.bf16.mxu0 0
  %1335 = vmatpush1.bf16.msra.mxu0 %v945
  %1336 = vmatprep.subr.bf16.mxu0 0
  %1337 = vmatpush1.bf16.msra.mxu0 %v946
  %1338 = vmatprep.subr.bf16.mxu0 0
  %1339 = vmatpush1.bf16.msra.mxu0 %v947
  %1340 = vmatprep.subr.bf16.mxu0 0
  %1341 = vmatpush1.bf16.msra.mxu0 %v948
  %1342 = vmatprep.subr.bf16.mxu0 0
  %1343 = vmatpush1.bf16.msra.mxu0 %v949
  %1344 = vmatprep.subr.bf16.mxu0 0
  %1345 = vmatpush1.bf16.msra.mxu0 %v950
  %1346 = vmatprep.subr.bf16.mxu0 0
  %1347 = vmatpush1.bf16.msra.mxu0 %v951
  %1348 = vmatprep.subr.bf16.mxu0 0
  %1349 = vmatpush1.bf16.msra.mxu0 %v952
  %1350 = vmatprep.subr.bf16.mxu0 0
  %1351 = vmatpush1.bf16.msra.mxu0 %v953
  %1352 = vmatprep.subr.bf16.mxu0 0
  %1353 = vmatpush1.bf16.msra.mxu0 %v954
  %1354 = vmatprep.subr.bf16.mxu0 0
  %1355 = vmatpush1.bf16.msra.mxu0 %v955
  %1356 = vmatprep.subr.bf16.mxu0 0
  %1357 = vmatpush1.bf16.msra.mxu0 %v956
  %1358 = vmatprep.subr.bf16.mxu0 0
  %1359 = vmatpush1.bf16.msra.mxu0 %v957
  %1360 = vmatprep.subr.bf16.mxu0 0
  %1361 = vmatpush1.bf16.msra.mxu0 %v958
  %1362 = vmatprep.mubr.bf16.mxu0 %v470
  %1363 = vmatmul.mubr.bf16.gmra.mrb[0].mxu0 %v469
  %v1364 = vpop.f32.mrb[0].mxu0
  %v1365 = vadd.f32 %v1268, %v1364
  %v1366 = vpop.f32.mrb[0].mxu0
  %v1367 = vpop.f32.mrb[0].mxu0
  %v1368 = vadd.f32 %v1271, %v1367
  %v1369 = vpop.f32.mrb[0].mxu0
  %1370 = vmatprep.mubr.bf16.mxu0 %v479
  %1371 = vmatmul.mubr.bf16.gmra.mrb[0].mxu0 %v478
  %v1372 = vpop.f32.mrb[0].mxu0
  %v1373 = vadd.f32 %v1276, %v1372
  %v1374 = vpop.f32.mrb[0].mxu0
  %v1375 = vpop.f32.mrb[0].mxu0
  %v1376 = vadd.f32 %v1279, %v1375
  %v1377 = vpop.f32.mrb[0].mxu0
  %1378 = vmatprep.mubr.bf16.mxu0 %v488
  %1379 = vmatmul.mubr.bf16.gmra.mrb[0].mxu0 %v487
  %v1380 = vpop.f32.mrb[0].mxu0
  %v1381 = vadd.f32 %v1284, %v1380
  %v1382 = vpop.f32.mrb[0].mxu0
  %v1383 = vpop.f32.mrb[0].mxu0
  %v1384 = vadd.f32 %v1287, %v1383
  %v1385 = vpop.f32.mrb[0].mxu0
  %1386 = vmatprep.mubr.bf16.mxu0 %v497
  %1387 = vmatmul.mubr.bf16.gmra.mrb[0].mxu0 %v496
  %v1388 = vpop.f32.mrb[0].mxu0
  %v1389 = vadd.f32 %v1292, %v1388
  %v1390 = vpop.f32.mrb[0].mxu0
  %v1391 = vpop.f32.mrb[0].mxu0
  %v1392 = vadd.f32 %v1295, %v1391
  %v1393 = vpop.f32.mrb[0].mxu0
  %1394 = vmatprep.mubr.bf16.mxu0 %v506
  %1395 = vmatmul.mubr.bf16.gmra.mrb[0].mxu0 %v505
  %v1396 = vpop.f32.mrb[0].mxu0
  %v1397 = vadd.f32 %v1300, %v1396
  %v1398 = vpop.f32.mrb[0].mxu0
  %v1399 = vpop.f32.mrb[0].mxu0
  %v1400 = vadd.f32 %v1303, %v1399
  %v1401 = vpop.f32.mrb[0].mxu0
  %1402 = vmatprep.mubr.bf16.mxu0 %v515
  %1403 = vmatmul.mubr.bf16.gmra.mrb[0].mxu0 %v514
  %v1404 = vpop.f32.mrb[0].mxu0
  %v1405 = vadd.f32 %v1308, %v1404
  %v1406 = vpop.f32.mrb[0].mxu0
  %v1407 = vpop.f32.mrb[0].mxu0
  %v1408 = vadd.f32 %v1311, %v1407
  %v1409 = vpop.f32.mrb[0].mxu0
  %1410 = vmatprep.mubr.bf16.mxu0 %v524
  %1411 = vmatmul.mubr.bf16.gmra.mrb[0].mxu0 %v523
  %v1412 = vpop.f32.mrb[0].mxu0
  %v1413 = vadd.f32 %v1316, %v1412
  %v1414 = vpop.f32.mrb[0].mxu0
  %v1415 = vpop.f32.mrb[0].mxu0
  %v1416 = vadd.f32 %v1319, %v1415
  %v1417 = vpop.f32.mrb[0].mxu0
  %1418 = vmatprep.mubr.bf16.mxu0 %v533
  %1419 = vmatmul.mubr.bf16.gmra.mrb[0].mxu0 %v532
  %v1420 = vpop.f32.mrb[0].mxu0
  %v1421 = vadd.f32 %v1324, %v1420
  %v1422 = vpop.f32.mrb[0].mxu0
  %v1423 = vpop.f32.mrb[0].mxu0
  %v1424 = vadd.f32 %v1327, %v1423
  %v1425 = vpop.f32.mrb[0].mxu0
  %1426 = vdwg.mxu0
  %1427 = vmatprep.subr.bf16.mxu0 0
  %1428 = vmatpush1.bf16.msra.mxu0 %v959
  %1429 = vmatprep.subr.bf16.mxu0 0
  %1430 = vmatpush1.bf16.msra.mxu0 %v960
  %1431 = vmatprep.subr.bf16.mxu0 0
  %1432 = vmatpush1.bf16.msra.mxu0 %v961
  %1433 = vmatprep.subr.bf16.mxu0 0
  %1434 = vmatpush1.bf16.msra.mxu0 %v962
  %1435 = vmatprep.subr.bf16.mxu0 0
  %1436 = vmatpush1.bf16.msra.mxu0 %v963
  %1437 = vmatprep.subr.bf16.mxu0 0
  %1438 = vmatpush1.bf16.msra.mxu0 %v964
  %1439 = vmatprep.subr.bf16.mxu0 0
  %1440 = vmatpush1.bf16.msra.mxu0 %v965
  %1441 = vmatprep.subr.bf16.mxu0 0
  %1442 = vmatpush1.bf16.msra.mxu0 %v966
  %1443 = vmatprep.subr.bf16.mxu0 0
  %1444 = vmatpush1.bf16.msra.mxu0 0
  %1445 = vmatprep.subr.bf16.mxu0 0
  %1446 = vmatpush1.bf16.msra.mxu0 0
  %1447 = vmatprep.subr.bf16.mxu0 0
  %1448 = vmatpush1.bf16.msra.mxu0 0
  %1449 = vmatprep.subr.bf16.mxu0 0
  %1450 = vmatpush1.bf16.msra.mxu0 0
  %1451 = vmatprep.subr.bf16.mxu0 0
  %1452 = vmatpush1.bf16.msra.mxu0 0
  %1453 = vmatprep.subr.bf16.mxu0 0
  %1454 = vmatpush1.bf16.msra.mxu0 0
  %1455 = vmatprep.subr.bf16.mxu0 0
  %1456 = vmatpush1.bf16.msra.mxu0 0
  %1457 = vmatprep.subr.bf16.mxu0 0
  %1458 = vmatpush1.bf16.msra.mxu0 0
  %1459 = vmatprep.mubr.bf16.mxu0 0
  %1460 = vmatmul.mubr.bf16.gmra.mrb[0].mxu0 %v471
  %v1461 = vpop.f32.mrb[0].mxu0
  %v1462 = vadd.f32 %v1365, %v1461
  %v1463 = vpop.f32.mrb[0].mxu0
  %v1464 = vpop.f32.mrb[0].mxu0
  %v1465 = vadd.f32 %v1368, %v1464
  %v1466 = vpop.f32.mrb[0].mxu0
  %1467 = vmatprep.mubr.bf16.mxu0 0
  %1468 = vmatmul.mubr.bf16.gmra.mrb[0].mxu0 %v480
  %v1469 = vpop.f32.mrb[0].mxu0
  %v1470 = vadd.f32 %v1373, %v1469
  %v1471 = vpop.f32.mrb[0].mxu0
  %v1472 = vpop.f32.mrb[0].mxu0
  %v1473 = vadd.f32 %v1376, %v1472
  %v1474 = vpop.f32.mrb[0].mxu0
  %1475 = vmatprep.mubr.bf16.mxu0 0
  %1476 = vmatmul.mubr.bf16.gmra.mrb[0].mxu0 %v489
  %v1477 = vpop.f32.mrb[0].mxu0
  %v1478 = vadd.f32 %v1381, %v1477
  %v1479 = vpop.f32.mrb[0].mxu0
  %v1480 = vpop.f32.mrb[0].mxu0
  %v1481 = vadd.f32 %v1384, %v1480
  %v1482 = vpop.f32.mrb[0].mxu0
  %1483 = vmatprep.mubr.bf16.mxu0 0
  %1484 = vmatmul.mubr.bf16.gmra.mrb[0].mxu0 %v498
  %v1485 = vpop.f32.mrb[0].mxu0
  %v1486 = vadd.f32 %v1389, %v1485
  %v1487 = vpop.f32.mrb[0].mxu0
  %v1488 = vpop.f32.mrb[0].mxu0
  %v1489 = vadd.f32 %v1392, %v1488
  %v1490 = vpop.f32.mrb[0].mxu0
  %1491 = vmatprep.mubr.bf16.mxu0 0
  %1492 = vmatmul.mubr.bf16.gmra.mrb[0].mxu0 %v507
  %v1493 = vpop.f32.mrb[0].mxu0
  %v1494 = vadd.f32 %v1397, %v1493
  %v1495 = vpop.f32.mrb[0].mxu0
  %v1496 = vpop.f32.mrb[0].mxu0
  %v1497 = vadd.f32 %v1400, %v1496
  %v1498 = vpop.f32.mrb[0].mxu0
  %1499 = vmatprep.mubr.bf16.mxu0 0
  %1500 = vmatmul.mubr.bf16.gmra.mrb[0].mxu0 %v516
  %v1501 = vpop.f32.mrb[0].mxu0
  %v1502 = vadd.f32 %v1405, %v1501
  %v1503 = vpop.f32.mrb[0].mxu0
  %v1504 = vpop.f32.mrb[0].mxu0
  %v1505 = vadd.f32 %v1408, %v1504
  %v1506 = vpop.f32.mrb[0].mxu0
  %1507 = vmatprep.mubr.bf16.mxu0 0
  %1508 = vmatmul.mubr.bf16.gmra.mrb[0].mxu0 %v525
  %v1509 = vpop.f32.mrb[0].mxu0
  %v1510 = vadd.f32 %v1413, %v1509
  %v1511 = vpop.f32.mrb[0].mxu0
  %v1512 = vpop.f32.mrb[0].mxu0
  %v1513 = vadd.f32 %v1416, %v1512
  %v1514 = vpop.f32.mrb[0].mxu0
  %1515 = vmatprep.mubr.bf16.mxu0 0
  %1516 = vmatmul.mubr.bf16.gmra.mrb[0].mxu0 %v534
  %v1517 = vpop.f32.mrb[0].mxu0
  %v1518 = vadd.f32 %v1421, %v1517
  %v1519 = vpop.f32.mrb[0].mxu0
  %v1520 = vpop.f32.mrb[0].mxu0
  %v1521 = vadd.f32 %v1424, %v1520
  %v1522 = vpop.f32.mrb[0].mxu0
  %1523 = vdwg.mxu0
  %1524 = vst [vmem:[%s2] sm:$0xff] %v1462
  %1525 = vst [vmem:[%s2 + $0x8] sm:$0xff] %v1465
  %1526 = vst [vmem:[%s2 + $0x10] sm:$0xff] %v1470
  %1527 = vst [vmem:[%s2 + $0x18] sm:$0xff] %v1473
  %1528 = vst [vmem:[%s2 + $0x20] sm:$0xff] %v1478
  %1529 = vst [vmem:[%s2 + $0x28] sm:$0xff] %v1481
  %1530 = vst [vmem:[%s2 + $0x30] sm:$0xff] %v1486
  %1531 = vst [vmem:[%s2 + $0x38] sm:$0xff] %v1489
  %1532 = vst [vmem:[%s2 + $0x40] sm:$0xff] %v1494
  %1533 = vst [vmem:[%s2 + $0x48] sm:$0xff] %v1497
  %1534 = vst [vmem:[%s2 + $0x50] sm:$0xff] %v1502
  %1535 = vst [vmem:[%s2 + $0x58] sm:$0xff] %v1505
  %1536 = vst [vmem:[%s2 + $0x60] sm:$0xff] %v1510
  %1537 = vst [vmem:[%s2 + $0x68] sm:$0xff] %v1513
  %1538 = vst [vmem:[%s2 + $0x70] sm:$0xff] %v1518
  %1539 = vst [vmem:[%s2 + $0x78] sm:$0xff] %v1521
  %v1540 = vadd.f32 %v1462, %v1465
  %v1541 = vadd.f32 %v1540, %v1470
  %v1542 = vadd.f32 %v1541, %v1473
  %v1543 = vadd.f32 %v1542, %v1478
  %v1544 = vadd.f32 %v1543, %v1481
  %v1545 = vadd.f32 %v1544, %v1486
  %v1546 = vadd.f32 %v1545, %v1489
  %v1547 = vadd.f32 %v1546, %v1494
  %v1548 = vadd.f32 %v1547, %v1497
  %v1549 = vadd.f32 %v1548, %v1502
  %v1550 = vadd.f32 %v1549, %v1505
  %v1551 = vadd.f32 %v1550, %v1510
  %v1552 = vadd.f32 %v1551, %v1513
  %v1553 = vadd.f32 %v1552, %v1518
  %v1554 = vadd.f32 %v1553, %v1521
  %v1555 = vrot.slane %v1554, 4
  %v1556 = vadd.f32 %v1554, %v1555
  %v1557 = vrot.slane %v1556, 2
  %v1558 = vadd.f32 %v1556, %v1557
  %v1559 = vrot.slane %v1558, 1
  %v1560 = vadd.f32 %v1558, %v1559
  %v1561 = vmul.f32 %v1462, %v1462
  %v1562 = vmul.f32 %v1465, %v1465
  %v1563 = vmul.f32 %v1470, %v1470
  %v1564 = vmul.f32 %v1473, %v1473
  %v1565 = vmul.f32 %v1478, %v1478
  %v1566 = vmul.f32 %v1481, %v1481
  %v1567 = vmul.f32 %v1486, %v1486
  %v1568 = vmul.f32 %v1489, %v1489
  %v1569 = vmul.f32 %v1494, %v1494
  %v1570 = vmul.f32 %v1497, %v1497
  %v1571 = vmul.f32 %v1502, %v1502
  %v1572 = vmul.f32 %v1505, %v1505
  %v1573 = vmul.f32 %v1510, %v1510
  %v1574 = vmul.f32 %v1513, %v1513
  %v1575 = vmul.f32 %v1518, %v1518
  %v1576 = vmul.f32 %v1521, %v1521
  %v1577 = vadd.f32 %v1561, %v1562
  %v1578 = vadd.f32 %v1577, %v1563
  %v1579 = vadd.f32 %v1578, %v1564
  %v1580 = vadd.f32 %v1579, %v1565
  %v1581 = vadd.f32 %v1580, %v1566
  %v1582 = vadd.f32 %v1581, %v1567
  %v1583 = vadd.f32 %v1582, %v1568
  %v1584 = vadd.f32 %v1583, %v1569
  %v1585 = vadd.f32 %v1584, %v1570
  %v1586 = vadd.f32 %v1585, %v1571
  %v1587 = vadd.f32 %v1586, %v1572
  %v1588 = vadd.f32 %v1587, %v1573
  %v1589 = vadd.f32 %v1588, %v1574
  %v1590 = vadd.f32 %v1589, %v1575
  %v1591 = vadd.f32 %v1590, %v1576
  %v1592 = vrot.slane %v1591, 4
  %v1593 = vadd.f32 %v1591, %v1592
  %v1594 = vrot.slane %v1593, 2
  %v1595 = vadd.f32 %v1593, %v1594
  %v1596 = vrot.slane %v1595, 1
  %v1597 = vadd.f32 %v1595, %v1596
  %1598 = vst [vmem:[%s3] sm:$0xff] %v1560
  %1599 = vst [vmem:[%s4] sm:$0xff] %v1597
  // Predicated region
  $region10: #{basic_block.6} parent=0 // pred_check
    _
  $region11: #{basic_block.6} parent=0 // pred_check_branch
    %1601 = sbr.rel (0) target = $region13
  $region12: #{basic_block.6} parent=0 // pred_region
    _
  $region13: #{basic_block.6} parent=0 // pred_fallthru
    _
  // Predicated region
  $region14: #{basic_block.6} parent=0 // pred_check
    _
  $region15: #{basic_block.6} parent=0 // pred_check_branch
    %1603 = sbr.rel (0) target = $region17
  $region16: #{basic_block.6} parent=0 // pred_region
    _
  $region17: #{basic_block.6} parent=0 // pred_fallthru
    _
  // Predicated region
  $region18: #{basic_block.6} parent=0 // pred_check
    _
  $region19: #{basic_block.6} parent=0 // pred_check_branch
    %1605 = sbr.rel (0) target = $region21
  $region20: #{basic_block.6} parent=0 // pred_region
    _
  $region21: #{basic_block.6} parent=0 // pred_fallthru
    _
  // Predicated region
  $region22: #{basic_block.6} parent=0 // pred_check
    _
  $region23: #{basic_block.6} parent=0 // pred_check_branch
    %1607 = sbr.rel (0) target = $region25
  $region24: #{basic_block.6} parent=0 // pred_region
    _
  $region25: #{basic_block.6} parent=0 // pred_fallthru
    _
  // Predicated region
  $region26: #{basic_block.6} parent=0 // pred_check
    _
  $region27: #{basic_block.6} parent=0 // pred_check_branch
    %1609 = sbr.rel (0) target = $region29
  $region28: #{basic_block.6} parent=0 // pred_region
    _
  $region29: #{basic_block.6} parent=0 // pred_fallthru
    _
  // Predicated region
  $region30: #{basic_block.6} parent=0 // pred_check
    _
  $region31: #{basic_block.6} parent=0 // pred_check_branch
    %1611 = sbr.rel (0) target = $region33
  $region32: #{basic_block.6} parent=0 // pred_region
    _
  $region33: #{basic_block.6} parent=0 // pred_fallthru
    _

</llo_original>
